<compile_context>
chip_gen: v7x
topology: tpu7x:2x2x1
jax: 0.10.0
libtpu: 0.0.40
codegen_flags: <defaults>
</compile_context>

<pallas_src>
import jax
import jax.numpy as jnp
from jax.experimental import pallas as pl
from jax.experimental.pallas import tpu as pltpu

# ---- small, TPU-friendly stand-ins for the Config sizes --------------------
# (original: TEXT_EMBED=768, TEXT_PROJECT=IMAGE_FEATURE=HIDDEN_1=2048,
#  HIDDEN_2=1024, num_classes = |answer set|)
BATCH         = 512   # 2 batch tiles of 256 (one per TC on v7x)
TEXT_EMBED    = 128   # Config.TEXT_EMBED_SIZE (scaled)
IMAGE_FEATURE = 256   # Config.IMAGE_FEATURE_SIZE == TEXT_PROJECT_SIZE (scaled)
HIDDEN_1      = 256   # Config.HIDDEN_SIZE_1 (scaled)
HIDDEN_2      = 128   # Config.HIDDEN_SIZE_2 (scaled)
NUM_CLASSES   = 100   # number of answer classes (scaled; not a multiple of 128
                      # on purpose, to exercise the lane-dense padding path)

LEAKY_SLOPE = 0.01    # nn.LeakyReLU default negative_slope
BATCH_TILE  = 256     # rows per grid step


def _round_up(x, m):
    return (x + m - 1) // m * m


def _leaky_relu(x):
    return jnp.where(x >= 0, x, LEAKY_SLOPE * x)


def _pick_vmem_limit():
    """Per-generation VMEM limit: physical capacity minus headroom, capped."""
    try:
        cap = pltpu.get_tpu_info().vmem_capacity_bytes
    except Exception:
        cap = 64 << 20
    return int(max(32 << 20, min(cap - (12 << 20), 100 << 20)))


def vqa_head_kernel(text_ref, img_ref,
                    wproj_ref, bproj_ref,
                    w1_ref, b1_ref,
                    w2_ref, b2_ref,
                    w3_ref, b3_ref,
                    out_ref):
    # text_projection: bf16 x bf16 MXU dot, f32 accumulate, f32 bias add.
    text_proj = jnp.dot(text_ref[...], wproj_ref[...],
                        preferred_element_type=jnp.float32) + bproj_ref[...]

    # combined = text_proj * image_features (f32 VPU mul), then back to bf16.
    combined = (text_proj * img_ref[...].astype(jnp.float32)).astype(jnp.bfloat16)

    # dropout -> identity (eval-mode semantics)

    # fc1 + LeakyReLU (f32), re-cast to bf16 for the next MXU dot.
    h1 = _leaky_relu(jnp.dot(combined, w1_ref[...],
                             preferred_element_type=jnp.float32)
                     + b1_ref[...]).astype(jnp.bfloat16)

    # fc2 + LeakyReLU
    h2 = _leaky_relu(jnp.dot(h1, w2_ref[...],
                             preferred_element_type=jnp.float32)
                     + b2_ref[...]).astype(jnp.bfloat16)

    # fc3 (logits) — lane-dense padded output slab (f32).
    out_ref[...] = (jnp.dot(h2, w3_ref[...],
                            preferred_element_type=jnp.float32)
                    + b3_ref[...]).astype(out_ref.dtype)


def vqa_head_pallas(text_features, image_features, params, num_classes,
                    *, batch_tile=BATCH_TILE):
    """Runs the VQAModelSystem trainable head in a batch-tiled Pallas kernel.

    text_features : [B, TEXT_EMBED]    (BERT pooler_output stand-in)
    image_features: [B, IMAGE_FEATURE] (ResNet pooled-feature stand-in)
    params        : weights in bf16 ([in, out] layout, fc3 pre-padded to a
                    multiple of 128 classes), biases in f32 ([1, out])
    """
    (wproj, bproj, w1, b1, w2, b2, w3, b3) = params
    B = text_features.shape[0]
    text_embed = text_features.shape[1]
    img_feat = image_features.shape[1]
    c_pad = w3.shape[1]

    # Safety net: guarantee lane-dense fc3 even if init_params didn't pad.
    if c_pad % 128 != 0:
        new_c = _round_up(c_pad, 128)
        w3 = jnp.pad(w3, ((0, 0), (0, new_c - c_pad)))
        b3 = jnp.pad(b3, ((0, 0), (0, new_c - c_pad)))
        c_pad = new_c

    # Cast activations to bf16 once in the wrapper (halves per-tile DMA).
    text_features = text_features.astype(jnp.bfloat16)
    image_features = image_features.astype(jnp.bfloat16)

    # Pad batch up to a multiple of the batch tile.
    b_pad = _round_up(max(B, 1), batch_tile)
    if b_pad != B:
        text_features = jnp.pad(text_features, ((0, b_pad - B), (0, 0)))
        image_features = jnp.pad(image_features, ((0, b_pad - B), (0, 0)))
    num_tiles = b_pad // batch_tile

    weights = (wproj, bproj, w1, b1, w2, b2, w3, b3)

    def run(single_buffer_weights):
        def stationary(arr):
            idx = lambda i: (0, 0)
            if single_buffer_weights:
                # Block index never changes -> one resident copy, no re-fetch.
                return pl.BlockSpec(arr.shape, idx,
                                    pipeline_mode=pl.Buffered(1))
            return pl.BlockSpec(arr.shape, idx)

        in_specs = [
            pl.BlockSpec((batch_tile, text_embed), lambda i: (i, 0)),
            pl.BlockSpec((batch_tile, img_feat),   lambda i: (i, 0)),
        ] + [stationary(w) for w in weights]
        out_spec = pl.BlockSpec((batch_tile, c_pad), lambda i: (i, 0))

        return pl.pallas_call(
            vqa_head_kernel,
            out_shape=jax.ShapeDtypeStruct((b_pad, c_pad), jnp.float32),
            grid=(num_tiles,),
            in_specs=in_specs,
            out_specs=out_spec,
            compiler_params=pltpu.CompilerParams(
                dimension_semantics=("parallel",),  # batch tiles shard across TCs
                vmem_limit_bytes=_pick_vmem_limit(),
            ),
        )(text_features, image_features, *weights)

    try:
        out_padded = run(single_buffer_weights=True)
    except Exception:
        # Older/newer jax without pipeline_mode=pl.Buffered(1) support.
        out_padded = run(single_buffer_weights=False)

    return out_padded[:B, :num_classes]


def init_params(key):
    """Deterministic parameter init. Linear weights stored [in, out] in bf16
    (cast once here); biases [1, out] in f32. fc3 is pre-padded to a
    lane-dense (multiple-of-128) class count so no per-call padding is needed."""
    ks = jax.random.split(key, 8)

    def lin(kw, kb, fan_in, fan_out):
        bound = 1.0 / jnp.sqrt(fan_in)
        w = jax.random.uniform(kw, (fan_in, fan_out), jnp.float32, -bound, bound)
        b = jax.random.uniform(kb, (1, fan_out), jnp.float32, -bound, bound)
        return w.astype(jnp.bfloat16), b

    wproj, bproj = lin(ks[0], ks[1], TEXT_EMBED, IMAGE_FEATURE)   # text_projection
    w1, b1       = lin(ks[2], ks[3], IMAGE_FEATURE, HIDDEN_1)     # fc1
    w2, b2       = lin(ks[4], ks[5], HIDDEN_1, HIDDEN_2)          # fc2
    w3, b3       = lin(ks[6], ks[7], HIDDEN_2, NUM_CLASSES)       # fc3

    c_pad = _round_up(NUM_CLASSES, 128)                           # lane-dense fc3
    if c_pad != NUM_CLASSES:
        w3 = jnp.pad(w3, ((0, 0), (0, c_pad - NUM_CLASSES)))
        b3 = jnp.pad(b3, ((0, 0), (0, c_pad - NUM_CLASSES)))

    return (wproj, bproj, w1, b1, w2, b2, w3, b3)


def reference_head(text_features, image_features, params, num_classes):
    """Pure-JAX reference mirroring the kernel's bf16/f32 mixed-precision math."""
    (wproj, bproj, w1, b1, w2, b2, w3, b3) = params
    t = text_features.astype(jnp.bfloat16)
    im = image_features.astype(jnp.bfloat16)
    tp = jnp.dot(t, wproj, preferred_element_type=jnp.float32) + bproj
    c = (tp * im.astype(jnp.float32)).astype(jnp.bfloat16)
    h1 = _leaky_relu(jnp.dot(c, w1, preferred_element_type=jnp.float32)
                     + b1).astype(jnp.bfloat16)
    h2 = _leaky_relu(jnp.dot(h1, w2, preferred_element_type=jnp.float32)
                     + b2).astype(jnp.bfloat16)
    logits = jnp.dot(h2, w3, preferred_element_type=jnp.float32) + b3
    return logits[:, :num_classes]


if __name__ == "__main__":
    key = jax.random.PRNGKey(0)
    k_text, k_img, k_params = jax.random.split(key, 3)

    # Frozen-backbone feature stand-ins (what resnet(...) / bert(...).pooler
    # would produce under torch.no_grad()).
    text_features = jax.random.normal(k_text, (BATCH, TEXT_EMBED), jnp.float32)
    image_features = jax.random.normal(k_img, (BATCH, IMAGE_FEATURE), jnp.float32)

    params = init_params(k_params)

    out = vqa_head_pallas(text_features, image_features, params, NUM_CLASSES)
    out = jax.block_until_ready(out)

    ref = reference_head(text_features, image_features, params, NUM_CLASSES)
    assert out.shape == (BATCH, NUM_CLASSES), out.shape
    # bf16 weights/activations -> looser tolerance than pure f32.
    assert jnp.allclose(out, ref, atol=2e-2, rtol=2e-2), "mismatch vs reference"

    print("KERNEL_OK")
</pallas_src>

<mosaic_0001>
module attributes {stable_mosaic.version = 11 : i64} {
  func.func @vqa_head_kernel(%arg0: i32, %arg1: memref<256x128xbf16, #tpu.memory_space<vmem>>, %arg2: memref<256x256xbf16, #tpu.memory_space<vmem>>, %arg3: memref<128x256xbf16, #tpu.memory_space<vmem>>, %arg4: memref<1x256xf32, #tpu.memory_space<vmem>>, %arg5: memref<256x256xbf16, #tpu.memory_space<vmem>>, %arg6: memref<1x256xf32, #tpu.memory_space<vmem>>, %arg7: memref<256x128xbf16, #tpu.memory_space<vmem>>, %arg8: memref<1x128xf32, #tpu.memory_space<vmem>>, %arg9: memref<128x128xbf16, #tpu.memory_space<vmem>>, %arg10: memref<1x128xf32, #tpu.memory_space<vmem>>, %arg11: memref<256x128xf32, #tpu.memory_space<vmem>>) attributes {dimension_semantics = [#tpu.dimension_semantics<parallel>], iteration_bounds = array<i64: 2>, scalar_prefetch = 0 : i64, scratch_operands = 0 : i64, tpu.core_type = #tpu.core_type<tc>, window_params = [{transform_indices = @transform_0, window_bounds = array<i64: 256, 128>}, {transform_indices = @transform_1, window_bounds = array<i64: 256, 256>}, {pipeline_mode = #tpu.pipeline_mode<synchronous>, transform_indices = @transform_2, window_bounds = array<i64: 128, 256>}, {pipeline_mode = #tpu.pipeline_mode<synchronous>, transform_indices = @transform_3, window_bounds = array<i64: 1, 256>}, {pipeline_mode = #tpu.pipeline_mode<synchronous>, transform_indices = @transform_4, window_bounds = array<i64: 256, 256>}, {pipeline_mode = #tpu.pipeline_mode<synchronous>, transform_indices = @transform_5, window_bounds = array<i64: 1, 256>}, {pipeline_mode = #tpu.pipeline_mode<synchronous>, transform_indices = @transform_6, window_bounds = array<i64: 256, 128>}, {pipeline_mode = #tpu.pipeline_mode<synchronous>, transform_indices = @transform_7, window_bounds = array<i64: 1, 128>}, {pipeline_mode = #tpu.pipeline_mode<synchronous>, transform_indices = @transform_8, window_bounds = array<i64: 128, 128>}, {pipeline_mode = #tpu.pipeline_mode<synchronous>, transform_indices = @transform_9, window_bounds = array<i64: 1, 128>}, {transform_indices = @transform_10, window_bounds = array<i64: 256, 128>}]} {
    %c0 = arith.constant 0 : index
    %c0_0 = arith.constant 0 : index
    %0 = vector.load %arg1[%c0, %c0_0] : memref<256x128xbf16, #tpu.memory_space<vmem>>, vector<256x128xbf16>
    %c0_1 = arith.constant 0 : index
    %c0_2 = arith.constant 0 : index
    %1 = vector.load %arg3[%c0_1, %c0_2] : memref<128x256xbf16, #tpu.memory_space<vmem>>, vector<128x256xbf16>
    %cst = arith.constant dense<0.000000e+00> : vector<256x256xf32>
    %2 = tpu.matmul %0, %1, %cst {dimension_numbers = #tpu.dot_dimension_numbers<[1], [0], [0], [1], [0, 0, 1, 1], [], []>} : vector<256x128xbf16>, vector<128x256xbf16>, vector<256x256xf32> -> vector<256x256xf32>
    %c0_3 = arith.constant 0 : index
    %c0_4 = arith.constant 0 : index
    %3 = vector.load %arg4[%c0_3, %c0_4] : memref<1x256xf32, #tpu.memory_space<vmem>>, vector<1x256xf32>
    %4 = vector.broadcast %3 : vector<1x256xf32> to vector<256x256xf32>
    %5 = arith.addf %2, %4 : vector<256x256xf32>
    %c0_5 = arith.constant 0 : index
    %c0_6 = arith.constant 0 : index
    %6 = vector.load %arg2[%c0_5, %c0_6] : memref<256x256xbf16, #tpu.memory_space<vmem>>, vector<256x256xbf16>
    %7 = arith.extf %6 : vector<256x256xbf16> to vector<256x256xf32>
    %8 = arith.mulf %5, %7 : vector<256x256xf32>
    %9 = arith.truncf %8 : vector<256x256xf32> to vector<256x256xbf16>
    %c0_7 = arith.constant 0 : index
    %c0_8 = arith.constant 0 : index
    %10 = vector.load %arg5[%c0_7, %c0_8] : memref<256x256xbf16, #tpu.memory_space<vmem>>, vector<256x256xbf16>
    %cst_9 = arith.constant dense<0.000000e+00> : vector<256x256xf32>
    %11 = tpu.matmul %9, %10, %cst_9 {dimension_numbers = #tpu.dot_dimension_numbers<[1], [0], [0], [1], [0, 0, 1, 1], [], []>} : vector<256x256xbf16>, vector<256x256xbf16>, vector<256x256xf32> -> vector<256x256xf32>
    %c0_10 = arith.constant 0 : index
    %c0_11 = arith.constant 0 : index
    %12 = vector.load %arg6[%c0_10, %c0_11] : memref<1x256xf32, #tpu.memory_space<vmem>>, vector<1x256xf32>
    %13 = vector.broadcast %12 : vector<1x256xf32> to vector<256x256xf32>
    %14 = arith.addf %11, %13 : vector<256x256xf32>
    %cst_12 = arith.constant 0.000000e+00 : f32
    %15 = vector.broadcast %cst_12 : f32 to vector<256x256xf32>
    %16 = arith.cmpf oge, %14, %15 : vector<256x256xf32>
    %cst_13 = arith.constant 0.00999999977 : f32
    %17 = vector.broadcast %cst_13 : f32 to vector<256x256xf32>
    %18 = arith.mulf %17, %14 : vector<256x256xf32>
    %19 = arith.select %16, %14, %18 : vector<256x256xi1>, vector<256x256xf32>
    %20 = arith.truncf %19 : vector<256x256xf32> to vector<256x256xbf16>
    %c0_14 = arith.constant 0 : index
    %c0_15 = arith.constant 0 : index
    %21 = vector.load %arg7[%c0_14, %c0_15] : memref<256x128xbf16, #tpu.memory_space<vmem>>, vector<256x128xbf16>
    %cst_16 = arith.constant dense<0.000000e+00> : vector<256x128xf32>
    %22 = tpu.matmul %20, %21, %cst_16 {dimension_numbers = #tpu.dot_dimension_numbers<[1], [0], [0], [1], [0, 0, 1, 1], [], []>} : vector<256x256xbf16>, vector<256x128xbf16>, vector<256x128xf32> -> vector<256x128xf32>
    %c0_17 = arith.constant 0 : index
    %c0_18 = arith.constant 0 : index
    %23 = vector.load %arg8[%c0_17, %c0_18] : memref<1x128xf32, #tpu.memory_space<vmem>>, vector<1x128xf32>
    %24 = vector.broadcast %23 : vector<1x128xf32> to vector<256x128xf32>
    %25 = arith.addf %22, %24 : vector<256x128xf32>
    %cst_19 = arith.constant 0.000000e+00 : f32
    %26 = vector.broadcast %cst_19 : f32 to vector<256x128xf32>
    %27 = arith.cmpf oge, %25, %26 : vector<256x128xf32>
    %cst_20 = arith.constant 0.00999999977 : f32
    %28 = vector.broadcast %cst_20 : f32 to vector<256x128xf32>
    %29 = arith.mulf %28, %25 : vector<256x128xf32>
    %30 = arith.select %27, %25, %29 : vector<256x128xi1>, vector<256x128xf32>
    %31 = arith.truncf %30 : vector<256x128xf32> to vector<256x128xbf16>
    %c0_21 = arith.constant 0 : index
    %c0_22 = arith.constant 0 : index
    %32 = vector.load %arg9[%c0_21, %c0_22] : memref<128x128xbf16, #tpu.memory_space<vmem>>, vector<128x128xbf16>
    %cst_23 = arith.constant dense<0.000000e+00> : vector<256x128xf32>
    %33 = tpu.matmul %31, %32, %cst_23 {dimension_numbers = #tpu.dot_dimension_numbers<[1], [0], [0], [1], [0, 0, 1, 1], [], []>} : vector<256x128xbf16>, vector<128x128xbf16>, vector<256x128xf32> -> vector<256x128xf32>
    %c0_24 = arith.constant 0 : index
    %c0_25 = arith.constant 0 : index
    %34 = vector.load %arg10[%c0_24, %c0_25] : memref<1x128xf32, #tpu.memory_space<vmem>>, vector<1x128xf32>
    %35 = vector.broadcast %34 : vector<1x128xf32> to vector<256x128xf32>
    %36 = arith.addf %33, %35 : vector<256x128xf32>
    %c0_26 = arith.constant 0 : index
    %c0_27 = arith.constant 0 : index
    %37 = vector.load %arg11[%c0_26, %c0_27] : memref<256x128xf32, #tpu.memory_space<vmem>>, vector<256x128xf32>
    tpu.vector_store %arg11[%c0_26, %c0_27], %36 {strides = array<i32>} : memref<256x128xf32, #tpu.memory_space<vmem>>, vector<256x128xf32>,
    return
  }
  func.func @transform_0(%arg0: i32) -> (i32, i32) {
    %c0_i32 = arith.constant 0 : i32
    %c0_i32_0 = arith.constant 0 : i32
    return %arg0, %c0_i32 : i32, i32
  }
  func.func @transform_1(%arg0: i32) -> (i32, i32) {
    %c0_i32 = arith.constant 0 : i32
    %c0_i32_0 = arith.constant 0 : i32
    return %arg0, %c0_i32 : i32, i32
  }
  func.func @transform_2(%arg0: i32) -> (i32, i32) {
    %c0_i32 = arith.constant 0 : i32
    %c0_i32_0 = arith.constant 0 : i32
    %c0_i32_1 = arith.constant 0 : i32
    return %c0_i32, %c0_i32_0 : i32, i32
  }
  func.func @transform_3(%arg0: i32) -> (i32, i32) {
    %c0_i32 = arith.constant 0 : i32
    %c0_i32_0 = arith.constant 0 : i32
    %c0_i32_1 = arith.constant 0 : i32
    return %c0_i32, %c0_i32_0 : i32, i32
  }
  func.func @transform_4(%arg0: i32) -> (i32, i32) {
    %c0_i32 = arith.constant 0 : i32
    %c0_i32_0 = arith.constant 0 : i32
    %c0_i32_1 = arith.constant 0 : i32
    return %c0_i32, %c0_i32_0 : i32, i32
  }
  func.func @transform_5(%arg0: i32) -> (i32, i32) {
    %c0_i32 = arith.constant 0 : i32
    %c0_i32_0 = arith.constant 0 : i32
    %c0_i32_1 = arith.constant 0 : i32
    return %c0_i32, %c0_i32_0 : i32, i32
  }
  func.func @transform_6(%arg0: i32) -> (i32, i32) {
    %c0_i32 = arith.constant 0 : i32
    %c0_i32_0 = arith.constant 0 : i32
    %c0_i32_1 = arith.constant 0 : i32
    return %c0_i32, %c0_i32_0 : i32, i32
  }
  func.func @transform_7(%arg0: i32) -> (i32, i32) {
    %c0_i32 = arith.constant 0 : i32
    %c0_i32_0 = arith.constant 0 : i32
    %c0_i32_1 = arith.constant 0 : i32
    return %c0_i32, %c0_i32_0 : i32, i32
  }
  func.func @transform_8(%arg0: i32) -> (i32, i32) {
    %c0_i32 = arith.constant 0 : i32
    %c0_i32_0 = arith.constant 0 : i32
    %c0_i32_1 = arith.constant 0 : i32
    return %c0_i32, %c0_i32_0 : i32, i32
  }
  func.func @transform_9(%arg0: i32) -> (i32, i32) {
    %c0_i32 = arith.constant 0 : i32
    %c0_i32_0 = arith.constant 0 : i32
    %c0_i32_1 = arith.constant 0 : i32
    return %c0_i32, %c0_i32_0 : i32, i32
  }
  func.func @transform_10(%arg0: i32) -> (i32, i32) {
    %c0_i32 = arith.constant 0 : i32
    %c0_i32_0 = arith.constant 0 : i32
    return %arg0, %c0_i32 : i32, i32
  }
}

module attributes {stable_mosaic.version = 11 : i64} {
  func.func @vqa_head_kernel(%arg0: i32, %arg1: memref<256x128xbf16, #tpu.memory_space<vmem>>, %arg2: memref<256x256xbf16, #tpu.memory_space<vmem>>, %arg3: memref<128x256xbf16, #tpu.memory_space<vmem>>, %arg4: memref<1x256xf32, #tpu.memory_space<vmem>>, %arg5: memref<256x256xbf16, #tpu.memory_space<vmem>>, %arg6: memref<1x256xf32, #tpu.memory_space<vmem>>, %arg7: memref<256x128xbf16, #tpu.memory_space<vmem>>, %arg8: memref<1x128xf32, #tpu.memory_space<vmem>>, %arg9: memref<128x128xbf16, #tpu.memory_space<vmem>>, %arg10: memref<1x128xf32, #tpu.memory_space<vmem>>, %arg11: memref<256x128xf32, #tpu.memory_space<vmem>>) attributes {dimension_semantics = [#tpu.dimension_semantics<parallel>], iteration_bounds = array<i64: 2>, scalar_prefetch = 0 : i64, scratch_operands = 0 : i64, tpu.core_type = #tpu.core_type<tc>, window_params = [{transform_indices = @transform_0, window_bounds = array<i64: 256, 128>}, {transform_indices = @transform_1, window_bounds = array<i64: 256, 256>}, {pipeline_mode = #tpu.pipeline_mode<synchronous>, transform_indices = @transform_2, window_bounds = array<i64: 128, 256>}, {pipeline_mode = #tpu.pipeline_mode<synchronous>, transform_indices = @transform_3, window_bounds = array<i64: 1, 256>}, {pipeline_mode = #tpu.pipeline_mode<synchronous>, transform_indices = @transform_4, window_bounds = array<i64: 256, 256>}, {pipeline_mode = #tpu.pipeline_mode<synchronous>, transform_indices = @transform_5, window_bounds = array<i64: 1, 256>}, {pipeline_mode = #tpu.pipeline_mode<synchronous>, transform_indices = @transform_6, window_bounds = array<i64: 256, 128>}, {pipeline_mode = #tpu.pipeline_mode<synchronous>, transform_indices = @transform_7, window_bounds = array<i64: 1, 128>}, {pipeline_mode = #tpu.pipeline_mode<synchronous>, transform_indices = @transform_8, window_bounds = array<i64: 128, 128>}, {pipeline_mode = #tpu.pipeline_mode<synchronous>, transform_indices = @transform_9, window_bounds = array<i64: 1, 128>}, {transform_indices = @transform_10, window_bounds = array<i64: 256, 128>}]} {
    %c0 = arith.constant 0 : index
    %c0_0 = arith.constant 0 : index
    %0 = vector.load %arg1[%c0, %c0_0] : memref<256x128xbf16, #tpu.memory_space<vmem>>, vector<256x128xbf16>
    %c0_1 = arith.constant 0 : index
    %c0_2 = arith.constant 0 : index
    %1 = vector.load %arg3[%c0_1, %c0_2] : memref<128x256xbf16, #tpu.memory_space<vmem>>, vector<128x256xbf16>
    %cst = arith.constant dense<0.000000e+00> : vector<256x256xf32>
    %2 = tpu.matmul %0, %1, %cst {dimension_numbers = #tpu.dot_dimension_numbers<[1], [0], [0], [1], [0, 0, 1, 1], [], []>} : vector<256x128xbf16>, vector<128x256xbf16>, vector<256x256xf32> -> vector<256x256xf32>
    %c0_3 = arith.constant 0 : index
    %c0_4 = arith.constant 0 : index
    %3 = vector.load %arg4[%c0_3, %c0_4] : memref<1x256xf32, #tpu.memory_space<vmem>>, vector<1x256xf32>
    %4 = vector.broadcast %3 : vector<1x256xf32> to vector<256x256xf32>
    %5 = arith.addf %2, %4 : vector<256x256xf32>
    %c0_5 = arith.constant 0 : index
    %c0_6 = arith.constant 0 : index
    %6 = vector.load %arg2[%c0_5, %c0_6] : memref<256x256xbf16, #tpu.memory_space<vmem>>, vector<256x256xbf16>
    %7 = arith.extf %6 : vector<256x256xbf16> to vector<256x256xf32>
    %8 = arith.mulf %5, %7 : vector<256x256xf32>
    %9 = arith.truncf %8 : vector<256x256xf32> to vector<256x256xbf16>
    %c0_7 = arith.constant 0 : index
    %c0_8 = arith.constant 0 : index
    %10 = vector.load %arg5[%c0_7, %c0_8] : memref<256x256xbf16, #tpu.memory_space<vmem>>, vector<256x256xbf16>
    %cst_9 = arith.constant dense<0.000000e+00> : vector<256x256xf32>
    %11 = tpu.matmul %9, %10, %cst_9 {dimension_numbers = #tpu.dot_dimension_numbers<[1], [0], [0], [1], [0, 0, 1, 1], [], []>} : vector<256x256xbf16>, vector<256x256xbf16>, vector<256x256xf32> -> vector<256x256xf32>
    %c0_10 = arith.constant 0 : index
    %c0_11 = arith.constant 0 : index
    %12 = vector.load %arg6[%c0_10, %c0_11] : memref<1x256xf32, #tpu.memory_space<vmem>>, vector<1x256xf32>
    %13 = vector.broadcast %12 : vector<1x256xf32> to vector<256x256xf32>
    %14 = arith.addf %11, %13 : vector<256x256xf32>
    %cst_12 = arith.constant 0.000000e+00 : f32
    %15 = vector.broadcast %cst_12 : f32 to vector<256x256xf32>
    %16 = arith.cmpf oge, %14, %15 : vector<256x256xf32>
    %cst_13 = arith.constant 0.00999999977 : f32
    %17 = vector.broadcast %cst_13 : f32 to vector<256x256xf32>
    %18 = arith.mulf %17, %14 : vector<256x256xf32>
    %19 = arith.select %16, %14, %18 : vector<256x256xi1>, vector<256x256xf32>
    %20 = arith.truncf %19 : vector<256x256xf32> to vector<256x256xbf16>
    %c0_14 = arith.constant 0 : index
    %c0_15 = arith.constant 0 : index
    %21 = vector.load %arg7[%c0_14, %c0_15] : memref<256x128xbf16, #tpu.memory_space<vmem>>, vector<256x128xbf16>
    %cst_16 = arith.constant dense<0.000000e+00> : vector<256x128xf32>
    %22 = tpu.matmul %20, %21, %cst_16 {dimension_numbers = #tpu.dot_dimension_numbers<[1], [0], [0], [1], [0, 0, 1, 1], [], []>} : vector<256x256xbf16>, vector<256x128xbf16>, vector<256x128xf32> -> vector<256x128xf32>
    %c0_17 = arith.constant 0 : index
    %c0_18 = arith.constant 0 : index
    %23 = vector.load %arg8[%c0_17, %c0_18] : memref<1x128xf32, #tpu.memory_space<vmem>>, vector<1x128xf32>
    %24 = vector.broadcast %23 : vector<1x128xf32> to vector<256x128xf32>
    %25 = arith.addf %22, %24 : vector<256x128xf32>
    %cst_19 = arith.constant 0.000000e+00 : f32
    %26 = vector.broadcast %cst_19 : f32 to vector<256x128xf32>
    %27 = arith.cmpf oge, %25, %26 : vector<256x128xf32>
    %cst_20 = arith.constant 0.00999999977 : f32
    %28 = vector.broadcast %cst_20 : f32 to vector<256x128xf32>
    %29 = arith.mulf %28, %25 : vector<256x128xf32>
    %30 = arith.select %27, %25, %29 : vector<256x128xi1>, vector<256x128xf32>
    %31 = arith.truncf %30 : vector<256x128xf32> to vector<256x128xbf16>
    %c0_21 = arith.constant 0 : index
    %c0_22 = arith.constant 0 : index
    %32 = vector.load %arg9[%c0_21, %c0_22] : memref<128x128xbf16, #tpu.memory_space<vmem>>, vector<128x128xbf16>
    %cst_23 = arith.constant dense<0.000000e+00> : vector<256x128xf32>
    %33 = tpu.matmul %31, %32, %cst_23 {dimension_numbers = #tpu.dot_dimension_numbers<[1], [0], [0], [1], [0, 0, 1, 1], [], []>} : vector<256x128xbf16>, vector<128x128xbf16>, vector<256x128xf32> -> vector<256x128xf32>
    %c0_24 = arith.constant 0 : index
    %c0_25 = arith.constant 0 : index
    %34 = vector.load %arg10[%c0_24, %c0_25] : memref<1x128xf32, #tpu.memory_space<vmem>>, vector<1x128xf32>
    %35 = vector.broadcast %34 : vector<1x128xf32> to vector<256x128xf32>
    %36 = arith.addf %33, %35 : vector<256x128xf32>
    %c0_26 = arith.constant 0 : index
    %c0_27 = arith.constant 0 : index
    %37 = vector.load %arg11[%c0_26, %c0_27] : memref<256x128xf32, #tpu.memory_space<vmem>>, vector<256x128xf32>
    tpu.vector_store %arg11[%c0_26, %c0_27], %36 {strides = array<i32>} : memref<256x128xf32, #tpu.memory_space<vmem>>, vector<256x128xf32>,
    return
  }
  func.func @transform_0(%arg0: i32) -> (i32, i32) {
    %c0_i32 = arith.constant 0 : i32
    %c0_i32_0 = arith.constant 0 : i32
    return %arg0, %c0_i32 : i32, i32
  }
  func.func @transform_1(%arg0: i32) -> (i32, i32) {
    %c0_i32 = arith.constant 0 : i32
    %c0_i32_0 = arith.constant 0 : i32
    return %arg0, %c0_i32 : i32, i32
  }
  func.func @transform_2(%arg0: i32) -> (i32, i32) {
    %c0_i32 = arith.constant 0 : i32
    %c0_i32_0 = arith.constant 0 : i32
    %c0_i32_1 = arith.constant 0 : i32
    return %c0_i32, %c0_i32_0 : i32, i32
  }
  func.func @transform_3(%arg0: i32) -> (i32, i32) {
    %c0_i32 = arith.constant 0 : i32
    %c0_i32_0 = arith.constant 0 : i32
    %c0_i32_1 = arith.constant 0 : i32
    return %c0_i32, %c0_i32_0 : i32, i32
  }
  func.func @transform_4(%arg0: i32) -> (i32, i32) {
    %c0_i32 = arith.constant 0 : i32
    %c0_i32_0 = arith.constant 0 : i32
    %c0_i32_1 = arith.constant 0 : i32
    return %c0_i32, %c0_i32_0 : i32, i32
  }
  func.func @transform_5(%arg0: i32) -> (i32, i32) {
    %c0_i32 = arith.constant 0 : i32
    %c0_i32_0 = arith.constant 0 : i32
    %c0_i32_1 = arith.constant 0 : i32
    return %c0_i32, %c0_i32_0 : i32, i32
  }
  func.func @transform_6(%arg0: i32) -> (i32, i32) {
    %c0_i32 = arith.constant 0 : i32
    %c0_i32_0 = arith.constant 0 : i32
    %c0_i32_1 = arith.constant 0 : i32
    return %c0_i32, %c0_i32_0 : i32, i32
  }
  func.func @transform_7(%arg0: i32) -> (i32, i32) {
    %c0_i32 = arith.constant 0 : i32
    %c0_i32_0 = arith.constant 0 : i32
    %c0_i32_1 = arith.constant 0 : i32
    return %c0_i32, %c0_i32_0 : i32, i32
  }
  func.func @transform_8(%arg0: i32) -> (i32, i32) {
    %c0_i32 = arith.constant 0 : i32
    %c0_i32_0 = arith.constant 0 : i32
    %c0_i32_1 = arith.constant 0 : i32
    return %c0_i32, %c0_i32_0 : i32, i32
  }
  func.func @transform_9(%arg0: i32) -> (i32, i32) {
    %c0_i32 = arith.constant 0 : i32
    %c0_i32_0 = arith.constant 0 : i32
    %c0_i32_1 = arith.constant 0 : i32
    return %c0_i32, %c0_i32_0 : i32, i32
  }
  func.func @transform_10(%arg0: i32) -> (i32, i32) {
    %c0_i32 = arith.constant 0 : i32
    %c0_i32_0 = arith.constant 0 : i32
    return %arg0, %c0_i32 : i32, i32
  }
}

</mosaic_0001>

<llo_original>
// kernel: tpu_custom_call.1
$region0: #{tpu_custom_call.1}
  #allocation0 [shape = 'u32[]', space=smem, size = 0x4, offset = 0x4, fixed_abs, tag = 'smem constant byte address 0x4 - core index']
  #allocation1 [shape = 'u32[144,128]{1,0:T(1,128)}', space=vmem, size = 0x12000, scoped, tag = 'internal scratch']
  %s0 = inlined_call_operand.hbm [shape: bf16[512,128], index: 0, kind: input, shape index: {}]
  %s1 = inlined_call_operand.hbm [shape: bf16[512,256], index: 1, kind: input, shape index: {}]
  %s2 = inlined_call_operand.hbm [shape: bf16[128,256], index: 2, kind: input, shape index: {}]
  %s3 = inlined_call_operand.vmem [shape: f32[1,256], index: 3, kind: input, shape index: {}]
  %s4 = inlined_call_operand.hbm [shape: bf16[256,256], index: 4, kind: input, shape index: {}]
  %s5 = inlined_call_operand.vmem [shape: f32[1,256], index: 5, kind: input, shape index: {}]
  %s6 = inlined_call_operand.hbm [shape: bf16[256,128], index: 6, kind: input, shape index: {}]
  %s7 = inlined_call_operand.vmem [shape: f32[1,128], index: 7, kind: input, shape index: {}]
  %s8 = inlined_call_operand.hbm [shape: bf16[128,128], index: 8, kind: input, shape index: {}]
  %s9 = inlined_call_operand.vmem [shape: f32[1,128], index: 9, kind: input, shape index: {}]
  %s10 = inlined_call_operand.hbm [shape: f32[512,128], index: 10, kind: output, shape index: {}]
  %s11 = sld [smem:[#allocation0]]
  $region97: #{tpu_custom_call.1} parent=0
    _
  %s13 = ssub.s32 1, %s11
  %s14 = scalar_select 0, %s13, %s11
  $region1: #{tpu_custom_call.1} parent=0
    #allocation2 [shape = 'u8[131072]{0}', space=vmem, size = 0x20000, scoped, tag = 'input window, operand 0']
    #allocation3 [shape = 's32[2]{0}', space=sflag, size = 0x8, scoped, tag = 'scoped memory for tpu_custom_call.1']
    #allocation4 [shape = 's32[2]{0}', space=sflag, size = 0x8, scoped, tag = 'scoped memory for tpu_custom_call.1']
    #allocation5 [shape = 'u8[262144]{0}', space=vmem, size = 0x40000, scoped, tag = 'input window, operand 1']
    #allocation6 [shape = 's32[2]{0}', space=sflag, size = 0x8, scoped, tag = 'scoped memory for tpu_custom_call.1']
    #allocation7 [shape = 'u8[65536]{0}', space=vmem, size = 0x10000, scoped, tag = 'input window, operand 2, single buffered']
    #allocation8 [shape = 'u8[131072]{0}', space=vmem, size = 0x20000, scoped, tag = 'input window, operand 4, single buffered']
    #allocation9 [shape = 's32[1]{0}', space=sflag, size = 0x4, scoped, tag = 'scoped memory for tpu_custom_call.1']
    #allocation10 [shape = 'u8[65536]{0}', space=vmem, size = 0x10000, scoped, tag = 'input window, operand 6, single buffered']
    #allocation11 [shape = 'u8[32768]{0}', space=vmem, size = 0x8000, scoped, tag = 'input window, operand 8, single buffered']
    #allocation12 [shape = 's32[1]{0}', space=sflag, size = 0x4, scoped, tag = 'scoped memory for tpu_custom_call.1']
    #allocation13 [shape = 'u8[262144]{0}', space=vmem, size = 0x40000, scoped, tag = 'output window, operand 0']
    %15 = vsyncpa [#allocation3], 0
    %s16 = scalar_lea.sflag [#allocation3], 1
    %17 = vsyncpa %s16, 0
    %18 = vsyncpa [#allocation6], 0
    %s19 = scalar_lea.sflag [#allocation6], 1
    %20 = vsyncpa %s19, 0
    %21 = vsyncpa [#allocation9], 0
    %22 = vsyncpa [#allocation12], 0
    %23 = vsyncpa [#allocation4], 0
    %s24 = scalar_lea.sflag [#allocation4], 1
    %25 = vsyncpa %s24, 0
    loop: start=0, step=1, limit=4
    $region2: #{tpu_custom_call.1} parent=1 // loop_pre_header
      _
    $region3: #{tpu_custom_call.1} parent=1 // loop_header
      %s27 = sphi 0, %s31
      %p28 = scmp.ge.s32.totalorder %s27, 4
      %s37 = sphi 0, %s39
      %s40 = sphi 0, %s37
      %s41 = sphi 0, %s40
      %s57 = sphi 0, %s41
      %s63 = sphi 0, %s65
      %s66 = sphi 0, %s63
      %s67 = sphi 0, %s66
      %s83 = sphi 0, %s67
      %s87 = sphi 0, %s87
      %s89 = sphi 0, %s87
      %s90 = sphi 0, %s89
      %s104 = sphi 0, %s90
      %s108 = sphi 0, %s108
      %s110 = sphi 0, %s108
      %s111 = sphi 0, %s110
      %s125 = sphi 0, %s111
      %s129 = sphi 0, %s129
      %s131 = sphi 0, %s129
      %s132 = sphi 0, %s131
      %s146 = sphi 0, %s132
      %s150 = sphi 0, %s150
      %s152 = sphi 0, %s150
      %s153 = sphi 0, %s152
      %s167 = sphi 0, %s153
      %s171 = sphi 0, %s171
      %s173 = sphi 0, %s171
      %s174 = sphi 0, %s173
      %s188 = sphi 0, %s174
      %s192 = sphi 0, %s192
      %s194 = sphi 0, %s192
      %s195 = sphi 0, %s194
      %s209 = sphi 0, %s195
      %s213 = sphi 0, %s213
      %s215 = sphi 0, %s213
      %s216 = sphi 0, %s215
      %s230 = sphi 0, %s216
      %s234 = sphi 0, %s234
      %s236 = sphi 0, %s234
      %s237 = sphi 0, %s236
      %s251 = sphi 0, %s237
      %s257 = sphi 0, %s259
      %s260 = sphi 0, %s257
      %s261 = sphi 0, %s260
      %s277 = sphi 0, %s261
    $region4: #{tpu_custom_call.1} parent=1 // loop_header_branch
      %30 = sbr.rel (%p28) target = $region8
    $region5: #{tpu_custom_call.1} parent=1 // loop_body
      %s32 = ssub.s32 %s27, 1
      %s33 = ssub.s32 %s27, 2
      %s34 = sadd.s32 %s27, 1
      %s35 = ssub.s32 %s27, %s34
      %p36 = scmp.eq.s32.totalorder %s35, 0
      %s38 = sadd.s32 %s37, 1
      %s39 = scalar_select %p36, %s37, %s38
      %p42 = pneg %p36
      %p43 = scmp.eq.s32.totalorder %s27, 1
      %p44 = por %p42, %p43
      %p45 = scmp.ne.s32.totalorder %s37, %s40
      %p46 = scmp.eq.s32.totalorder %s27, 0
      %p47 = por %p45, %p46
      %p48 = scmp.ne.s32.totalorder %s37, %s40
      %p49 = scmp.eq.s32.totalorder %s32, 1
      %p50 = por %p48, %p49
      %p51 = scmp.ne.s32.totalorder %s40, %s41
      %p52 = scmp.eq.s32.totalorder %s32, 0
      %p53 = por %p51, %p52
      %p54 = scmp.ne.s32.totalorder %s40, %s41
      %p55 = scmp.eq.s32.totalorder %s33, 1
      %p56 = por %p54, %p55
      %p58 = scmp.ne.s32.totalorder %s41, %s57
      %p59 = scmp.eq.s32.totalorder %s33, 0
      %p60 = por %p58, %p59
      %s61 = ssub.s32 %s27, %s34
      %p62 = scmp.eq.s32.totalorder %s61, 0
      %s64 = sadd.s32 %s63, 1
      %s65 = scalar_select %p62, %s63, %s64
      %p68 = pneg %p62
      %p69 = scmp.eq.s32.totalorder %s27, 1
      %p70 = por %p68, %p69
      %p71 = scmp.ne.s32.totalorder %s63, %s66
      %p72 = scmp.eq.s32.totalorder %s27, 0
      %p73 = por %p71, %p72
      %p74 = scmp.ne.s32.totalorder %s63, %s66
      %p75 = scmp.eq.s32.totalorder %s32, 1
      %p76 = por %p74, %p75
      %p77 = scmp.ne.s32.totalorder %s66, %s67
      %p78 = scmp.eq.s32.totalorder %s32, 0
      %p79 = por %p77, %p78
      %p80 = scmp.ne.s32.totalorder %s66, %s67
      %p81 = scmp.eq.s32.totalorder %s33, 1
      %p82 = por %p80, %p81
      %p84 = scmp.ne.s32.totalorder %s67, %s83
      %p85 = scmp.eq.s32.totalorder %s33, 0
      %p86 = por %p84, %p85
      %s88 = sadd.s32 %s87, 1
      %p91 = scmp.eq.s32.totalorder %s27, 1
      %p92 = scmp.ne.s32.totalorder %s87, %s89
      %p93 = scmp.eq.s32.totalorder %s27, 0
      %p94 = por %p92, %p93
      %p95 = scmp.ne.s32.totalorder %s87, %s89
      %p96 = scmp.eq.s32.totalorder %s32, 1
      %p97 = por %p95, %p96
      %p98 = scmp.ne.s32.totalorder %s89, %s90
      %p99 = scmp.eq.s32.totalorder %s32, 0
      %p100 = por %p98, %p99
      %p101 = scmp.ne.s32.totalorder %s89, %s90
      %p102 = scmp.eq.s32.totalorder %s33, 1
      %p103 = por %p101, %p102
      %p105 = scmp.ne.s32.totalorder %s90, %s104
      %p106 = scmp.eq.s32.totalorder %s33, 0
      %p107 = por %p105, %p106
      %s109 = sadd.s32 %s108, 1
      %p112 = scmp.eq.s32.totalorder %s27, 1
      %p113 = scmp.ne.s32.totalorder %s108, %s110
      %p114 = scmp.eq.s32.totalorder %s27, 0
      %p115 = por %p113, %p114
      %p116 = scmp.ne.s32.totalorder %s108, %s110
      %p117 = scmp.eq.s32.totalorder %s32, 1
      %p118 = por %p116, %p117
      %p119 = scmp.ne.s32.totalorder %s110, %s111
      %p120 = scmp.eq.s32.totalorder %s32, 0
      %p121 = por %p119, %p120
      %p122 = scmp.ne.s32.totalorder %s110, %s111
      %p123 = scmp.eq.s32.totalorder %s33, 1
      %p124 = por %p122, %p123
      %p126 = scmp.ne.s32.totalorder %s111, %s125
      %p127 = scmp.eq.s32.totalorder %s33, 0
      %p128 = por %p126, %p127
      %s130 = sadd.s32 %s129, 1
      %p133 = scmp.eq.s32.totalorder %s27, 1
      %p134 = scmp.ne.s32.totalorder %s129, %s131
      %p135 = scmp.eq.s32.totalorder %s27, 0
      %p136 = por %p134, %p135
      %p137 = scmp.ne.s32.totalorder %s129, %s131
      %p138 = scmp.eq.s32.totalorder %s32, 1
      %p139 = por %p137, %p138
      %p140 = scmp.ne.s32.totalorder %s131, %s132
      %p141 = scmp.eq.s32.totalorder %s32, 0
      %p142 = por %p140, %p141
      %p143 = scmp.ne.s32.totalorder %s131, %s132
      %p144 = scmp.eq.s32.totalorder %s33, 1
      %p145 = por %p143, %p144
      %p147 = scmp.ne.s32.totalorder %s132, %s146
      %p148 = scmp.eq.s32.totalorder %s33, 0
      %p149 = por %p147, %p148
      %s151 = sadd.s32 %s150, 1
      %p154 = scmp.eq.s32.totalorder %s27, 1
      %p155 = scmp.ne.s32.totalorder %s150, %s152
      %p156 = scmp.eq.s32.totalorder %s27, 0
      %p157 = por %p155, %p156
      %p158 = scmp.ne.s32.totalorder %s150, %s152
      %p159 = scmp.eq.s32.totalorder %s32, 1
      %p160 = por %p158, %p159
      %p161 = scmp.ne.s32.totalorder %s152, %s153
      %p162 = scmp.eq.s32.totalorder %s32, 0
      %p163 = por %p161, %p162
      %p164 = scmp.ne.s32.totalorder %s152, %s153
      %p165 = scmp.eq.s32.totalorder %s33, 1
      %p166 = por %p164, %p165
      %p168 = scmp.ne.s32.totalorder %s153, %s167
      %p169 = scmp.eq.s32.totalorder %s33, 0
      %p170 = por %p168, %p169
      %s172 = sadd.s32 %s171, 1
      %p175 = scmp.eq.s32.totalorder %s27, 1
      %p176 = scmp.ne.s32.totalorder %s171, %s173
      %p177 = scmp.eq.s32.totalorder %s27, 0
      %p178 = por %p176, %p177
      %p179 = scmp.ne.s32.totalorder %s171, %s173
      %p180 = scmp.eq.s32.totalorder %s32, 1
      %p181 = por %p179, %p180
      %p182 = scmp.ne.s32.totalorder %s173, %s174
      %p183 = scmp.eq.s32.totalorder %s32, 0
      %p184 = por %p182, %p183
      %p185 = scmp.ne.s32.totalorder %s173, %s174
      %p186 = scmp.eq.s32.totalorder %s33, 1
      %p187 = por %p185, %p186
      %p189 = scmp.ne.s32.totalorder %s174, %s188
      %p190 = scmp.eq.s32.totalorder %s33, 0
      %p191 = por %p189, %p190
      %s193 = sadd.s32 %s192, 1
      %p196 = scmp.eq.s32.totalorder %s27, 1
      %p197 = scmp.ne.s32.totalorder %s192, %s194
      %p198 = scmp.eq.s32.totalorder %s27, 0
      %p199 = por %p197, %p198
      %p200 = scmp.ne.s32.totalorder %s192, %s194
      %p201 = scmp.eq.s32.totalorder %s32, 1
      %p202 = por %p200, %p201
      %p203 = scmp.ne.s32.totalorder %s194, %s195
      %p204 = scmp.eq.s32.totalorder %s32, 0
      %p205 = por %p203, %p204
      %p206 = scmp.ne.s32.totalorder %s194, %s195
      %p207 = scmp.eq.s32.totalorder %s33, 1
      %p208 = por %p206, %p207
      %p210 = scmp.ne.s32.totalorder %s195, %s209
      %p211 = scmp.eq.s32.totalorder %s33, 0
      %p212 = por %p210, %p211
      %s214 = sadd.s32 %s213, 1
      %p217 = scmp.eq.s32.totalorder %s27, 1
      %p218 = scmp.ne.s32.totalorder %s213, %s215
      %p219 = scmp.eq.s32.totalorder %s27, 0
      %p220 = por %p218, %p219
      %p221 = scmp.ne.s32.totalorder %s213, %s215
      %p222 = scmp.eq.s32.totalorder %s32, 1
      %p223 = por %p221, %p222
      %p224 = scmp.ne.s32.totalorder %s215, %s216
      %p225 = scmp.eq.s32.totalorder %s32, 0
      %p226 = por %p224, %p225
      %p227 = scmp.ne.s32.totalorder %s215, %s216
      %p228 = scmp.eq.s32.totalorder %s33, 1
      %p229 = por %p227, %p228
      %p231 = scmp.ne.s32.totalorder %s216, %s230
      %p232 = scmp.eq.s32.totalorder %s33, 0
      %p233 = por %p231, %p232
      %s235 = sadd.s32 %s234, 1
      %p238 = scmp.eq.s32.totalorder %s27, 1
      %p239 = scmp.ne.s32.totalorder %s234, %s236
      %p240 = scmp.eq.s32.totalorder %s27, 0
      %p241 = por %p239, %p240
      %p242 = scmp.ne.s32.totalorder %s234, %s236
      %p243 = scmp.eq.s32.totalorder %s32, 1
      %p244 = por %p242, %p243
      %p245 = scmp.ne.s32.totalorder %s236, %s237
      %p246 = scmp.eq.s32.totalorder %s32, 0
      %p247 = por %p245, %p246
      %p248 = scmp.ne.s32.totalorder %s236, %s237
      %p249 = scmp.eq.s32.totalorder %s33, 1
      %p250 = por %p248, %p249
      %p252 = scmp.ne.s32.totalorder %s237, %s251
      %p253 = scmp.eq.s32.totalorder %s33, 0
      %p254 = por %p252, %p253
      %s255 = ssub.s32 %s27, %s34
      %p256 = scmp.eq.s32.totalorder %s255, 0
      %s258 = sadd.s32 %s257, 1
      %s259 = scalar_select %p256, %s257, %s258
      %p262 = pneg %p256
      %p263 = scmp.eq.s32.totalorder %s27, 1
      %p264 = por %p262, %p263
      %p265 = scmp.ne.s32.totalorder %s257, %s260
      %p266 = scmp.eq.s32.totalorder %s27, 0
      %p267 = por %p265, %p266
      %p268 = scmp.ne.s32.totalorder %s257, %s260
      %p269 = scmp.eq.s32.totalorder %s32, 1
      %p270 = por %p268, %p269
      %p271 = scmp.ne.s32.totalorder %s260, %s261
      %p272 = scmp.eq.s32.totalorder %s32, 0
      %p273 = por %p271, %p272
      %p274 = scmp.ne.s32.totalorder %s260, %s261
      %p275 = scmp.eq.s32.totalorder %s33, 1
      %p276 = por %p274, %p275
      %p278 = scmp.ne.s32.totalorder %s261, %s277
      %p279 = scmp.eq.s32.totalorder %s33, 0
      %p280 = por %p278, %p279
      %p281 = scmp.le.s32.totalorder 1, %s27
      %p282 = scmp.lt.s32.totalorder %s27, 3
      %p283 = pnand %p281, %p282
      %p284 = pneg %p283
      // Predicated region
      $region9: #{tpu_custom_call.1} parent=5 // pred_check
        _
      $region10: #{tpu_custom_call.1} parent=5 // pred_check_branch
        %286 = sbr.rel (%p283) target = $region12
      $region11: #{tpu_custom_call.1} parent=5 // pred_region
        %s287 = ssub.s32 %s27, 1
        // Predicated region
        $region13: #{tpu_custom_call.1} parent=11 // pred_check
          %p288 = pneg %p100
        $region14: #{tpu_custom_call.1} parent=11 // pred_check_branch
          %290 = sbr.rel (%p288) target = $region16
        $region15: #{tpu_custom_call.1} parent=11 // pred_region
          %s292 = ssub.s32 2048, 2048
          %293 = vsyncadd [#allocation6], %s292
          %s294 = sshll.u32 [#allocation7], 4
          %s295 = int_to_ptr.vmem [resolvable:$true] %s294
          %300 = dma.hbm_to_vmem [thread:$0]  %s2, 2048, %s295, [#allocation6], 128, 128, 8
        $region16: #{tpu_custom_call.1} parent=11 // pred_fallthru
          _
        // Predicated region
        $region17: #{tpu_custom_call.1} parent=11 // pred_check
          %p301 = pneg %p121
        $region18: #{tpu_custom_call.1} parent=11 // pred_check_branch
          %303 = sbr.rel (%p301) target = $region20
        $region19: #{tpu_custom_call.1} parent=11 // pred_region
          _
        $region20: #{tpu_custom_call.1} parent=11 // pred_fallthru
          _
        // Predicated region
        $region21: #{tpu_custom_call.1} parent=11 // pred_check
          %p304 = pneg %p142
        $region22: #{tpu_custom_call.1} parent=11 // pred_check_branch
          %306 = sbr.rel (%p304) target = $region24
        $region23: #{tpu_custom_call.1} parent=11 // pred_region
          %s308 = ssub.s32 4096, 4096
          %309 = vsyncadd [#allocation9], %s308
          %s310 = sshll.u32 [#allocation8], 4
          %s311 = int_to_ptr.vmem [resolvable:$true] %s310
          %316 = dma.hbm_to_vmem [thread:$0]  %s4, 4096, %s311, [#allocation9], 128, 128, 8
        $region24: #{tpu_custom_call.1} parent=11 // pred_fallthru
          _
        // Predicated region
        $region25: #{tpu_custom_call.1} parent=11 // pred_check
          %p317 = pneg %p163
        $region26: #{tpu_custom_call.1} parent=11 // pred_check_branch
          %319 = sbr.rel (%p317) target = $region28
        $region27: #{tpu_custom_call.1} parent=11 // pred_region
          _
        $region28: #{tpu_custom_call.1} parent=11 // pred_fallthru
          _
        // Predicated region
        $region29: #{tpu_custom_call.1} parent=11 // pred_check
          %p320 = pneg %p184
        $region30: #{tpu_custom_call.1} parent=11 // pred_check_branch
          %322 = sbr.rel (%p320) target = $region32
        $region31: #{tpu_custom_call.1} parent=11 // pred_region
          %s324 = ssub.s32 2048, 2048
          %325 = vsyncadd [#allocation9], %s324
          %s326 = sshll.u32 [#allocation10], 4
          %s327 = int_to_ptr.vmem [resolvable:$true] %s326
          %332 = dma.hbm_to_vmem [thread:$0]  %s6, 2048, %s327, [#allocation9], 64, 64, 4
        $region32: #{tpu_custom_call.1} parent=11 // pred_fallthru
          _
        // Predicated region
        $region33: #{tpu_custom_call.1} parent=11 // pred_check
          %p333 = pneg %p205
        $region34: #{tpu_custom_call.1} parent=11 // pred_check_branch
          %335 = sbr.rel (%p333) target = $region36
        $region35: #{tpu_custom_call.1} parent=11 // pred_region
          _
        $region36: #{tpu_custom_call.1} parent=11 // pred_fallthru
          _
        // Predicated region
        $region37: #{tpu_custom_call.1} parent=11 // pred_check
          %p336 = pneg %p226
        $region38: #{tpu_custom_call.1} parent=11 // pred_check_branch
          %338 = sbr.rel (%p336) target = $region40
        $region39: #{tpu_custom_call.1} parent=11 // pred_region
          %s340 = ssub.s32 1024, 1024
          %341 = vsyncadd [#allocation12], %s340
          %s342 = sshll.u32 [#allocation11], 4
          %s343 = int_to_ptr.vmem [resolvable:$true] %s342
          %348 = dma.hbm_to_vmem [thread:$0]  %s8, 1024, %s343, [#allocation12], 64, 64, 4
        $region40: #{tpu_custom_call.1} parent=11 // pred_fallthru
          _
        // Predicated region
        $region41: #{tpu_custom_call.1} parent=11 // pred_check
          %p349 = pneg %p247
        $region42: #{tpu_custom_call.1} parent=11 // pred_check_branch
          %351 = sbr.rel (%p349) target = $region44
        $region43: #{tpu_custom_call.1} parent=11 // pred_region
          _
        $region44: #{tpu_custom_call.1} parent=11 // pred_fallthru
          _
      $region12: #{tpu_custom_call.1} parent=5 // pred_fallthru
        _
      %p352 = scmp.lt.s32.totalorder %s27, 2
      // Predicated region
      $region45: #{tpu_custom_call.1} parent=5 // pred_check
        %p353 = pneg %p352
      $region46: #{tpu_custom_call.1} parent=5 // pred_check_branch
        %355 = sbr.rel (%p353) target = $region48
      $region47: #{tpu_custom_call.1} parent=5 // pred_region
        // Predicated region
        $region49: #{tpu_custom_call.1} parent=47 // pred_check
          %p356 = pneg %p47
        $region50: #{tpu_custom_call.1} parent=47 // pred_check_branch
          %358 = sbr.rel (%p356) target = $region52
        $region51: #{tpu_custom_call.1} parent=47 // pred_region
          %s359 = sand.u32 %s37, 1
          %s360 = scalar_lea.sflag [#allocation3], %s359
          %s361 = sand.u32 %s37, 1
          %s362 = smul.addr %s361, 128
          %s363 = scalar_lea.vmem [#allocation2], %s362
          %s364 = smul.u32 32, %s27
          %s366 = ssub.s32 2048, 2048
          %367 = vsyncadd %s360, %s366
          %s368 = smul.addr %s364, 64
          %s369 = scalar_lea.hbm %s0, %s368
          %s370 = sshll.u32 %s363, 4
          %s371 = int_to_ptr.vmem [resolvable:$true] %s370
          %376 = dma.hbm_to_vmem [thread:$0]  %s369, 2048, %s371, %s360, 64, 64, 4
        $region52: #{tpu_custom_call.1} parent=47 // pred_fallthru
          _
        // Predicated region
        $region53: #{tpu_custom_call.1} parent=47 // pred_check
          %p377 = pneg %p73
        $region54: #{tpu_custom_call.1} parent=47 // pred_check_branch
          %379 = sbr.rel (%p377) target = $region56
        $region55: #{tpu_custom_call.1} parent=47 // pred_region
          %s380 = sand.u32 %s27, 1
          %s381 = scalar_lea.sflag [#allocation6], %s380
          %s382 = sand.u32 %s63, 1
          %s383 = smul.addr %s382, 256
          %s384 = scalar_lea.vmem [#allocation5], %s383
          %s385 = smul.u32 32, %s27
          %s387 = ssub.s32 4096, 4096
          %388 = vsyncadd %s381, %s387
          %s389 = smul.addr %s385, 2
          %s390 = smul.addr %s389, 64
          %s391 = scalar_lea.hbm %s1, %s390
          %s392 = sshll.u32 %s384, 4
          %s393 = int_to_ptr.vmem [resolvable:$true] %s392
          %398 = dma.hbm_to_vmem [thread:$0]  %s391, 4096, %s393, %s381, 128, 128, 8
        $region56: #{tpu_custom_call.1} parent=47 // pred_fallthru
          _
      $region48: #{tpu_custom_call.1} parent=5 // pred_fallthru
        _
      %p399 = scmp.le.s32.totalorder 1, %s27
      %p400 = scmp.lt.s32.totalorder %s27, 3
      %p401 = pnand %p399, %p400
      %p402 = pneg %p401
      // Predicated region
      $region57: #{tpu_custom_call.1} parent=5 // pred_check
        _
      $region58: #{tpu_custom_call.1} parent=5 // pred_check_branch
        %404 = sbr.rel (%p401) target = $region60
      $region59: #{tpu_custom_call.1} parent=5 // pred_region
        %s405 = ssub.s32 %s27, 1
        %s406 = sand.u32 %s40, 1
        %s407 = scalar_lea.sflag [#allocation3], %s406
        %s408 = sand.u32 %s40, 1
        %s409 = smul.addr %s408, 128
        %s410 = scalar_lea.vmem [#allocation2], %s409
        // Predicated region
        $region61: #{tpu_custom_call.1} parent=59 // pred_check
          %p411 = pneg %p53
        $region62: #{tpu_custom_call.1} parent=59 // pred_check_branch
          %413 = sbr.rel (%p411) target = $region64
        $region63: #{tpu_custom_call.1} parent=59 // pred_region
          %414 = dma.done %s407, 2048
        $region64: #{tpu_custom_call.1} parent=59 // pred_fallthru
          _
        %s415 = sand.u32 %s32, 1
        %s416 = scalar_lea.sflag [#allocation6], %s415
        %s417 = sand.u32 %s66, 1
        %s418 = smul.addr %s417, 256
        %s419 = scalar_lea.vmem [#allocation5], %s418
        // Predicated region
        $region65: #{tpu_custom_call.1} parent=59 // pred_check
          %p420 = pneg %p79
        $region66: #{tpu_custom_call.1} parent=59 // pred_check_branch
          %422 = sbr.rel (%p420) target = $region68
        $region67: #{tpu_custom_call.1} parent=59 // pred_region
          %423 = dma.done %s416, 4096
        $region68: #{tpu_custom_call.1} parent=59 // pred_fallthru
          _
        // Predicated region
        $region69: #{tpu_custom_call.1} parent=59 // pred_check
          %p424 = pneg %p100
        $region70: #{tpu_custom_call.1} parent=59 // pred_check_branch
          %426 = sbr.rel (%p424) target = $region72
        $region71: #{tpu_custom_call.1} parent=59 // pred_region
          %427 = dma.done [#allocation6], 2048
        $region72: #{tpu_custom_call.1} parent=59 // pred_fallthru
          _
        // Predicated region
        $region73: #{tpu_custom_call.1} parent=59 // pred_check
          %p428 = pneg %p142
        $region74: #{tpu_custom_call.1} parent=59 // pred_check_branch
          %430 = sbr.rel (%p428) target = $region76
        $region75: #{tpu_custom_call.1} parent=59 // pred_region
          %431 = dma.done [#allocation9], 4096
        $region76: #{tpu_custom_call.1} parent=59 // pred_fallthru
          _
        // Predicated region
        $region77: #{tpu_custom_call.1} parent=59 // pred_check
          %p432 = pneg %p184
        $region78: #{tpu_custom_call.1} parent=59 // pred_check_branch
          %434 = sbr.rel (%p432) target = $region80
        $region79: #{tpu_custom_call.1} parent=59 // pred_region
          %435 = dma.done [#allocation9], 2048
        $region80: #{tpu_custom_call.1} parent=59 // pred_fallthru
          _
        // Predicated region
        $region81: #{tpu_custom_call.1} parent=59 // pred_check
          %p436 = pneg %p226
        $region82: #{tpu_custom_call.1} parent=59 // pred_check_branch
          %438 = sbr.rel (%p436) target = $region84
        $region83: #{tpu_custom_call.1} parent=59 // pred_region
          %439 = dma.done [#allocation12], 1024
        $region84: #{tpu_custom_call.1} parent=59 // pred_fallthru
          _
        %s440 = sand.u32 %s40, 1
        %s441 = scalar_lea.sflag [#allocation3], %s440
        %s442 = sand.u32 %s40, 1
        %s443 = smul.addr %s442, 128
        %s444 = scalar_lea.vmem [#allocation2], %s443
        %p445 = pneg %p53
        %p446 = pneg %p50
        %s447 = sand.u32 %s32, 1
        %s448 = scalar_lea.sflag [#allocation6], %s447
        %s449 = sand.u32 %s66, 1
        %s450 = smul.addr %s449, 256
        %s451 = scalar_lea.vmem [#allocation5], %s450
        %p452 = pneg %p79
        %p453 = pneg %p76
        %p454 = pneg %p100
        %p455 = pneg %p97
        %p456 = pneg %p121
        %p457 = pneg %p118
        %p458 = pneg %p142
        %p459 = pneg %p139
        %p460 = pneg %p163
        %p461 = pneg %p160
        %p462 = pneg %p184
        %p463 = pneg %p181
        %p464 = pneg %p205
        %p465 = pneg %p202
        %p466 = pneg %p226
        %p467 = pneg %p223
        %p468 = pneg %p247
        %p469 = pneg %p244
        %p470 = pneg %p273
        %p471 = pneg %p270
        %s472 = sand.u32 %s260, 1
        %s473 = scalar_lea.sflag [#allocation4], %s472
        %s474 = sand.u32 %s260, 1
        %s475 = smul.addr %s474, 256
        %s476 = scalar_lea.vmem [#allocation13], %s475
        %s477 = smul.u32 32, %s32
        %s478 = smul.u32 32, %s32
        %s479 = smul.u32 32, %s32
        %v481 = vld [vmem:[%s410] sm:$0xf]
        %v482 = vld [vmem:[%s410 + $0x4] sm:$0xf]
        %v483 = vld [vmem:[%s410 + $0x8] sm:$0xf]
        %v484 = vld [vmem:[%s410 + $0xc] sm:$0xf]
        %v485 = vld [vmem:[%s410 + $0x10] sm:$0xf]
        %v486 = vld [vmem:[%s410 + $0x14] sm:$0xf]
        %v487 = vld [vmem:[%s410 + $0x18] sm:$0xf]
        %v488 = vld [vmem:[%s410 + $0x1c] sm:$0xf]
        %v489 = vld [vmem:[%s410 + $0x20] sm:$0xf]
        %v490 = vld [vmem:[%s410 + $0x24] sm:$0xf]
        %v491 = vld [vmem:[%s410 + $0x28] sm:$0xf]
        %v492 = vld [vmem:[%s410 + $0x2c] sm:$0xf]
        %v493 = vld [vmem:[%s410 + $0x30] sm:$0xf]
        %v494 = vld [vmem:[%s410 + $0x34] sm:$0xf]
        %v495 = vld [vmem:[%s410 + $0x38] sm:$0xf]
        %v496 = vld [vmem:[%s410 + $0x3c] sm:$0xf]
        %v497 = vld [vmem:[%s410 + $0x40] sm:$0xf]
        %v498 = vld [vmem:[%s410 + $0x44] sm:$0xf]
        %v499 = vld [vmem:[%s410 + $0x48] sm:$0xf]
        %v500 = vld [vmem:[%s410 + $0x4c] sm:$0xf]
        %v501 = vld [vmem:[%s410 + $0x50] sm:$0xf]
        %v502 = vld [vmem:[%s410 + $0x54] sm:$0xf]
        %v503 = vld [vmem:[%s410 + $0x58] sm:$0xf]
        %v504 = vld [vmem:[%s410 + $0x5c] sm:$0xf]
        %v505 = vld [vmem:[%s410 + $0x60] sm:$0xf]
        %v506 = vld [vmem:[%s410 + $0x64] sm:$0xf]
        %v507 = vld [vmem:[%s410 + $0x68] sm:$0xf]
        %v508 = vld [vmem:[%s410 + $0x6c] sm:$0xf]
        %v509 = vld [vmem:[%s410 + $0x70] sm:$0xf]
        %v510 = vld [vmem:[%s410 + $0x74] sm:$0xf]
        %v511 = vld [vmem:[%s410 + $0x78] sm:$0xf]
        %v512 = vld [vmem:[%s410 + $0x7c] sm:$0xf]
        %v513 = vld [vmem:[#allocation7] sm:$0xff]
        %v514 = vld [vmem:[#allocation7 + $0x8] sm:$0xff]
        %v515 = vld [vmem:[#allocation7 + $0x10] sm:$0xff]
        %v516 = vld [vmem:[#allocation7 + $0x18] sm:$0xff]
        %v517 = vld [vmem:[#allocation7 + $0x20] sm:$0xff]
        %v518 = vld [vmem:[#allocation7 + $0x28] sm:$0xff]
        %v519 = vld [vmem:[#allocation7 + $0x30] sm:$0xff]
        %v520 = vld [vmem:[#allocation7 + $0x38] sm:$0xff]
        %v521 = vld [vmem:[#allocation7 + $0x40] sm:$0xff]
        %v522 = vld [vmem:[#allocation7 + $0x48] sm:$0xff]
        %v523 = vld [vmem:[#allocation7 + $0x50] sm:$0xff]
        %v524 = vld [vmem:[#allocation7 + $0x58] sm:$0xff]
        %v525 = vld [vmem:[#allocation7 + $0x60] sm:$0xff]
        %v526 = vld [vmem:[#allocation7 + $0x68] sm:$0xff]
        %v527 = vld [vmem:[#allocation7 + $0x70] sm:$0xff]
        %v528 = vld [vmem:[#allocation7 + $0x78] sm:$0xff]
        %v529 = vld [vmem:[%s3] sm:$0x3]
        %v531 = vlaneseq
        %v532 = vshrl.u32 %v531, 7
        %v533 = vsub.s32 0, %v532
        %v534 = vrot.slane %v529, %v533
        %v535 = vlaneseq
        %v536 = vshrl.u32 %v535, 7
        %v537 = vsub.s32 1, %v536
        %v538 = vrot.slane %v529, %v537
        %v573 = vunpack.c.l.b16 %v481
        %v574 = vunpack.c.l.b16 %v482
        %v575 = vunpack.c.l.b16 %v483
        %v576 = vunpack.c.l.b16 %v484
        %v577 = vunpack.c.l.b16 %v485
        %v578 = vunpack.c.l.b16 %v486
        %v579 = vunpack.c.l.b16 %v487
        %v580 = vunpack.c.l.b16 %v488
        %v581 = vunpack.c.l.b16 %v489
        %v582 = vunpack.c.l.b16 %v490
        %v583 = vunpack.c.l.b16 %v491
        %v584 = vunpack.c.l.b16 %v492
        %v585 = vunpack.c.l.b16 %v493
        %v586 = vunpack.c.l.b16 %v494
        %v587 = vunpack.c.l.b16 %v495
        %v588 = vunpack.c.l.b16 %v496
        %v589 = vunpack.c.l.b16 %v497
        %v590 = vunpack.c.l.b16 %v498
        %v591 = vunpack.c.l.b16 %v499
        %v592 = vunpack.c.l.b16 %v500
        %v593 = vunpack.c.l.b16 %v501
        %v594 = vunpack.c.l.b16 %v502
        %v595 = vunpack.c.l.b16 %v503
        %v596 = vunpack.c.l.b16 %v504
        %v597 = vunpack.c.l.b16 %v505
        %v598 = vunpack.c.l.b16 %v506
        %v599 = vunpack.c.l.b16 %v507
        %v600 = vunpack.c.l.b16 %v508
        %v601 = vunpack.c.l.b16 %v509
        %v602 = vunpack.c.l.b16 %v510
        %v603 = vunpack.c.l.b16 %v511
        %v604 = vunpack.c.l.b16 %v512
        %v605 = vpack.c.b16 %v574, %v573
        %v606 = vpack.c.b16 %v576, %v575
        %v607 = vpack.c.b16 %v578, %v577
        %v608 = vpack.c.b16 %v580, %v579
        %v609 = vpack.c.b16 %v582, %v581
        %v610 = vpack.c.b16 %v584, %v583
        %v611 = vpack.c.b16 %v586, %v585
        %v612 = vpack.c.b16 %v588, %v587
        %v613 = vpack.c.b16 %v590, %v589
        %v614 = vpack.c.b16 %v592, %v591
        %v615 = vpack.c.b16 %v594, %v593
        %v616 = vpack.c.b16 %v596, %v595
        %v617 = vpack.c.b16 %v598, %v597
        %v618 = vpack.c.b16 %v600, %v599
        %v619 = vpack.c.b16 %v602, %v601
        %v620 = vpack.c.b16 %v604, %v603
        %v653 = vunpack.c.l.b16 %v513
        %v654 = vunpack.c.h.b16 %v513
        %v655 = vunpack.c.l.b16 %v514
        %v656 = vunpack.c.h.b16 %v514
        %v657 = vunpack.c.l.b16 %v515
        %v658 = vunpack.c.h.b16 %v515
        %v659 = vunpack.c.l.b16 %v516
        %v660 = vunpack.c.h.b16 %v516
        %v661 = vunpack.c.l.b16 %v517
        %v662 = vunpack.c.h.b16 %v517
        %v663 = vunpack.c.l.b16 %v518
        %v664 = vunpack.c.h.b16 %v518
        %v665 = vunpack.c.l.b16 %v519
        %v666 = vunpack.c.h.b16 %v519
        %v667 = vunpack.c.l.b16 %v520
        %v668 = vunpack.c.h.b16 %v520
        %v669 = vunpack.c.l.b16 %v521
        %v670 = vunpack.c.h.b16 %v521
        %v671 = vunpack.c.l.b16 %v522
        %v672 = vunpack.c.h.b16 %v522
        %v673 = vunpack.c.l.b16 %v523
        %v674 = vunpack.c.h.b16 %v523
        %v675 = vunpack.c.l.b16 %v524
        %v676 = vunpack.c.h.b16 %v524
        %v677 = vunpack.c.l.b16 %v525
        %v678 = vunpack.c.h.b16 %v525
        %v679 = vunpack.c.l.b16 %v526
        %v680 = vunpack.c.h.b16 %v526
        %v681 = vunpack.c.l.b16 %v527
        %v682 = vunpack.c.h.b16 %v527
        %v683 = vunpack.c.l.b16 %v528
        %v684 = vunpack.c.h.b16 %v528
        %v685 = vpack.c.b16 %v655, %v653
        %v686 = vpack.c.b16 %v656, %v654
        %v687 = vpack.c.b16 %v659, %v657
        %v688 = vpack.c.b16 %v660, %v658
        %v689 = vpack.c.b16 %v663, %v661
        %v690 = vpack.c.b16 %v664, %v662
        %v691 = vpack.c.b16 %v667, %v665
        %v692 = vpack.c.b16 %v668, %v666
        %v693 = vpack.c.b16 %v671, %v669
        %v694 = vpack.c.b16 %v672, %v670
        %v695 = vpack.c.b16 %v675, %v673
        %v696 = vpack.c.b16 %v676, %v674
        %v697 = vpack.c.b16 %v679, %v677
        %v698 = vpack.c.b16 %v680, %v678
        %v699 = vpack.c.b16 %v683, %v681
        %v700 = vpack.c.b16 %v684, %v682
        %717 = vmatprep.subr.bf16.mxu0 %v686
        %718 = vmatpush1.bf16.msra.mxu0 %v685
        %719 = vmatprep.subr.bf16.mxu0 %v688
        %720 = vmatpush1.bf16.msra.mxu0 %v687
        %721 = vmatprep.subr.bf16.mxu0 %v690
        %722 = vmatpush1.bf16.msra.mxu0 %v689
        %723 = vmatprep.subr.bf16.mxu0 %v692
        %724 = vmatpush1.bf16.msra.mxu0 %v691
        %725 = vmatprep.subr.bf16.mxu0 %v694
        %726 = vmatpush1.bf16.msra.mxu0 %v693
        %727 = vmatprep.subr.bf16.mxu0 %v696
        %728 = vmatpush1.bf16.msra.mxu0 %v695
        %729 = vmatprep.subr.bf16.mxu0 %v698
        %730 = vmatpush1.bf16.msra.mxu0 %v697
        %731 = vmatprep.subr.bf16.mxu0 %v700
        %732 = vmatpush1.bf16.msra.mxu0 %v699
        %733 = vmatprep.subr.bf16.mxu0 0
        %734 = vmatpush1.bf16.msra.mxu0 0
        %735 = vmatprep.subr.bf16.mxu0 0
        %736 = vmatpush1.bf16.msra.mxu0 0
        %737 = vmatprep.subr.bf16.mxu0 0
        %738 = vmatpush1.bf16.msra.mxu0 0
        %739 = vmatprep.subr.bf16.mxu0 0
        %740 = vmatpush1.bf16.msra.mxu0 0
        %741 = vmatprep.subr.bf16.mxu0 0
        %742 = vmatpush1.bf16.msra.mxu0 0
        %743 = vmatprep.subr.bf16.mxu0 0
        %744 = vmatpush1.bf16.msra.mxu0 0
        %745 = vmatprep.subr.bf16.mxu0 0
        %746 = vmatpush1.bf16.msra.mxu0 0
        %747 = vmatprep.subr.bf16.mxu0 0
        %748 = vmatpush1.bf16.msra.mxu0 0
        %749 = vmatprep.mubr.bf16.mxu0 0
        %750 = vmatmul.mubr.bf16.gmra.mrb[0].mxu0 %v605
        %v751 = vpop.f32.mrb[0].mxu0
        %v752 = vadd.f32 %v534, %v751
        %v753 = vpop.f32.mrb[0].mxu0
        %v754 = vadd.f32 %v538, %v753
        %v755 = vpop.f32.mrb[0].mxu0
        %v756 = vadd.f32 %v534, %v755
        %v757 = vpop.f32.mrb[0].mxu0
        %v758 = vadd.f32 %v538, %v757
        %759 = vmatprep.mubr.bf16.mxu0 0
        %760 = vmatmul.mubr.bf16.gmra.mrb[0].mxu0 %v606
        %v761 = vpop.f32.mrb[0].mxu0
        %v762 = vadd.f32 %v534, %v761
        %v763 = vpop.f32.mrb[0].mxu0
        %v764 = vadd.f32 %v538, %v763
        %v765 = vpop.f32.mrb[0].mxu0
        %v766 = vadd.f32 %v534, %v765
        %v767 = vpop.f32.mrb[0].mxu0
        %v768 = vadd.f32 %v538, %v767
        %769 = vmatprep.mubr.bf16.mxu0 0
        %770 = vmatmul.mubr.bf16.gmra.mrb[0].mxu0 %v607
        %v771 = vpop.f32.mrb[0].mxu0
        %v772 = vadd.f32 %v534, %v771
        %v773 = vpop.f32.mrb[0].mxu0
        %v774 = vadd.f32 %v538, %v773
        %v775 = vpop.f32.mrb[0].mxu0
        %v776 = vadd.f32 %v534, %v775
        %v777 = vpop.f32.mrb[0].mxu0
        %v778 = vadd.f32 %v538, %v777
        %779 = vmatprep.mubr.bf16.mxu0 0
        %780 = vmatmul.mubr.bf16.gmra.mrb[0].mxu0 %v608
        %v781 = vpop.f32.mrb[0].mxu0
        %v782 = vadd.f32 %v534, %v781
        %v783 = vpop.f32.mrb[0].mxu0
        %v784 = vadd.f32 %v538, %v783
        %v785 = vpop.f32.mrb[0].mxu0
        %v786 = vadd.f32 %v534, %v785
        %v787 = vpop.f32.mrb[0].mxu0
        %v788 = vadd.f32 %v538, %v787
        %789 = vmatprep.mubr.bf16.mxu0 0
        %790 = vmatmul.mubr.bf16.gmra.mrb[0].mxu0 %v609
        %v791 = vpop.f32.mrb[0].mxu0
        %v792 = vadd.f32 %v534, %v791
        %v793 = vpop.f32.mrb[0].mxu0
        %v794 = vadd.f32 %v538, %v793
        %v795 = vpop.f32.mrb[0].mxu0
        %v796 = vadd.f32 %v534, %v795
        %v797 = vpop.f32.mrb[0].mxu0
        %v798 = vadd.f32 %v538, %v797
        %799 = vmatprep.mubr.bf16.mxu0 0
        %800 = vmatmul.mubr.bf16.gmra.mrb[0].mxu0 %v610
        %v801 = vpop.f32.mrb[0].mxu0
        %v802 = vadd.f32 %v534, %v801
        %v803 = vpop.f32.mrb[0].mxu0
        %v804 = vadd.f32 %v538, %v803
        %v805 = vpop.f32.mrb[0].mxu0
        %v806 = vadd.f32 %v534, %v805
        %v807 = vpop.f32.mrb[0].mxu0
        %v808 = vadd.f32 %v538, %v807
        %809 = vmatprep.mubr.bf16.mxu0 0
        %810 = vmatmul.mubr.bf16.gmra.mrb[0].mxu0 %v611
        %v811 = vpop.f32.mrb[0].mxu0
        %v812 = vadd.f32 %v534, %v811
        %v813 = vpop.f32.mrb[0].mxu0
        %v814 = vadd.f32 %v538, %v813
        %v815 = vpop.f32.mrb[0].mxu0
        %v816 = vadd.f32 %v534, %v815
        %v817 = vpop.f32.mrb[0].mxu0
        %v818 = vadd.f32 %v538, %v817
        %819 = vmatprep.mubr.bf16.mxu0 0
        %820 = vmatmul.mubr.bf16.gmra.mrb[0].mxu0 %v612
        %v821 = vpop.f32.mrb[0].mxu0
        %v822 = vadd.f32 %v534, %v821
        %v823 = vpop.f32.mrb[0].mxu0
        %v824 = vadd.f32 %v538, %v823
        %v825 = vpop.f32.mrb[0].mxu0
        %v826 = vadd.f32 %v534, %v825
        %v827 = vpop.f32.mrb[0].mxu0
        %v828 = vadd.f32 %v538, %v827
        %829 = vmatprep.mubr.bf16.mxu0 0
        %830 = vmatmul.mubr.bf16.gmra.mrb[0].mxu0 %v613
        %v831 = vpop.f32.mrb[0].mxu0
        %v832 = vadd.f32 %v534, %v831
        %v833 = vpop.f32.mrb[0].mxu0
        %v834 = vadd.f32 %v538, %v833
        %v835 = vpop.f32.mrb[0].mxu0
        %v836 = vadd.f32 %v534, %v835
        %v837 = vpop.f32.mrb[0].mxu0
        %v838 = vadd.f32 %v538, %v837
        %839 = vmatprep.mubr.bf16.mxu0 0
        %840 = vmatmul.mubr.bf16.gmra.mrb[0].mxu0 %v614
        %v841 = vpop.f32.mrb[0].mxu0
        %v842 = vadd.f32 %v534, %v841
        %v843 = vpop.f32.mrb[0].mxu0
        %v844 = vadd.f32 %v538, %v843
        %v845 = vpop.f32.mrb[0].mxu0
        %v846 = vadd.f32 %v534, %v845
        %v847 = vpop.f32.mrb[0].mxu0
        %v848 = vadd.f32 %v538, %v847
        %849 = vmatprep.mubr.bf16.mxu0 0
        %850 = vmatmul.mubr.bf16.gmra.mrb[0].mxu0 %v615
        %v851 = vpop.f32.mrb[0].mxu0
        %v852 = vadd.f32 %v534, %v851
        %v853 = vpop.f32.mrb[0].mxu0
        %v854 = vadd.f32 %v538, %v853
        %v855 = vpop.f32.mrb[0].mxu0
        %v856 = vadd.f32 %v534, %v855
        %v857 = vpop.f32.mrb[0].mxu0
        %v858 = vadd.f32 %v538, %v857
        %859 = vmatprep.mubr.bf16.mxu0 0
        %860 = vmatmul.mubr.bf16.gmra.mrb[0].mxu0 %v616
        %v861 = vpop.f32.mrb[0].mxu0
        %v862 = vadd.f32 %v534, %v861
        %v863 = vpop.f32.mrb[0].mxu0
        %v864 = vadd.f32 %v538, %v863
        %v865 = vpop.f32.mrb[0].mxu0
        %v866 = vadd.f32 %v534, %v865
        %v867 = vpop.f32.mrb[0].mxu0
        %v868 = vadd.f32 %v538, %v867
        %869 = vmatprep.mubr.bf16.mxu0 0
        %870 = vmatmul.mubr.bf16.gmra.mrb[0].mxu0 %v617
        %v871 = vpop.f32.mrb[0].mxu0
        %v872 = vadd.f32 %v534, %v871
        %v873 = vpop.f32.mrb[0].mxu0
        %v874 = vadd.f32 %v538, %v873
        %v875 = vpop.f32.mrb[0].mxu0
        %v876 = vadd.f32 %v534, %v875
        %v877 = vpop.f32.mrb[0].mxu0
        %v878 = vadd.f32 %v538, %v877
        %879 = vmatprep.mubr.bf16.mxu0 0
        %880 = vmatmul.mubr.bf16.gmra.mrb[0].mxu0 %v618
        %v881 = vpop.f32.mrb[0].mxu0
        %v882 = vadd.f32 %v534, %v881
        %v883 = vpop.f32.mrb[0].mxu0
        %v884 = vadd.f32 %v538, %v883
        %v885 = vpop.f32.mrb[0].mxu0
        %v886 = vadd.f32 %v534, %v885
        %v887 = vpop.f32.mrb[0].mxu0
        %v888 = vadd.f32 %v538, %v887
        %889 = vmatprep.mubr.bf16.mxu0 0
        %890 = vmatmul.mubr.bf16.gmra.mrb[0].mxu0 %v619
        %v891 = vpop.f32.mrb[0].mxu0
        %v892 = vadd.f32 %v534, %v891
        %v893 = vpop.f32.mrb[0].mxu0
        %v894 = vadd.f32 %v538, %v893
        %v895 = vpop.f32.mrb[0].mxu0
        %v896 = vadd.f32 %v534, %v895
        %v897 = vpop.f32.mrb[0].mxu0
        %v898 = vadd.f32 %v538, %v897
        %899 = vmatprep.mubr.bf16.mxu0 0
        %900 = vmatmul.mubr.bf16.gmra.mrb[0].mxu0 %v620
        %v901 = vpop.f32.mrb[0].mxu0
        %v902 = vadd.f32 %v534, %v901
        %v903 = vpop.f32.mrb[0].mxu0
        %v904 = vadd.f32 %v538, %v903
        %v905 = vpop.f32.mrb[0].mxu0
        %v906 = vadd.f32 %v534, %v905
        %v907 = vpop.f32.mrb[0].mxu0
        %v908 = vadd.f32 %v538, %v907
        %909 = vdwg.mxu0
        %v910 = vld [vmem:[%s419] sm:$0xff]
        %v911 = vld [vmem:[%s419 + $0x8] sm:$0xff]
        %v912 = vld [vmem:[%s419 + $0x10] sm:$0xff]
        %v913 = vld [vmem:[%s419 + $0x18] sm:$0xff]
        %v914 = vld [vmem:[%s419 + $0x20] sm:$0xff]
        %v915 = vld [vmem:[%s419 + $0x28] sm:$0xff]
        %v916 = vld [vmem:[%s419 + $0x30] sm:$0xff]
        %v917 = vld [vmem:[%s419 + $0x38] sm:$0xff]
        %v918 = vld [vmem:[%s419 + $0x40] sm:$0xff]
        %v919 = vld [vmem:[%s419 + $0x48] sm:$0xff]
        %v920 = vld [vmem:[%s419 + $0x50] sm:$0xff]
        %v921 = vld [vmem:[%s419 + $0x58] sm:$0xff]
        %v922 = vld [vmem:[%s419 + $0x60] sm:$0xff]
        %v923 = vld [vmem:[%s419 + $0x68] sm:$0xff]
        %v924 = vld [vmem:[%s419 + $0x70] sm:$0xff]
        %v925 = vld [vmem:[%s419 + $0x78] sm:$0xff]
        %v926 = vld [vmem:[%s419 + $0x80] sm:$0xff]
        %v927 = vld [vmem:[%s419 + $0x88] sm:$0xff]
        %v928 = vld [vmem:[%s419 + $0x90] sm:$0xff]
        %v929 = vld [vmem:[%s419 + $0x98] sm:$0xff]
        %v930 = vld [vmem:[%s419 + $0xa0] sm:$0xff]
        %v931 = vld [vmem:[%s419 + $0xa8] sm:$0xff]
        %v932 = vld [vmem:[%s419 + $0xb0] sm:$0xff]
        %v933 = vld [vmem:[%s419 + $0xb8] sm:$0xff]
        %v934 = vld [vmem:[%s419 + $0xc0] sm:$0xff]
        %v935 = vld [vmem:[%s419 + $0xc8] sm:$0xff]
        %v936 = vld [vmem:[%s419 + $0xd0] sm:$0xff]
        %v937 = vld [vmem:[%s419 + $0xd8] sm:$0xff]
        %v938 = vld [vmem:[%s419 + $0xe0] sm:$0xff]
        %v939 = vld [vmem:[%s419 + $0xe8] sm:$0xff]
        %v940 = vld [vmem:[%s419 + $0xf0] sm:$0xff]
        %v941 = vld [vmem:[%s419 + $0xf8] sm:$0xff]
        %v942 = vunpack.c.l.bf16 %v910
        %v943 = vunpack.c.h.bf16 %v910
        %v944 = vunpack.c.l.bf16 %v911
        %v945 = vunpack.c.h.bf16 %v911
        %v946 = vunpack.c.l.bf16 %v912
        %v947 = vunpack.c.h.bf16 %v912
        %v948 = vunpack.c.l.bf16 %v913
        %v949 = vunpack.c.h.bf16 %v913
        %v950 = vunpack.c.l.bf16 %v914
        %v951 = vunpack.c.h.bf16 %v914
        %v952 = vunpack.c.l.bf16 %v915
        %v953 = vunpack.c.h.bf16 %v915
        %v954 = vunpack.c.l.bf16 %v916
        %v955 = vunpack.c.h.bf16 %v916
        %v956 = vunpack.c.l.bf16 %v917
        %v957 = vunpack.c.h.bf16 %v917
        %v958 = vunpack.c.l.bf16 %v918
        %v959 = vunpack.c.h.bf16 %v918
        %v960 = vunpack.c.l.bf16 %v919
        %v961 = vunpack.c.h.bf16 %v919
        %v962 = vunpack.c.l.bf16 %v920
        %v963 = vunpack.c.h.bf16 %v920
        %v964 = vunpack.c.l.bf16 %v921
        %v965 = vunpack.c.h.bf16 %v921
        %v966 = vunpack.c.l.bf16 %v922
        %v967 = vunpack.c.h.bf16 %v922
        %v968 = vunpack.c.l.bf16 %v923
        %v969 = vunpack.c.h.bf16 %v923
        %v970 = vunpack.c.l.bf16 %v924
        %v971 = vunpack.c.h.bf16 %v924
        %v972 = vunpack.c.l.bf16 %v925
        %v973 = vunpack.c.h.bf16 %v925
        %v974 = vunpack.c.l.bf16 %v926
        %v975 = vunpack.c.h.bf16 %v926
        %v976 = vunpack.c.l.bf16 %v927
        %v977 = vunpack.c.h.bf16 %v927
        %v978 = vunpack.c.l.bf16 %v928
        %v979 = vunpack.c.h.bf16 %v928
        %v980 = vunpack.c.l.bf16 %v929
        %v981 = vunpack.c.h.bf16 %v929
        %v982 = vunpack.c.l.bf16 %v930
        %v983 = vunpack.c.h.bf16 %v930
        %v984 = vunpack.c.l.bf16 %v931
        %v985 = vunpack.c.h.bf16 %v931
        %v986 = vunpack.c.l.bf16 %v932
        %v987 = vunpack.c.h.bf16 %v932
        %v988 = vunpack.c.l.bf16 %v933
        %v989 = vunpack.c.h.bf16 %v933
        %v990 = vunpack.c.l.bf16 %v934
        %v991 = vunpack.c.h.bf16 %v934
        %v992 = vunpack.c.l.bf16 %v935
        %v993 = vunpack.c.h.bf16 %v935
        %v994 = vunpack.c.l.bf16 %v936
        %v995 = vunpack.c.h.bf16 %v936
        %v996 = vunpack.c.l.bf16 %v937
        %v997 = vunpack.c.h.bf16 %v937
        %v998 = vunpack.c.l.bf16 %v938
        %v999 = vunpack.c.h.bf16 %v938
        %v1000 = vunpack.c.l.bf16 %v939
        %v1001 = vunpack.c.h.bf16 %v939
        %v1002 = vunpack.c.l.bf16 %v940
        %v1003 = vunpack.c.h.bf16 %v940
        %v1004 = vunpack.c.l.bf16 %v941
        %v1005 = vunpack.c.h.bf16 %v941
        %v1006 = vmul.f32 %v752, %v942
        %v1007 = vmul.f32 %v754, %v943
        %v1008 = vmul.f32 %v756, %v944
        %v1009 = vmul.f32 %v758, %v945
        %v1010 = vmul.f32 %v762, %v946
        %v1011 = vmul.f32 %v764, %v947
        %v1012 = vmul.f32 %v766, %v948
        %v1013 = vmul.f32 %v768, %v949
        %v1014 = vmul.f32 %v772, %v950
        %v1015 = vmul.f32 %v774, %v951
        %v1016 = vmul.f32 %v776, %v952
        %v1017 = vmul.f32 %v778, %v953
        %v1018 = vmul.f32 %v782, %v954
        %v1019 = vmul.f32 %v784, %v955
        %v1020 = vmul.f32 %v786, %v956
        %v1021 = vmul.f32 %v788, %v957
        %v1022 = vmul.f32 %v792, %v958
        %v1023 = vmul.f32 %v794, %v959
        %v1024 = vmul.f32 %v796, %v960
        %v1025 = vmul.f32 %v798, %v961
        %v1026 = vmul.f32 %v802, %v962
        %v1027 = vmul.f32 %v804, %v963
        %v1028 = vmul.f32 %v806, %v964
        %v1029 = vmul.f32 %v808, %v965
        %v1030 = vmul.f32 %v812, %v966
        %v1031 = vmul.f32 %v814, %v967
        %v1032 = vmul.f32 %v816, %v968
        %v1033 = vmul.f32 %v818, %v969
        %v1034 = vmul.f32 %v822, %v970
        %v1035 = vmul.f32 %v824, %v971
        %v1036 = vmul.f32 %v826, %v972
        %v1037 = vmul.f32 %v828, %v973
        %v1038 = vmul.f32 %v832, %v974
        %v1039 = vmul.f32 %v834, %v975
        %v1040 = vmul.f32 %v836, %v976
        %v1041 = vmul.f32 %v838, %v977
        %v1042 = vmul.f32 %v842, %v978
        %v1043 = vmul.f32 %v844, %v979
        %v1044 = vmul.f32 %v846, %v980
        %v1045 = vmul.f32 %v848, %v981
        %v1046 = vmul.f32 %v852, %v982
        %v1047 = vmul.f32 %v854, %v983
        %v1048 = vmul.f32 %v856, %v984
        %v1049 = vmul.f32 %v858, %v985
        %v1050 = vmul.f32 %v862, %v986
        %v1051 = vmul.f32 %v864, %v987
        %v1052 = vmul.f32 %v866, %v988
        %v1053 = vmul.f32 %v868, %v989
        %v1054 = vmul.f32 %v872, %v990
        %v1055 = vmul.f32 %v874, %v991
        %v1056 = vmul.f32 %v876, %v992
        %v1057 = vmul.f32 %v878, %v993
        %v1058 = vmul.f32 %v882, %v994
        %v1059 = vmul.f32 %v884, %v995
        %v1060 = vmul.f32 %v886, %v996
        %v1061 = vmul.f32 %v888, %v997
        %v1062 = vmul.f32 %v892, %v998
        %v1063 = vmul.f32 %v894, %v999
        %v1064 = vmul.f32 %v896, %v1000
        %v1065 = vmul.f32 %v898, %v1001
        %v1066 = vmul.f32 %v902, %v1002
        %v1067 = vmul.f32 %v904, %v1003
        %v1068 = vmul.f32 %v906, %v1004
        %v1069 = vmul.f32 %v908, %v1005
        %v1070 = vpack.c.bf16 %v1008, %v1006
        %v1071 = vpack.c.bf16 %v1009, %v1007
        %v1072 = vpack.c.bf16 %v1012, %v1010
        %v1073 = vpack.c.bf16 %v1013, %v1011
        %v1074 = vpack.c.bf16 %v1016, %v1014
        %v1075 = vpack.c.bf16 %v1017, %v1015
        %v1076 = vpack.c.bf16 %v1020, %v1018
        %v1077 = vpack.c.bf16 %v1021, %v1019
        %v1078 = vpack.c.bf16 %v1024, %v1022
        %v1079 = vpack.c.bf16 %v1025, %v1023
        %v1080 = vpack.c.bf16 %v1028, %v1026
        %v1081 = vpack.c.bf16 %v1029, %v1027
        %v1082 = vpack.c.bf16 %v1032, %v1030
        %v1083 = vpack.c.bf16 %v1033, %v1031
        %v1084 = vpack.c.bf16 %v1036, %v1034
        %v1085 = vpack.c.bf16 %v1037, %v1035
        %v1086 = vpack.c.bf16 %v1040, %v1038
        %v1087 = vpack.c.bf16 %v1041, %v1039
        %v1088 = vpack.c.bf16 %v1044, %v1042
        %v1089 = vpack.c.bf16 %v1045, %v1043
        %v1090 = vpack.c.bf16 %v1048, %v1046
        %v1091 = vpack.c.bf16 %v1049, %v1047
        %v1092 = vpack.c.bf16 %v1052, %v1050
        %v1093 = vpack.c.bf16 %v1053, %v1051
        %v1094 = vpack.c.bf16 %v1056, %v1054
        %v1095 = vpack.c.bf16 %v1057, %v1055
        %v1096 = vpack.c.bf16 %v1060, %v1058
        %v1097 = vpack.c.bf16 %v1061, %v1059
        %v1098 = vpack.c.bf16 %v1064, %v1062
        %v1099 = vpack.c.bf16 %v1065, %v1063
        %v1100 = vpack.c.bf16 %v1068, %v1066
        %v1101 = vpack.c.bf16 %v1069, %v1067
        %v1102 = vld [vmem:[#allocation8] sm:$0xff]
        %v1103 = vld [vmem:[#allocation8 + $0x8] sm:$0xff]
        %v1104 = vld [vmem:[#allocation8 + $0x10] sm:$0xff]
        %v1105 = vld [vmem:[#allocation8 + $0x18] sm:$0xff]
        %v1106 = vld [vmem:[#allocation8 + $0x20] sm:$0xff]
        %v1107 = vld [vmem:[#allocation8 + $0x28] sm:$0xff]
        %v1108 = vld [vmem:[#allocation8 + $0x30] sm:$0xff]
        %v1109 = vld [vmem:[#allocation8 + $0x38] sm:$0xff]
        %v1110 = vld [vmem:[#allocation8 + $0x40] sm:$0xff]
        %v1111 = vld [vmem:[#allocation8 + $0x48] sm:$0xff]
        %v1112 = vld [vmem:[#allocation8 + $0x50] sm:$0xff]
        %v1113 = vld [vmem:[#allocation8 + $0x58] sm:$0xff]
        %v1114 = vld [vmem:[#allocation8 + $0x60] sm:$0xff]
        %v1115 = vld [vmem:[#allocation8 + $0x68] sm:$0xff]
        %v1116 = vld [vmem:[#allocation8 + $0x70] sm:$0xff]
        %v1117 = vld [vmem:[#allocation8 + $0x78] sm:$0xff]
        %v1118 = vld [vmem:[#allocation8 + $0x80] sm:$0xff]
        %v1119 = vld [vmem:[#allocation8 + $0x88] sm:$0xff]
        %v1120 = vld [vmem:[#allocation8 + $0x90] sm:$0xff]
        %v1121 = vld [vmem:[#allocation8 + $0x98] sm:$0xff]
        %v1122 = vld [vmem:[#allocation8 + $0xa0] sm:$0xff]
        %v1123 = vld [vmem:[#allocation8 + $0xa8] sm:$0xff]
        %v1124 = vld [vmem:[#allocation8 + $0xb0] sm:$0xff]
        %v1125 = vld [vmem:[#allocation8 + $0xb8] sm:$0xff]
        %v1126 = vld [vmem:[#allocation8 + $0xc0] sm:$0xff]
        %v1127 = vld [vmem:[#allocation8 + $0xc8] sm:$0xff]
        %v1128 = vld [vmem:[#allocation8 + $0xd0] sm:$0xff]
        %v1129 = vld [vmem:[#allocation8 + $0xd8] sm:$0xff]
        %v1130 = vld [vmem:[#allocation8 + $0xe0] sm:$0xff]
        %v1131 = vld [vmem:[#allocation8 + $0xe8] sm:$0xff]
        %v1132 = vld [vmem:[#allocation8 + $0xf0] sm:$0xff]
        %v1133 = vld [vmem:[#allocation8 + $0xf8] sm:$0xff]
        %v1134 = vld [vmem:[%s5] sm:$0x3]
        %v1136 = vlaneseq
        %v1137 = vshrl.u32 %v1136, 7
        %v1138 = vsub.s32 0, %v1137
        %v1139 = vrot.slane %v1134, %v1138
        %v1140 = vlaneseq
        %v1141 = vshrl.u32 %v1140, 7
        %v1142 = vsub.s32 1, %v1141
        %v1143 = vrot.slane %v1134, %v1142
        %v1178 = vunpack.c.l.b16 %v1102
        %v1179 = vunpack.c.h.b16 %v1102
        %v1180 = vunpack.c.l.b16 %v1103
        %v1181 = vunpack.c.h.b16 %v1103
        %v1182 = vunpack.c.l.b16 %v1104
        %v1183 = vunpack.c.h.b16 %v1104
        %v1184 = vunpack.c.l.b16 %v1105
        %v1185 = vunpack.c.h.b16 %v1105
        %v1186 = vunpack.c.l.b16 %v1106
        %v1187 = vunpack.c.h.b16 %v1106
        %v1188 = vunpack.c.l.b16 %v1107
        %v1189 = vunpack.c.h.b16 %v1107
        %v1190 = vunpack.c.l.b16 %v1108
        %v1191 = vunpack.c.h.b16 %v1108
        %v1192 = vunpack.c.l.b16 %v1109
        %v1193 = vunpack.c.h.b16 %v1109
        %v1194 = vunpack.c.l.b16 %v1110
        %v1195 = vunpack.c.h.b16 %v1110
        %v1196 = vunpack.c.l.b16 %v1111
        %v1197 = vunpack.c.h.b16 %v1111
        %v1198 = vunpack.c.l.b16 %v1112
        %v1199 = vunpack.c.h.b16 %v1112
        %v1200 = vunpack.c.l.b16 %v1113
        %v1201 = vunpack.c.h.b16 %v1113
        %v1202 = vunpack.c.l.b16 %v1114
        %v1203 = vunpack.c.h.b16 %v1114
        %v1204 = vunpack.c.l.b16 %v1115
        %v1205 = vunpack.c.h.b16 %v1115
        %v1206 = vunpack.c.l.b16 %v1116
        %v1207 = vunpack.c.h.b16 %v1116
        %v1208 = vunpack.c.l.b16 %v1117
        %v1209 = vunpack.c.h.b16 %v1117
        %v1210 = vunpack.c.l.b16 %v1118
        %v1211 = vunpack.c.h.b16 %v1118
        %v1212 = vunpack.c.l.b16 %v1119
        %v1213 = vunpack.c.h.b16 %v1119
        %v1214 = vunpack.c.l.b16 %v1120
        %v1215 = vunpack.c.h.b16 %v1120
        %v1216 = vunpack.c.l.b16 %v1121
        %v1217 = vunpack.c.h.b16 %v1121
        %v1218 = vunpack.c.l.b16 %v1122
        %v1219 = vunpack.c.h.b16 %v1122
        %v1220 = vunpack.c.l.b16 %v1123
        %v1221 = vunpack.c.h.b16 %v1123
        %v1222 = vunpack.c.l.b16 %v1124
        %v1223 = vunpack.c.h.b16 %v1124
        %v1224 = vunpack.c.l.b16 %v1125
        %v1225 = vunpack.c.h.b16 %v1125
        %v1226 = vunpack.c.l.b16 %v1126
        %v1227 = vunpack.c.h.b16 %v1126
        %v1228 = vunpack.c.l.b16 %v1127
        %v1229 = vunpack.c.h.b16 %v1127
        %v1230 = vunpack.c.l.b16 %v1128
        %v1231 = vunpack.c.h.b16 %v1128
        %v1232 = vunpack.c.l.b16 %v1129
        %v1233 = vunpack.c.h.b16 %v1129
        %v1234 = vunpack.c.l.b16 %v1130
        %v1235 = vunpack.c.h.b16 %v1130
        %v1236 = vunpack.c.l.b16 %v1131
        %v1237 = vunpack.c.h.b16 %v1131
        %v1238 = vunpack.c.l.b16 %v1132
        %v1239 = vunpack.c.h.b16 %v1132
        %v1240 = vunpack.c.l.b16 %v1133
        %v1241 = vunpack.c.h.b16 %v1133
        %v1242 = vpack.c.b16 %v1180, %v1178
        %v1243 = vpack.c.b16 %v1181, %v1179
        %v1244 = vpack.c.b16 %v1184, %v1182
        %v1245 = vpack.c.b16 %v1185, %v1183
        %v1246 = vpack.c.b16 %v1188, %v1186
        %v1247 = vpack.c.b16 %v1189, %v1187
        %v1248 = vpack.c.b16 %v1192, %v1190
        %v1249 = vpack.c.b16 %v1193, %v1191
        %v1250 = vpack.c.b16 %v1196, %v1194
        %v1251 = vpack.c.b16 %v1197, %v1195
        %v1252 = vpack.c.b16 %v1200, %v1198
        %v1253 = vpack.c.b16 %v1201, %v1199
        %v1254 = vpack.c.b16 %v1204, %v1202
        %v1255 = vpack.c.b16 %v1205, %v1203
        %v1256 = vpack.c.b16 %v1208, %v1206
        %v1257 = vpack.c.b16 %v1209, %v1207
        %v1258 = vpack.c.b16 %v1212, %v1210
        %v1259 = vpack.c.b16 %v1213, %v1211
        %v1260 = vpack.c.b16 %v1216, %v1214
        %v1261 = vpack.c.b16 %v1217, %v1215
        %v1262 = vpack.c.b16 %v1220, %v1218
        %v1263 = vpack.c.b16 %v1221, %v1219
        %v1264 = vpack.c.b16 %v1224, %v1222
        %v1265 = vpack.c.b16 %v1225, %v1223
        %v1266 = vpack.c.b16 %v1228, %v1226
        %v1267 = vpack.c.b16 %v1229, %v1227
        %v1268 = vpack.c.b16 %v1232, %v1230
        %v1269 = vpack.c.b16 %v1233, %v1231
        %v1270 = vpack.c.b16 %v1236, %v1234
        %v1271 = vpack.c.b16 %v1237, %v1235
        %v1272 = vpack.c.b16 %v1240, %v1238
        %v1273 = vpack.c.b16 %v1241, %v1239
        %1306 = vmatprep.subr.bf16.mxu0 %v1243
        %1307 = vmatpush1.bf16.msra.mxu0 %v1242
        %1308 = vmatprep.subr.bf16.mxu0 %v1245
        %1309 = vmatpush1.bf16.msra.mxu0 %v1244
        %1310 = vmatprep.subr.bf16.mxu0 %v1247
        %1311 = vmatpush1.bf16.msra.mxu0 %v1246
        %1312 = vmatprep.subr.bf16.mxu0 %v1249
        %1313 = vmatpush1.bf16.msra.mxu0 %v1248
        %1314 = vmatprep.subr.bf16.mxu0 %v1251
        %1315 = vmatpush1.bf16.msra.mxu0 %v1250
        %1316 = vmatprep.subr.bf16.mxu0 %v1253
        %1317 = vmatpush1.bf16.msra.mxu0 %v1252
        %1318 = vmatprep.subr.bf16.mxu0 %v1255
        %1319 = vmatpush1.bf16.msra.mxu0 %v1254
        %1320 = vmatprep.subr.bf16.mxu0 %v1257
        %1321 = vmatpush1.bf16.msra.mxu0 %v1256
        %1322 = vmatprep.subr.bf16.mxu0 %v1259
        %1323 = vmatpush1.bf16.msra.mxu0 %v1258
        %1324 = vmatprep.subr.bf16.mxu0 %v1261
        %1325 = vmatpush1.bf16.msra.mxu0 %v1260
        %1326 = vmatprep.subr.bf16.mxu0 %v1263
        %1327 = vmatpush1.bf16.msra.mxu0 %v1262
        %1328 = vmatprep.subr.bf16.mxu0 %v1265
        %1329 = vmatpush1.bf16.msra.mxu0 %v1264
        %1330 = vmatprep.subr.bf16.mxu0 %v1267
        %1331 = vmatpush1.bf16.msra.mxu0 %v1266
        %1332 = vmatprep.subr.bf16.mxu0 %v1269
        %1333 = vmatpush1.bf16.msra.mxu0 %v1268
        %1334 = vmatprep.subr.bf16.mxu0 %v1271
        %1335 = vmatpush1.bf16.msra.mxu0 %v1270
        %1336 = vmatprep.subr.bf16.mxu0 %v1273
        %1337 = vmatpush1.bf16.msra.mxu0 %v1272
        %1338 = vmatprep.mubr.bf16.mxu0 %v1071
        %1339 = vmatmul.mubr.bf16.gmra.mrb[0].mxu0 %v1070
        %v1340 = vpop.f32.mrb[0].mxu0
        %v1341 = vadd.f32 %v1139, %v1340
        %v1342 = vpop.f32.mrb[0].mxu0
        %v1343 = vadd.f32 %v1143, %v1342
        %v1344 = vpop.f32.mrb[0].mxu0
        %v1345 = vadd.f32 %v1139, %v1344
        %v1346 = vpop.f32.mrb[0].mxu0
        %v1347 = vadd.f32 %v1143, %v1346
        %1348 = vmatprep.mubr.bf16.mxu0 %v1073
        %1349 = vmatmul.mubr.bf16.gmra.mrb[0].mxu0 %v1072
        %v1350 = vpop.f32.mrb[0].mxu0
        %v1351 = vadd.f32 %v1139, %v1350
        %v1352 = vpop.f32.mrb[0].mxu0
        %v1353 = vadd.f32 %v1143, %v1352
        %v1354 = vpop.f32.mrb[0].mxu0
        %v1355 = vadd.f32 %v1139, %v1354
        %v1356 = vpop.f32.mrb[0].mxu0
        %v1357 = vadd.f32 %v1143, %v1356
        %1358 = vmatprep.mubr.bf16.mxu0 %v1075
        %1359 = vmatmul.mubr.bf16.gmra.mrb[0].mxu0 %v1074
        %v1360 = vpop.f32.mrb[0].mxu0
        %v1361 = vadd.f32 %v1139, %v1360
        %v1362 = vpop.f32.mrb[0].mxu0
        %v1363 = vadd.f32 %v1143, %v1362
        %v1364 = vpop.f32.mrb[0].mxu0
        %v1365 = vadd.f32 %v1139, %v1364
        %v1366 = vpop.f32.mrb[0].mxu0
        %v1367 = vadd.f32 %v1143, %v1366
        %1368 = vmatprep.mubr.bf16.mxu0 %v1077
        %1369 = vmatmul.mubr.bf16.gmra.mrb[0].mxu0 %v1076
        %v1370 = vpop.f32.mrb[0].mxu0
        %v1371 = vadd.f32 %v1139, %v1370
        %v1372 = vpop.f32.mrb[0].mxu0
        %v1373 = vadd.f32 %v1143, %v1372
        %v1374 = vpop.f32.mrb[0].mxu0
        %v1375 = vadd.f32 %v1139, %v1374
        %v1376 = vpop.f32.mrb[0].mxu0
        %v1377 = vadd.f32 %v1143, %v1376
        %1378 = vmatprep.mubr.bf16.mxu0 %v1079
        %1379 = vmatmul.mubr.bf16.gmra.mrb[0].mxu0 %v1078
        %v1380 = vpop.f32.mrb[0].mxu0
        %v1381 = vadd.f32 %v1139, %v1380
        %v1382 = vpop.f32.mrb[0].mxu0
        %v1383 = vadd.f32 %v1143, %v1382
        %v1384 = vpop.f32.mrb[0].mxu0
        %v1385 = vadd.f32 %v1139, %v1384
        %v1386 = vpop.f32.mrb[0].mxu0
        %v1387 = vadd.f32 %v1143, %v1386
        %1388 = vmatprep.mubr.bf16.mxu0 %v1081
        %1389 = vmatmul.mubr.bf16.gmra.mrb[0].mxu0 %v1080
        %v1390 = vpop.f32.mrb[0].mxu0
        %v1391 = vadd.f32 %v1139, %v1390
        %v1392 = vpop.f32.mrb[0].mxu0
        %v1393 = vadd.f32 %v1143, %v1392
        %v1394 = vpop.f32.mrb[0].mxu0
        %v1395 = vadd.f32 %v1139, %v1394
        %v1396 = vpop.f32.mrb[0].mxu0
        %v1397 = vadd.f32 %v1143, %v1396
        %1398 = vmatprep.mubr.bf16.mxu0 %v1083
        %1399 = vmatmul.mubr.bf16.gmra.mrb[0].mxu0 %v1082
        %v1400 = vpop.f32.mrb[0].mxu0
        %v1401 = vadd.f32 %v1139, %v1400
        %v1402 = vpop.f32.mrb[0].mxu0
        %v1403 = vadd.f32 %v1143, %v1402
        %v1404 = vpop.f32.mrb[0].mxu0
        %v1405 = vadd.f32 %v1139, %v1404
        %v1406 = vpop.f32.mrb[0].mxu0
        %v1407 = vadd.f32 %v1143, %v1406
        %1408 = vmatprep.mubr.bf16.mxu0 %v1085
        %1409 = vmatmul.mubr.bf16.gmra.mrb[0].mxu0 %v1084
        %v1410 = vpop.f32.mrb[0].mxu0
        %v1411 = vadd.f32 %v1139, %v1410
        %v1412 = vpop.f32.mrb[0].mxu0
        %v1413 = vadd.f32 %v1143, %v1412
        %v1414 = vpop.f32.mrb[0].mxu0
        %v1415 = vadd.f32 %v1139, %v1414
        %v1416 = vpop.f32.mrb[0].mxu0
        %v1417 = vadd.f32 %v1143, %v1416
        %1418 = vmatprep.mubr.bf16.mxu0 %v1087
        %1419 = vmatmul.mubr.bf16.gmra.mrb[0].mxu0 %v1086
        %v1420 = vpop.f32.mrb[0].mxu0
        %v1421 = vadd.f32 %v1139, %v1420
        %v1422 = vpop.f32.mrb[0].mxu0
        %v1423 = vadd.f32 %v1143, %v1422
        %v1424 = vpop.f32.mrb[0].mxu0
        %v1425 = vadd.f32 %v1139, %v1424
        %v1426 = vpop.f32.mrb[0].mxu0
        %v1427 = vadd.f32 %v1143, %v1426
        %1428 = vmatprep.mubr.bf16.mxu0 %v1089
        %1429 = vmatmul.mubr.bf16.gmra.mrb[0].mxu0 %v1088
        %v1430 = vpop.f32.mrb[0].mxu0
        %v1431 = vadd.f32 %v1139, %v1430
        %v1432 = vpop.f32.mrb[0].mxu0
        %v1433 = vadd.f32 %v1143, %v1432
        %v1434 = vpop.f32.mrb[0].mxu0
        %v1435 = vadd.f32 %v1139, %v1434
        %v1436 = vpop.f32.mrb[0].mxu0
        %v1437 = vadd.f32 %v1143, %v1436
        %1438 = vmatprep.mubr.bf16.mxu0 %v1091
        %1439 = vmatmul.mubr.bf16.gmra.mrb[0].mxu0 %v1090
        %v1440 = vpop.f32.mrb[0].mxu0
        %v1441 = vadd.f32 %v1139, %v1440
        %v1442 = vpop.f32.mrb[0].mxu0
        %v1443 = vadd.f32 %v1143, %v1442
        %v1444 = vpop.f32.mrb[0].mxu0
        %v1445 = vadd.f32 %v1139, %v1444
        %v1446 = vpop.f32.mrb[0].mxu0
        %v1447 = vadd.f32 %v1143, %v1446
        %1448 = vmatprep.mubr.bf16.mxu0 %v1093
        %1449 = vmatmul.mubr.bf16.gmra.mrb[0].mxu0 %v1092
        %v1450 = vpop.f32.mrb[0].mxu0
        %v1451 = vadd.f32 %v1139, %v1450
        %v1452 = vpop.f32.mrb[0].mxu0
        %v1453 = vadd.f32 %v1143, %v1452
        %v1454 = vpop.f32.mrb[0].mxu0
        %v1455 = vadd.f32 %v1139, %v1454
        %v1456 = vpop.f32.mrb[0].mxu0
        %v1457 = vadd.f32 %v1143, %v1456
        %1458 = vmatprep.mubr.bf16.mxu0 %v1095
        %1459 = vmatmul.mubr.bf16.gmra.mrb[0].mxu0 %v1094
        %v1460 = vpop.f32.mrb[0].mxu0
        %v1461 = vadd.f32 %v1139, %v1460
        %v1462 = vpop.f32.mrb[0].mxu0
        %v1463 = vadd.f32 %v1143, %v1462
        %v1464 = vpop.f32.mrb[0].mxu0
        %v1465 = vadd.f32 %v1139, %v1464
        %v1466 = vpop.f32.mrb[0].mxu0
        %v1467 = vadd.f32 %v1143, %v1466
        %1468 = vmatprep.mubr.bf16.mxu0 %v1097
        %1469 = vmatmul.mubr.bf16.gmra.mrb[0].mxu0 %v1096
        %v1470 = vpop.f32.mrb[0].mxu0
        %v1471 = vadd.f32 %v1139, %v1470
        %v1472 = vpop.f32.mrb[0].mxu0
        %v1473 = vadd.f32 %v1143, %v1472
        %v1474 = vpop.f32.mrb[0].mxu0
        %v1475 = vadd.f32 %v1139, %v1474
        %v1476 = vpop.f32.mrb[0].mxu0
        %v1477 = vadd.f32 %v1143, %v1476
        %1478 = vmatprep.mubr.bf16.mxu0 %v1099
        %1479 = vmatmul.mubr.bf16.gmra.mrb[0].mxu0 %v1098
        %v1480 = vpop.f32.mrb[0].mxu0
        %v1481 = vadd.f32 %v1139, %v1480
        %v1482 = vpop.f32.mrb[0].mxu0
        %v1483 = vadd.f32 %v1143, %v1482
        %v1484 = vpop.f32.mrb[0].mxu0
        %v1485 = vadd.f32 %v1139, %v1484
        %v1486 = vpop.f32.mrb[0].mxu0
        %v1487 = vadd.f32 %v1143, %v1486
        %1488 = vmatprep.mubr.bf16.mxu0 %v1101
        %1489 = vmatmul.mubr.bf16.gmra.mrb[0].mxu0 %v1100
        %v1490 = vpop.f32.mrb[0].mxu0
        %v1491 = vadd.f32 %v1139, %v1490
        %v1492 = vpop.f32.mrb[0].mxu0
        %v1493 = vadd.f32 %v1143, %v1492
        %v1494 = vpop.f32.mrb[0].mxu0
        %v1495 = vadd.f32 %v1139, %v1494
        %v1496 = vpop.f32.mrb[0].mxu0
        %v1497 = vadd.f32 %v1143, %v1496
        %1498 = vdwg.mxu0
        %vm1499 = vcmp.ge.f32.partialorder %v1341, 0.0
        %vm1500 = vcmp.ge.f32.partialorder %v1343, 0.0
        %vm1501 = vcmp.ge.f32.partialorder %v1345, 0.0
        %vm1502 = vcmp.ge.f32.partialorder %v1347, 0.0
        %vm1503 = vcmp.ge.f32.partialorder %v1351, 0.0
        %vm1504 = vcmp.ge.f32.partialorder %v1353, 0.0
        %vm1505 = vcmp.ge.f32.partialorder %v1355, 0.0
        %vm1506 = vcmp.ge.f32.partialorder %v1357, 0.0
        %vm1507 = vcmp.ge.f32.partialorder %v1361, 0.0
        %vm1508 = vcmp.ge.f32.partialorder %v1363, 0.0
        %vm1509 = vcmp.ge.f32.partialorder %v1365, 0.0
        %vm1510 = vcmp.ge.f32.partialorder %v1367, 0.0
        %vm1511 = vcmp.ge.f32.partialorder %v1371, 0.0
        %vm1512 = vcmp.ge.f32.partialorder %v1373, 0.0
        %vm1513 = vcmp.ge.f32.partialorder %v1375, 0.0
        %vm1514 = vcmp.ge.f32.partialorder %v1377, 0.0
        %vm1515 = vcmp.ge.f32.partialorder %v1381, 0.0
        %vm1516 = vcmp.ge.f32.partialorder %v1383, 0.0
        %vm1517 = vcmp.ge.f32.partialorder %v1385, 0.0
        %vm1518 = vcmp.ge.f32.partialorder %v1387, 0.0
        %vm1519 = vcmp.ge.f32.partialorder %v1391, 0.0
        %vm1520 = vcmp.ge.f32.partialorder %v1393, 0.0
        %vm1521 = vcmp.ge.f32.partialorder %v1395, 0.0
        %vm1522 = vcmp.ge.f32.partialorder %v1397, 0.0
        %vm1523 = vcmp.ge.f32.partialorder %v1401, 0.0
        %vm1524 = vcmp.ge.f32.partialorder %v1403, 0.0
        %vm1525 = vcmp.ge.f32.partialorder %v1405, 0.0
        %vm1526 = vcmp.ge.f32.partialorder %v1407, 0.0
        %vm1527 = vcmp.ge.f32.partialorder %v1411, 0.0
        %vm1528 = vcmp.ge.f32.partialorder %v1413, 0.0
        %vm1529 = vcmp.ge.f32.partialorder %v1415, 0.0
        %vm1530 = vcmp.ge.f32.partialorder %v1417, 0.0
        %vm1531 = vcmp.ge.f32.partialorder %v1421, 0.0
        %vm1532 = vcmp.ge.f32.partialorder %v1423, 0.0
        %vm1533 = vcmp.ge.f32.partialorder %v1425, 0.0
        %vm1534 = vcmp.ge.f32.partialorder %v1427, 0.0
        %vm1535 = vcmp.ge.f32.partialorder %v1431, 0.0
        %vm1536 = vcmp.ge.f32.partialorder %v1433, 0.0
        %vm1537 = vcmp.ge.f32.partialorder %v1435, 0.0
        %vm1538 = vcmp.ge.f32.partialorder %v1437, 0.0
        %vm1539 = vcmp.ge.f32.partialorder %v1441, 0.0
        %vm1540 = vcmp.ge.f32.partialorder %v1443, 0.0
        %vm1541 = vcmp.ge.f32.partialorder %v1445, 0.0
        %vm1542 = vcmp.ge.f32.partialorder %v1447, 0.0
        %vm1543 = vcmp.ge.f32.partialorder %v1451, 0.0
        %vm1544 = vcmp.ge.f32.partialorder %v1453, 0.0
        %vm1545 = vcmp.ge.f32.partialorder %v1455, 0.0
        %vm1546 = vcmp.ge.f32.partialorder %v1457, 0.0
        %vm1547 = vcmp.ge.f32.partialorder %v1461, 0.0
        %vm1548 = vcmp.ge.f32.partialorder %v1463, 0.0
        %vm1549 = vcmp.ge.f32.partialorder %v1465, 0.0
        %vm1550 = vcmp.ge.f32.partialorder %v1467, 0.0
        %vm1551 = vcmp.ge.f32.partialorder %v1471, 0.0
        %vm1552 = vcmp.ge.f32.partialorder %v1473, 0.0
        %vm1553 = vcmp.ge.f32.partialorder %v1475, 0.0
        %vm1554 = vcmp.ge.f32.partialorder %v1477, 0.0
        %vm1555 = vcmp.ge.f32.partialorder %v1481, 0.0
        %vm1556 = vcmp.ge.f32.partialorder %v1483, 0.0
        %vm1557 = vcmp.ge.f32.partialorder %v1485, 0.0
        %vm1558 = vcmp.ge.f32.partialorder %v1487, 0.0
        %vm1559 = vcmp.ge.f32.partialorder %v1491, 0.0
        %vm1560 = vcmp.ge.f32.partialorder %v1493, 0.0
        %vm1561 = vcmp.ge.f32.partialorder %v1495, 0.0
        %vm1562 = vcmp.ge.f32.partialorder %v1497, 0.0
        %v1563 = vmul.f32 %v1341, 0.01
        %v1564 = vmul.f32 %v1343, 0.01
        %v1565 = vmul.f32 %v1345, 0.01
        %v1566 = vmul.f32 %v1347, 0.01
        %v1567 = vmul.f32 %v1351, 0.01
        %v1568 = vmul.f32 %v1353, 0.01
        %v1569 = vmul.f32 %v1355, 0.01
        %v1570 = vmul.f32 %v1357, 0.01
        %v1571 = vmul.f32 %v1361, 0.01
        %v1572 = vmul.f32 %v1363, 0.01
        %v1573 = vmul.f32 %v1365, 0.01
        %v1574 = vmul.f32 %v1367, 0.01
        %v1575 = vmul.f32 %v1371, 0.01
        %v1576 = vmul.f32 %v1373, 0.01
        %v1577 = vmul.f32 %v1375, 0.01
        %v1578 = vmul.f32 %v1377, 0.01
        %v1579 = vmul.f32 %v1381, 0.01
        %v1580 = vmul.f32 %v1383, 0.01
        %v1581 = vmul.f32 %v1385, 0.01
        %v1582 = vmul.f32 %v1387, 0.01
        %v1583 = vmul.f32 %v1391, 0.01
        %v1584 = vmul.f32 %v1393, 0.01
        %v1585 = vmul.f32 %v1395, 0.01
        %v1586 = vmul.f32 %v1397, 0.01
        %v1587 = vmul.f32 %v1401, 0.01
        %v1588 = vmul.f32 %v1403, 0.01
        %v1589 = vmul.f32 %v1405, 0.01
        %v1590 = vmul.f32 %v1407, 0.01
        %v1591 = vmul.f32 %v1411, 0.01
        %v1592 = vmul.f32 %v1413, 0.01
        %v1593 = vmul.f32 %v1415, 0.01
        %v1594 = vmul.f32 %v1417, 0.01
        %v1595 = vmul.f32 %v1421, 0.01
        %v1596 = vmul.f32 %v1423, 0.01
        %v1597 = vmul.f32 %v1425, 0.01
        %v1598 = vmul.f32 %v1427, 0.01
        %v1599 = vmul.f32 %v1431, 0.01
        %v1600 = vmul.f32 %v1433, 0.01
        %v1601 = vmul.f32 %v1435, 0.01
        %v1602 = vmul.f32 %v1437, 0.01
        %v1603 = vmul.f32 %v1441, 0.01
        %v1604 = vmul.f32 %v1443, 0.01
        %v1605 = vmul.f32 %v1445, 0.01
        %v1606 = vmul.f32 %v1447, 0.01
        %v1607 = vmul.f32 %v1451, 0.01
        %v1608 = vmul.f32 %v1453, 0.01
        %v1609 = vmul.f32 %v1455, 0.01
        %v1610 = vmul.f32 %v1457, 0.01
        %v1611 = vmul.f32 %v1461, 0.01
        %v1612 = vmul.f32 %v1463, 0.01
        %v1613 = vmul.f32 %v1465, 0.01
        %v1614 = vmul.f32 %v1467, 0.01
        %v1615 = vmul.f32 %v1471, 0.01
        %v1616 = vmul.f32 %v1473, 0.01
        %v1617 = vmul.f32 %v1475, 0.01
        %v1618 = vmul.f32 %v1477, 0.01
        %v1619 = vmul.f32 %v1481, 0.01
        %v1620 = vmul.f32 %v1483, 0.01
        %v1621 = vmul.f32 %v1485, 0.01
        %v1622 = vmul.f32 %v1487, 0.01
        %v1623 = vmul.f32 %v1491, 0.01
        %v1624 = vmul.f32 %v1493, 0.01
        %v1625 = vmul.f32 %v1495, 0.01
        %v1626 = vmul.f32 %v1497, 0.01
        %v1627 = vsel %vm1499, %v1341, %v1563
        %v1628 = vsel %vm1500, %v1343, %v1564
        %v1629 = vsel %vm1501, %v1345, %v1565
        %v1630 = vsel %vm1502, %v1347, %v1566
        %v1631 = vsel %vm1503, %v1351, %v1567
        %v1632 = vsel %vm1504, %v1353, %v1568
        %v1633 = vsel %vm1505, %v1355, %v1569
        %v1634 = vsel %vm1506, %v1357, %v1570
        %v1635 = vsel %vm1507, %v1361, %v1571
        %v1636 = vsel %vm1508, %v1363, %v1572
        %v1637 = vsel %vm1509, %v1365, %v1573
        %v1638 = vsel %vm1510, %v1367, %v1574
        %v1639 = vsel %vm1511, %v1371, %v1575
        %v1640 = vsel %vm1512, %v1373, %v1576
        %v1641 = vsel %vm1513, %v1375, %v1577
        %v1642 = vsel %vm1514, %v1377, %v1578
        %v1643 = vsel %vm1515, %v1381, %v1579
        %v1644 = vsel %vm1516, %v1383, %v1580
        %v1645 = vsel %vm1517, %v1385, %v1581
        %v1646 = vsel %vm1518, %v1387, %v1582
        %v1647 = vsel %vm1519, %v1391, %v1583
        %v1648 = vsel %vm1520, %v1393, %v1584
        %v1649 = vsel %vm1521, %v1395, %v1585
        %v1650 = vsel %vm1522, %v1397, %v1586
        %v1651 = vsel %vm1523, %v1401, %v1587
        %v1652 = vsel %vm1524, %v1403, %v1588
        %v1653 = vsel %vm1525, %v1405, %v1589
        %v1654 = vsel %vm1526, %v1407, %v1590
        %v1655 = vsel %vm1527, %v1411, %v1591
        %v1656 = vsel %vm1528, %v1413, %v1592
        %v1657 = vsel %vm1529, %v1415, %v1593
        %v1658 = vsel %vm1530, %v1417, %v1594
        %v1659 = vsel %vm1531, %v1421, %v1595
        %v1660 = vsel %vm1532, %v1423, %v1596
        %v1661 = vsel %vm1533, %v1425, %v1597
        %v1662 = vsel %vm1534, %v1427, %v1598
        %v1663 = vsel %vm1535, %v1431, %v1599
        %v1664 = vsel %vm1536, %v1433, %v1600
        %v1665 = vsel %vm1537, %v1435, %v1601
        %v1666 = vsel %vm1538, %v1437, %v1602
        %v1667 = vsel %vm1539, %v1441, %v1603
        %v1668 = vsel %vm1540, %v1443, %v1604
        %v1669 = vsel %vm1541, %v1445, %v1605
        %v1670 = vsel %vm1542, %v1447, %v1606
        %v1671 = vsel %vm1543, %v1451, %v1607
        %v1672 = vsel %vm1544, %v1453, %v1608
        %v1673 = vsel %vm1545, %v1455, %v1609
        %v1674 = vsel %vm1546, %v1457, %v1610
        %v1675 = vsel %vm1547, %v1461, %v1611
        %v1676 = vsel %vm1548, %v1463, %v1612
        %v1677 = vsel %vm1549, %v1465, %v1613
        %v1678 = vsel %vm1550, %v1467, %v1614
        %v1679 = vsel %vm1551, %v1471, %v1615
        %v1680 = vsel %vm1552, %v1473, %v1616
        %v1681 = vsel %vm1553, %v1475, %v1617
        %v1682 = vsel %vm1554, %v1477, %v1618
        %v1683 = vsel %vm1555, %v1481, %v1619
        %v1684 = vsel %vm1556, %v1483, %v1620
        %v1685 = vsel %vm1557, %v1485, %v1621
        %v1686 = vsel %vm1558, %v1487, %v1622
        %v1687 = vsel %vm1559, %v1491, %v1623
        %v1688 = vsel %vm1560, %v1493, %v1624
        %v1689 = vsel %vm1561, %v1495, %v1625
        %v1690 = vsel %vm1562, %v1497, %v1626
        %v1691 = vpack.c.bf16 %v1629, %v1627
        %v1692 = vpack.c.bf16 %v1630, %v1628
        %v1693 = vpack.c.bf16 %v1633, %v1631
        %v1694 = vpack.c.bf16 %v1634, %v1632
        %v1695 = vpack.c.bf16 %v1637, %v1635
        %v1696 = vpack.c.bf16 %v1638, %v1636
        %v1697 = vpack.c.bf16 %v1641, %v1639
        %v1698 = vpack.c.bf16 %v1642, %v1640
        %v1699 = vpack.c.bf16 %v1645, %v1643
        %v1700 = vpack.c.bf16 %v1646, %v1644
        %v1701 = vpack.c.bf16 %v1649, %v1647
        %v1702 = vpack.c.bf16 %v1650, %v1648
        %v1703 = vpack.c.bf16 %v1653, %v1651
        %v1704 = vpack.c.bf16 %v1654, %v1652
        %v1705 = vpack.c.bf16 %v1657, %v1655
        %v1706 = vpack.c.bf16 %v1658, %v1656
        %v1707 = vpack.c.bf16 %v1661, %v1659
        %v1708 = vpack.c.bf16 %v1662, %v1660
        %v1709 = vpack.c.bf16 %v1665, %v1663
        %v1710 = vpack.c.bf16 %v1666, %v1664
        %v1711 = vpack.c.bf16 %v1669, %v1667
        %v1712 = vpack.c.bf16 %v1670, %v1668
        %v1713 = vpack.c.bf16 %v1673, %v1671
        %v1714 = vpack.c.bf16 %v1674, %v1672
        %v1715 = vpack.c.bf16 %v1677, %v1675
        %v1716 = vpack.c.bf16 %v1678, %v1676
        %v1717 = vpack.c.bf16 %v1681, %v1679
        %v1718 = vpack.c.bf16 %v1682, %v1680
        %v1719 = vpack.c.bf16 %v1685, %v1683
        %v1720 = vpack.c.bf16 %v1686, %v1684
        %v1721 = vpack.c.bf16 %v1689, %v1687
        %v1722 = vpack.c.bf16 %v1690, %v1688
        %v1723 = vld [vmem:[#allocation10] sm:$0xf]
        %v1724 = vld [vmem:[#allocation10 + $0x4] sm:$0xf]
        %v1725 = vld [vmem:[#allocation10 + $0x8] sm:$0xf]
        %v1726 = vld [vmem:[#allocation10 + $0xc] sm:$0xf]
        %v1727 = vld [vmem:[#allocation10 + $0x10] sm:$0xf]
        %v1728 = vld [vmem:[#allocation10 + $0x14] sm:$0xf]
        %v1729 = vld [vmem:[#allocation10 + $0x18] sm:$0xf]
        %v1730 = vld [vmem:[#allocation10 + $0x1c] sm:$0xf]
        %v1731 = vld [vmem:[#allocation10 + $0x20] sm:$0xf]
        %v1732 = vld [vmem:[#allocation10 + $0x24] sm:$0xf]
        %v1733 = vld [vmem:[#allocation10 + $0x28] sm:$0xf]
        %v1734 = vld [vmem:[#allocation10 + $0x2c] sm:$0xf]
        %v1735 = vld [vmem:[#allocation10 + $0x30] sm:$0xf]
        %v1736 = vld [vmem:[#allocation10 + $0x34] sm:$0xf]
        %v1737 = vld [vmem:[#allocation10 + $0x38] sm:$0xf]
        %v1738 = vld [vmem:[#allocation10 + $0x3c] sm:$0xf]
        %v1739 = vld [vmem:[#allocation10 + $0x40] sm:$0xf]
        %v1740 = vld [vmem:[#allocation10 + $0x44] sm:$0xf]
        %v1741 = vld [vmem:[#allocation10 + $0x48] sm:$0xf]
        %v1742 = vld [vmem:[#allocation10 + $0x4c] sm:$0xf]
        %v1743 = vld [vmem:[#allocation10 + $0x50] sm:$0xf]
        %v1744 = vld [vmem:[#allocation10 + $0x54] sm:$0xf]
        %v1745 = vld [vmem:[#allocation10 + $0x58] sm:$0xf]
        %v1746 = vld [vmem:[#allocation10 + $0x5c] sm:$0xf]
        %v1747 = vld [vmem:[#allocation10 + $0x60] sm:$0xf]
        %v1748 = vld [vmem:[#allocation10 + $0x64] sm:$0xf]
        %v1749 = vld [vmem:[#allocation10 + $0x68] sm:$0xf]
        %v1750 = vld [vmem:[#allocation10 + $0x6c] sm:$0xf]
        %v1751 = vld [vmem:[#allocation10 + $0x70] sm:$0xf]
        %v1752 = vld [vmem:[#allocation10 + $0x74] sm:$0xf]
        %v1753 = vld [vmem:[#allocation10 + $0x78] sm:$0xf]
        %v1754 = vld [vmem:[#allocation10 + $0x7c] sm:$0xf]
        %v1755 = vld [vmem:[%s7] sm:$0x1]
        %v1757 = vlaneseq
        %v1758 = vshrl.u32 %v1757, 7
        %v1759 = vsub.s32 0, %v1758
        %v1760 = vrot.slane %v1755, %v1759
        %v1794 = vunpack.c.l.b16 %v1723
        %v1795 = vunpack.c.l.b16 %v1724
        %v1796 = vunpack.c.l.b16 %v1725
        %v1797 = vunpack.c.l.b16 %v1726
        %v1798 = vunpack.c.l.b16 %v1727
        %v1799 = vunpack.c.l.b16 %v1728
        %v1800 = vunpack.c.l.b16 %v1729
        %v1801 = vunpack.c.l.b16 %v1730
        %v1802 = vunpack.c.l.b16 %v1731
        %v1803 = vunpack.c.l.b16 %v1732
        %v1804 = vunpack.c.l.b16 %v1733
        %v1805 = vunpack.c.l.b16 %v1734
        %v1806 = vunpack.c.l.b16 %v1735
        %v1807 = vunpack.c.l.b16 %v1736
        %v1808 = vunpack.c.l.b16 %v1737
        %v1809 = vunpack.c.l.b16 %v1738
        %v1810 = vunpack.c.l.b16 %v1739
        %v1811 = vunpack.c.l.b16 %v1740
        %v1812 = vunpack.c.l.b16 %v1741
        %v1813 = vunpack.c.l.b16 %v1742
        %v1814 = vunpack.c.l.b16 %v1743
        %v1815 = vunpack.c.l.b16 %v1744
        %v1816 = vunpack.c.l.b16 %v1745
        %v1817 = vunpack.c.l.b16 %v1746
        %v1818 = vunpack.c.l.b16 %v1747
        %v1819 = vunpack.c.l.b16 %v1748
        %v1820 = vunpack.c.l.b16 %v1749
        %v1821 = vunpack.c.l.b16 %v1750
        %v1822 = vunpack.c.l.b16 %v1751
        %v1823 = vunpack.c.l.b16 %v1752
        %v1824 = vunpack.c.l.b16 %v1753
        %v1825 = vunpack.c.l.b16 %v1754
        %v1826 = vpack.c.b16 %v1795, %v1794
        %v1827 = vpack.c.b16 %v1797, %v1796
        %v1828 = vpack.c.b16 %v1799, %v1798
        %v1829 = vpack.c.b16 %v1801, %v1800
        %v1830 = vpack.c.b16 %v1803, %v1802
        %v1831 = vpack.c.b16 %v1805, %v1804
        %v1832 = vpack.c.b16 %v1807, %v1806
        %v1833 = vpack.c.b16 %v1809, %v1808
        %v1834 = vpack.c.b16 %v1811, %v1810
        %v1835 = vpack.c.b16 %v1813, %v1812
        %v1836 = vpack.c.b16 %v1815, %v1814
        %v1837 = vpack.c.b16 %v1817, %v1816
        %v1838 = vpack.c.b16 %v1819, %v1818
        %v1839 = vpack.c.b16 %v1821, %v1820
        %v1840 = vpack.c.b16 %v1823, %v1822
        %v1841 = vpack.c.b16 %v1825, %v1824
        %1858 = vmatprep.subr.bf16.mxu0 0
        %1859 = vmatpush1.bf16.msra.mxu0 %v1826
        %1860 = vmatprep.subr.bf16.mxu0 0
        %1861 = vmatpush1.bf16.msra.mxu0 %v1827
        %1862 = vmatprep.subr.bf16.mxu0 0
        %1863 = vmatpush1.bf16.msra.mxu0 %v1828
        %1864 = vmatprep.subr.bf16.mxu0 0
        %1865 = vmatpush1.bf16.msra.mxu0 %v1829
        %1866 = vmatprep.subr.bf16.mxu0 0
        %1867 = vmatpush1.bf16.msra.mxu0 %v1830
        %1868 = vmatprep.subr.bf16.mxu0 0
        %1869 = vmatpush1.bf16.msra.mxu0 %v1831
        %1870 = vmatprep.subr.bf16.mxu0 0
        %1871 = vmatpush1.bf16.msra.mxu0 %v1832
        %1872 = vmatprep.subr.bf16.mxu0 0
        %1873 = vmatpush1.bf16.msra.mxu0 %v1833
        %1874 = vmatprep.subr.bf16.mxu0 0
        %1875 = vmatpush1.bf16.msra.mxu0 %v1834
        %1876 = vmatprep.subr.bf16.mxu0 0
        %1877 = vmatpush1.bf16.msra.mxu0 %v1835
        %1878 = vmatprep.subr.bf16.mxu0 0
        %1879 = vmatpush1.bf16.msra.mxu0 %v1836
        %1880 = vmatprep.subr.bf16.mxu0 0
        %1881 = vmatpush1.bf16.msra.mxu0 %v1837
        %1882 = vmatprep.subr.bf16.mxu0 0
        %1883 = vmatpush1.bf16.msra.mxu0 %v1838
        %1884 = vmatprep.subr.bf16.mxu0 0
        %1885 = vmatpush1.bf16.msra.mxu0 %v1839
        %1886 = vmatprep.subr.bf16.mxu0 0
        %1887 = vmatpush1.bf16.msra.mxu0 %v1840
        %1888 = vmatprep.subr.bf16.mxu0 0
        %1889 = vmatpush1.bf16.msra.mxu0 %v1841
        %1890 = vmatprep.mubr.bf16.mxu0 %v1692
        %1891 = vmatmul.mubr.bf16.gmra.mrb[0].mxu0 %v1691
        %v1892 = vpop.f32.mrb[0].mxu0
        %v1893 = vadd.f32 %v1760, %v1892
        %v1894 = vpop.f32.mrb[0].mxu0
        %v1895 = vpop.f32.mrb[0].mxu0
        %v1896 = vadd.f32 %v1760, %v1895
        %v1897 = vpop.f32.mrb[0].mxu0
        %1898 = vmatprep.mubr.bf16.mxu0 %v1694
        %1899 = vmatmul.mubr.bf16.gmra.mrb[0].mxu0 %v1693
        %v1900 = vpop.f32.mrb[0].mxu0
        %v1901 = vadd.f32 %v1760, %v1900
        %v1902 = vpop.f32.mrb[0].mxu0
        %v1903 = vpop.f32.mrb[0].mxu0
        %v1904 = vadd.f32 %v1760, %v1903
        %v1905 = vpop.f32.mrb[0].mxu0
        %1906 = vmatprep.mubr.bf16.mxu0 %v1696
        %1907 = vmatmul.mubr.bf16.gmra.mrb[0].mxu0 %v1695
        %v1908 = vpop.f32.mrb[0].mxu0
        %v1909 = vadd.f32 %v1760, %v1908
        %v1910 = vpop.f32.mrb[0].mxu0
        %v1911 = vpop.f32.mrb[0].mxu0
        %v1912 = vadd.f32 %v1760, %v1911
        %v1913 = vpop.f32.mrb[0].mxu0
        %1914 = vmatprep.mubr.bf16.mxu0 %v1698
        %1915 = vmatmul.mubr.bf16.gmra.mrb[0].mxu0 %v1697
        %v1916 = vpop.f32.mrb[0].mxu0
        %v1917 = vadd.f32 %v1760, %v1916
        %v1918 = vpop.f32.mrb[0].mxu0
        %v1919 = vpop.f32.mrb[0].mxu0
        %v1920 = vadd.f32 %v1760, %v1919
        %v1921 = vpop.f32.mrb[0].mxu0
        %1922 = vmatprep.mubr.bf16.mxu0 %v1700
        %1923 = vmatmul.mubr.bf16.gmra.mrb[0].mxu0 %v1699
        %v1924 = vpop.f32.mrb[0].mxu0
        %v1925 = vadd.f32 %v1760, %v1924
        %v1926 = vpop.f32.mrb[0].mxu0
        %v1927 = vpop.f32.mrb[0].mxu0
        %v1928 = vadd.f32 %v1760, %v1927
        %v1929 = vpop.f32.mrb[0].mxu0
        %1930 = vmatprep.mubr.bf16.mxu0 %v1702
        %1931 = vmatmul.mubr.bf16.gmra.mrb[0].mxu0 %v1701
        %v1932 = vpop.f32.mrb[0].mxu0
        %v1933 = vadd.f32 %v1760, %v1932
        %v1934 = vpop.f32.mrb[0].mxu0
        %v1935 = vpop.f32.mrb[0].mxu0
        %v1936 = vadd.f32 %v1760, %v1935
        %v1937 = vpop.f32.mrb[0].mxu0
        %1938 = vmatprep.mubr.bf16.mxu0 %v1704
        %1939 = vmatmul.mubr.bf16.gmra.mrb[0].mxu0 %v1703
        %v1940 = vpop.f32.mrb[0].mxu0
        %v1941 = vadd.f32 %v1760, %v1940
        %v1942 = vpop.f32.mrb[0].mxu0
        %v1943 = vpop.f32.mrb[0].mxu0
        %v1944 = vadd.f32 %v1760, %v1943
        %v1945 = vpop.f32.mrb[0].mxu0
        %1946 = vmatprep.mubr.bf16.mxu0 %v1706
        %1947 = vmatmul.mubr.bf16.gmra.mrb[0].mxu0 %v1705
        %v1948 = vpop.f32.mrb[0].mxu0
        %v1949 = vadd.f32 %v1760, %v1948
        %v1950 = vpop.f32.mrb[0].mxu0
        %v1951 = vpop.f32.mrb[0].mxu0
        %v1952 = vadd.f32 %v1760, %v1951
        %v1953 = vpop.f32.mrb[0].mxu0
        %1954 = vmatprep.mubr.bf16.mxu0 %v1708
        %1955 = vmatmul.mubr.bf16.gmra.mrb[0].mxu0 %v1707
        %v1956 = vpop.f32.mrb[0].mxu0
        %v1957 = vadd.f32 %v1760, %v1956
        %v1958 = vpop.f32.mrb[0].mxu0
        %v1959 = vpop.f32.mrb[0].mxu0
        %v1960 = vadd.f32 %v1760, %v1959
        %v1961 = vpop.f32.mrb[0].mxu0
        %1962 = vmatprep.mubr.bf16.mxu0 %v1710
        %1963 = vmatmul.mubr.bf16.gmra.mrb[0].mxu0 %v1709
        %v1964 = vpop.f32.mrb[0].mxu0
        %v1965 = vadd.f32 %v1760, %v1964
        %v1966 = vpop.f32.mrb[0].mxu0
        %v1967 = vpop.f32.mrb[0].mxu0
        %v1968 = vadd.f32 %v1760, %v1967
        %v1969 = vpop.f32.mrb[0].mxu0
        %1970 = vmatprep.mubr.bf16.mxu0 %v1712
        %1971 = vmatmul.mubr.bf16.gmra.mrb[0].mxu0 %v1711
        %v1972 = vpop.f32.mrb[0].mxu0
        %v1973 = vadd.f32 %v1760, %v1972
        %v1974 = vpop.f32.mrb[0].mxu0
        %v1975 = vpop.f32.mrb[0].mxu0
        %v1976 = vadd.f32 %v1760, %v1975
        %v1977 = vpop.f32.mrb[0].mxu0
        %1978 = vmatprep.mubr.bf16.mxu0 %v1714
        %1979 = vmatmul.mubr.bf16.gmra.mrb[0].mxu0 %v1713
        %v1980 = vpop.f32.mrb[0].mxu0
        %v1981 = vadd.f32 %v1760, %v1980
        %v1982 = vpop.f32.mrb[0].mxu0
        %v1983 = vpop.f32.mrb[0].mxu0
        %v1984 = vadd.f32 %v1760, %v1983
        %v1985 = vpop.f32.mrb[0].mxu0
        %1986 = vmatprep.mubr.bf16.mxu0 %v1716
        %1987 = vmatmul.mubr.bf16.gmra.mrb[0].mxu0 %v1715
        %v1988 = vpop.f32.mrb[0].mxu0
        %v1989 = vadd.f32 %v1760, %v1988
        %v1990 = vpop.f32.mrb[0].mxu0
        %v1991 = vpop.f32.mrb[0].mxu0
        %v1992 = vadd.f32 %v1760, %v1991
        %v1993 = vpop.f32.mrb[0].mxu0
        %1994 = vmatprep.mubr.bf16.mxu0 %v1718
        %1995 = vmatmul.mubr.bf16.gmra.mrb[0].mxu0 %v1717
        %v1996 = vpop.f32.mrb[0].mxu0
        %v1997 = vadd.f32 %v1760, %v1996
        %v1998 = vpop.f32.mrb[0].mxu0
        %v1999 = vpop.f32.mrb[0].mxu0
        %v2000 = vadd.f32 %v1760, %v1999
        %v2001 = vpop.f32.mrb[0].mxu0
        %2002 = vmatprep.mubr.bf16.mxu0 %v1720
        %2003 = vmatmul.mubr.bf16.gmra.mrb[0].mxu0 %v1719
        %v2004 = vpop.f32.mrb[0].mxu0
        %v2005 = vadd.f32 %v1760, %v2004
        %v2006 = vpop.f32.mrb[0].mxu0
        %v2007 = vpop.f32.mrb[0].mxu0
        %v2008 = vadd.f32 %v1760, %v2007
        %v2009 = vpop.f32.mrb[0].mxu0
        %2010 = vmatprep.mubr.bf16.mxu0 %v1722
        %2011 = vmatmul.mubr.bf16.gmra.mrb[0].mxu0 %v1721
        %v2012 = vpop.f32.mrb[0].mxu0
        %v2013 = vadd.f32 %v1760, %v2012
        %v2014 = vpop.f32.mrb[0].mxu0
        %v2015 = vpop.f32.mrb[0].mxu0
        %v2016 = vadd.f32 %v1760, %v2015
        %v2017 = vpop.f32.mrb[0].mxu0
        %2018 = vdwg.mxu0
        %vm2019 = vcmp.ge.f32.partialorder %v1893, 0.0
        %vm2020 = vcmp.ge.f32.partialorder %v1896, 0.0
        %vm2021 = vcmp.ge.f32.partialorder %v1901, 0.0
        %vm2022 = vcmp.ge.f32.partialorder %v1904, 0.0
        %vm2023 = vcmp.ge.f32.partialorder %v1909, 0.0
        %vm2024 = vcmp.ge.f32.partialorder %v1912, 0.0
        %vm2025 = vcmp.ge.f32.partialorder %v1917, 0.0
        %vm2026 = vcmp.ge.f32.partialorder %v1920, 0.0
        %vm2027 = vcmp.ge.f32.partialorder %v1925, 0.0
        %vm2028 = vcmp.ge.f32.partialorder %v1928, 0.0
        %vm2029 = vcmp.ge.f32.partialorder %v1933, 0.0
        %vm2030 = vcmp.ge.f32.partialorder %v1936, 0.0
        %vm2031 = vcmp.ge.f32.partialorder %v1941, 0.0
        %vm2032 = vcmp.ge.f32.partialorder %v1944, 0.0
        %vm2033 = vcmp.ge.f32.partialorder %v1949, 0.0
        %vm2034 = vcmp.ge.f32.partialorder %v1952, 0.0
        %vm2035 = vcmp.ge.f32.partialorder %v1957, 0.0
        %vm2036 = vcmp.ge.f32.partialorder %v1960, 0.0
        %vm2037 = vcmp.ge.f32.partialorder %v1965, 0.0
        %vm2038 = vcmp.ge.f32.partialorder %v1968, 0.0
        %vm2039 = vcmp.ge.f32.partialorder %v1973, 0.0
        %vm2040 = vcmp.ge.f32.partialorder %v1976, 0.0
        %vm2041 = vcmp.ge.f32.partialorder %v1981, 0.0
        %vm2042 = vcmp.ge.f32.partialorder %v1984, 0.0
        %vm2043 = vcmp.ge.f32.partialorder %v1989, 0.0
        %vm2044 = vcmp.ge.f32.partialorder %v1992, 0.0
        %vm2045 = vcmp.ge.f32.partialorder %v1997, 0.0
        %vm2046 = vcmp.ge.f32.partialorder %v2000, 0.0
        %vm2047 = vcmp.ge.f32.partialorder %v2005, 0.0
        %vm2048 = vcmp.ge.f32.partialorder %v2008, 0.0
        %vm2049 = vcmp.ge.f32.partialorder %v2013, 0.0
        %vm2050 = vcmp.ge.f32.partialorder %v2016, 0.0
        %v2051 = vmul.f32 %v1893, 0.01
        %v2052 = vmul.f32 %v1896, 0.01
        %v2053 = vmul.f32 %v1901, 0.01
        %v2054 = vmul.f32 %v1904, 0.01
        %v2055 = vmul.f32 %v1909, 0.01
        %v2056 = vmul.f32 %v1912, 0.01
        %v2057 = vmul.f32 %v1917, 0.01
        %v2058 = vmul.f32 %v1920, 0.01
        %v2059 = vmul.f32 %v1925, 0.01
        %v2060 = vmul.f32 %v1928, 0.01
        %v2061 = vmul.f32 %v1933, 0.01
        %v2062 = vmul.f32 %v1936, 0.01
        %v2063 = vmul.f32 %v1941, 0.01
        %v2064 = vmul.f32 %v1944, 0.01
        %v2065 = vmul.f32 %v1949, 0.01
        %v2066 = vmul.f32 %v1952, 0.01
        %v2067 = vmul.f32 %v1957, 0.01
        %v2068 = vmul.f32 %v1960, 0.01
        %v2069 = vmul.f32 %v1965, 0.01
        %v2070 = vmul.f32 %v1968, 0.01
        %v2071 = vmul.f32 %v1973, 0.01
        %v2072 = vmul.f32 %v1976, 0.01
        %v2073 = vmul.f32 %v1981, 0.01
        %v2074 = vmul.f32 %v1984, 0.01
        %v2075 = vmul.f32 %v1989, 0.01
        %v2076 = vmul.f32 %v1992, 0.01
        %v2077 = vmul.f32 %v1997, 0.01
        %v2078 = vmul.f32 %v2000, 0.01
        %v2079 = vmul.f32 %v2005, 0.01
        %v2080 = vmul.f32 %v2008, 0.01
        %v2081 = vmul.f32 %v2013, 0.01
        %v2082 = vmul.f32 %v2016, 0.01
        %v2083 = vsel %vm2019, %v1893, %v2051
        %v2084 = vsel %vm2020, %v1896, %v2052
        %v2085 = vsel %vm2021, %v1901, %v2053
        %v2086 = vsel %vm2022, %v1904, %v2054
        %v2087 = vsel %vm2023, %v1909, %v2055
        %v2088 = vsel %vm2024, %v1912, %v2056
        %v2089 = vsel %vm2025, %v1917, %v2057
        %v2090 = vsel %vm2026, %v1920, %v2058
        %v2091 = vsel %vm2027, %v1925, %v2059
        %v2092 = vsel %vm2028, %v1928, %v2060
        %v2093 = vsel %vm2029, %v1933, %v2061
        %v2094 = vsel %vm2030, %v1936, %v2062
        %v2095 = vsel %vm2031, %v1941, %v2063
        %v2096 = vsel %vm2032, %v1944, %v2064
        %v2097 = vsel %vm2033, %v1949, %v2065
        %v2098 = vsel %vm2034, %v1952, %v2066
        %v2099 = vsel %vm2035, %v1957, %v2067
        %v2100 = vsel %vm2036, %v1960, %v2068
        %v2101 = vsel %vm2037, %v1965, %v2069
        %v2102 = vsel %vm2038, %v1968, %v2070
        %v2103 = vsel %vm2039, %v1973, %v2071
        %v2104 = vsel %vm2040, %v1976, %v2072
        %v2105 = vsel %vm2041, %v1981, %v2073
        %v2106 = vsel %vm2042, %v1984, %v2074
        %v2107 = vsel %vm2043, %v1989, %v2075
        %v2108 = vsel %vm2044, %v1992, %v2076
        %v2109 = vsel %vm2045, %v1997, %v2077
        %v2110 = vsel %vm2046, %v2000, %v2078
        %v2111 = vsel %vm2047, %v2005, %v2079
        %v2112 = vsel %vm2048, %v2008, %v2080
        %v2113 = vsel %vm2049, %v2013, %v2081
        %v2114 = vsel %vm2050, %v2016, %v2082
        %v2115 = vpack.c.bf16 %v2084, %v2083
        %v2116 = vpack.c.bf16 %v2086, %v2085
        %v2117 = vpack.c.bf16 %v2088, %v2087
        %v2118 = vpack.c.bf16 %v2090, %v2089
        %v2119 = vpack.c.bf16 %v2092, %v2091
        %v2120 = vpack.c.bf16 %v2094, %v2093
        %v2121 = vpack.c.bf16 %v2096, %v2095
        %v2122 = vpack.c.bf16 %v2098, %v2097
        %v2123 = vpack.c.bf16 %v2100, %v2099
        %v2124 = vpack.c.bf16 %v2102, %v2101
        %v2125 = vpack.c.bf16 %v2104, %v2103
        %v2126 = vpack.c.bf16 %v2106, %v2105
        %v2127 = vpack.c.bf16 %v2108, %v2107
        %v2128 = vpack.c.bf16 %v2110, %v2109
        %v2129 = vpack.c.bf16 %v2112, %v2111
        %v2130 = vpack.c.bf16 %v2114, %v2113
        %v2131 = vld [vmem:[#allocation11] sm:$0xf]
        %v2132 = vld [vmem:[#allocation11 + $0x4] sm:$0xf]
        %v2133 = vld [vmem:[#allocation11 + $0x8] sm:$0xf]
        %v2134 = vld [vmem:[#allocation11 + $0xc] sm:$0xf]
        %v2135 = vld [vmem:[#allocation11 + $0x10] sm:$0xf]
        %v2136 = vld [vmem:[#allocation11 + $0x14] sm:$0xf]
        %v2137 = vld [vmem:[#allocation11 + $0x18] sm:$0xf]
        %v2138 = vld [vmem:[#allocation11 + $0x1c] sm:$0xf]
        %v2139 = vld [vmem:[#allocation11 + $0x20] sm:$0xf]
        %v2140 = vld [vmem:[#allocation11 + $0x24] sm:$0xf]
        %v2141 = vld [vmem:[#allocation11 + $0x28] sm:$0xf]
        %v2142 = vld [vmem:[#allocation11 + $0x2c] sm:$0xf]
        %v2143 = vld [vmem:[#allocation11 + $0x30] sm:$0xf]
        %v2144 = vld [vmem:[#allocation11 + $0x34] sm:$0xf]
        %v2145 = vld [vmem:[#allocation11 + $0x38] sm:$0xf]
        %v2146 = vld [vmem:[#allocation11 + $0x3c] sm:$0xf]
        %v2147 = vld [vmem:[%s9] sm:$0x1]
        %v2149 = vlaneseq
        %v2150 = vshrl.u32 %v2149, 7
        %v2151 = vsub.s32 0, %v2150
        %v2152 = vrot.slane %v2147, %v2151
        %v2170 = vunpack.c.l.b16 %v2131
        %v2171 = vunpack.c.l.b16 %v2132
        %v2172 = vunpack.c.l.b16 %v2133
        %v2173 = vunpack.c.l.b16 %v2134
        %v2174 = vunpack.c.l.b16 %v2135
        %v2175 = vunpack.c.l.b16 %v2136
        %v2176 = vunpack.c.l.b16 %v2137
        %v2177 = vunpack.c.l.b16 %v2138
        %v2178 = vunpack.c.l.b16 %v2139
        %v2179 = vunpack.c.l.b16 %v2140
        %v2180 = vunpack.c.l.b16 %v2141
        %v2181 = vunpack.c.l.b16 %v2142
        %v2182 = vunpack.c.l.b16 %v2143
        %v2183 = vunpack.c.l.b16 %v2144
        %v2184 = vunpack.c.l.b16 %v2145
        %v2185 = vunpack.c.l.b16 %v2146
        %v2186 = vpack.c.b16 %v2171, %v2170
        %v2187 = vpack.c.b16 %v2173, %v2172
        %v2188 = vpack.c.b16 %v2175, %v2174
        %v2189 = vpack.c.b16 %v2177, %v2176
        %v2190 = vpack.c.b16 %v2179, %v2178
        %v2191 = vpack.c.b16 %v2181, %v2180
        %v2192 = vpack.c.b16 %v2183, %v2182
        %v2193 = vpack.c.b16 %v2185, %v2184
        %2202 = vmatprep.subr.bf16.mxu0 0
        %2203 = vmatpush1.bf16.msra.mxu0 %v2186
        %2204 = vmatprep.subr.bf16.mxu0 0
        %2205 = vmatpush1.bf16.msra.mxu0 %v2187
        %2206 = vmatprep.subr.bf16.mxu0 0
        %2207 = vmatpush1.bf16.msra.mxu0 %v2188
        %2208 = vmatprep.subr.bf16.mxu0 0
        %2209 = vmatpush1.bf16.msra.mxu0 %v2189
        %2210 = vmatprep.subr.bf16.mxu0 0
        %2211 = vmatpush1.bf16.msra.mxu0 %v2190
        %2212 = vmatprep.subr.bf16.mxu0 0
        %2213 = vmatpush1.bf16.msra.mxu0 %v2191
        %2214 = vmatprep.subr.bf16.mxu0 0
        %2215 = vmatpush1.bf16.msra.mxu0 %v2192
        %2216 = vmatprep.subr.bf16.mxu0 0
        %2217 = vmatpush1.bf16.msra.mxu0 %v2193
        %2218 = vmatprep.subr.bf16.mxu0 0
        %2219 = vmatpush1.bf16.msra.mxu0 0
        %2220 = vmatprep.subr.bf16.mxu0 0
        %2221 = vmatpush1.bf16.msra.mxu0 0
        %2222 = vmatprep.subr.bf16.mxu0 0
        %2223 = vmatpush1.bf16.msra.mxu0 0
        %2224 = vmatprep.subr.bf16.mxu0 0
        %2225 = vmatpush1.bf16.msra.mxu0 0
        %2226 = vmatprep.subr.bf16.mxu0 0
        %2227 = vmatpush1.bf16.msra.mxu0 0
        %2228 = vmatprep.subr.bf16.mxu0 0
        %2229 = vmatpush1.bf16.msra.mxu0 0
        %2230 = vmatprep.subr.bf16.mxu0 0
        %2231 = vmatpush1.bf16.msra.mxu0 0
        %2232 = vmatprep.subr.bf16.mxu0 0
        %2233 = vmatpush1.bf16.msra.mxu0 0
        %2234 = vmatprep.mubr.bf16.mxu0 0
        %2235 = vmatmul.mubr.bf16.gmra.mrb[0].mxu0 %v2115
        %v2236 = vpop.f32.mrb[0].mxu0
        %v2237 = vadd.f32 %v2152, %v2236
        %v2238 = vpop.f32.mrb[0].mxu0
        %v2239 = vpop.f32.mrb[0].mxu0
        %v2240 = vadd.f32 %v2152, %v2239
        %v2241 = vpop.f32.mrb[0].mxu0
        %2242 = vmatprep.mubr.bf16.mxu0 0
        %2243 = vmatmul.mubr.bf16.gmra.mrb[0].mxu0 %v2116
        %v2244 = vpop.f32.mrb[0].mxu0
        %v2245 = vadd.f32 %v2152, %v2244
        %v2246 = vpop.f32.mrb[0].mxu0
        %v2247 = vpop.f32.mrb[0].mxu0
        %v2248 = vadd.f32 %v2152, %v2247
        %v2249 = vpop.f32.mrb[0].mxu0
        %2250 = vmatprep.mubr.bf16.mxu0 0
        %2251 = vmatmul.mubr.bf16.gmra.mrb[0].mxu0 %v2117
        %v2252 = vpop.f32.mrb[0].mxu0
        %v2253 = vadd.f32 %v2152, %v2252
        %v2254 = vpop.f32.mrb[0].mxu0
        %v2255 = vpop.f32.mrb[0].mxu0
        %v2256 = vadd.f32 %v2152, %v2255
        %v2257 = vpop.f32.mrb[0].mxu0
        %2258 = vmatprep.mubr.bf16.mxu0 0
        %2259 = vmatmul.mubr.bf16.gmra.mrb[0].mxu0 %v2118
        %v2260 = vpop.f32.mrb[0].mxu0
        %v2261 = vadd.f32 %v2152, %v2260
        %v2262 = vpop.f32.mrb[0].mxu0
        %v2263 = vpop.f32.mrb[0].mxu0
        %v2264 = vadd.f32 %v2152, %v2263
        %v2265 = vpop.f32.mrb[0].mxu0
        %2266 = vmatprep.mubr.bf16.mxu0 0
        %2267 = vmatmul.mubr.bf16.gmra.mrb[0].mxu0 %v2119
        %v2268 = vpop.f32.mrb[0].mxu0
        %v2269 = vadd.f32 %v2152, %v2268
        %v2270 = vpop.f32.mrb[0].mxu0
        %v2271 = vpop.f32.mrb[0].mxu0
        %v2272 = vadd.f32 %v2152, %v2271
        %v2273 = vpop.f32.mrb[0].mxu0
        %2274 = vmatprep.mubr.bf16.mxu0 0
        %2275 = vmatmul.mubr.bf16.gmra.mrb[0].mxu0 %v2120
        %v2276 = vpop.f32.mrb[0].mxu0
        %v2277 = vadd.f32 %v2152, %v2276
        %v2278 = vpop.f32.mrb[0].mxu0
        %v2279 = vpop.f32.mrb[0].mxu0
        %v2280 = vadd.f32 %v2152, %v2279
        %v2281 = vpop.f32.mrb[0].mxu0
        %2282 = vmatprep.mubr.bf16.mxu0 0
        %2283 = vmatmul.mubr.bf16.gmra.mrb[0].mxu0 %v2121
        %v2284 = vpop.f32.mrb[0].mxu0
        %v2285 = vadd.f32 %v2152, %v2284
        %v2286 = vpop.f32.mrb[0].mxu0
        %v2287 = vpop.f32.mrb[0].mxu0
        %v2288 = vadd.f32 %v2152, %v2287
        %v2289 = vpop.f32.mrb[0].mxu0
        %2290 = vmatprep.mubr.bf16.mxu0 0
        %2291 = vmatmul.mubr.bf16.gmra.mrb[0].mxu0 %v2122
        %v2292 = vpop.f32.mrb[0].mxu0
        %v2293 = vadd.f32 %v2152, %v2292
        %v2294 = vpop.f32.mrb[0].mxu0
        %v2295 = vpop.f32.mrb[0].mxu0
        %v2296 = vadd.f32 %v2152, %v2295
        %v2297 = vpop.f32.mrb[0].mxu0
        %2298 = vmatprep.mubr.bf16.mxu0 0
        %2299 = vmatmul.mubr.bf16.gmra.mrb[0].mxu0 %v2123
        %v2300 = vpop.f32.mrb[0].mxu0
        %v2301 = vadd.f32 %v2152, %v2300
        %v2302 = vpop.f32.mrb[0].mxu0
        %v2303 = vpop.f32.mrb[0].mxu0
        %v2304 = vadd.f32 %v2152, %v2303
        %v2305 = vpop.f32.mrb[0].mxu0
        %2306 = vmatprep.mubr.bf16.mxu0 0
        %2307 = vmatmul.mubr.bf16.gmra.mrb[0].mxu0 %v2124
        %v2308 = vpop.f32.mrb[0].mxu0
        %v2309 = vadd.f32 %v2152, %v2308
        %v2310 = vpop.f32.mrb[0].mxu0
        %v2311 = vpop.f32.mrb[0].mxu0
        %v2312 = vadd.f32 %v2152, %v2311
        %v2313 = vpop.f32.mrb[0].mxu0
        %2314 = vmatprep.mubr.bf16.mxu0 0
        %2315 = vmatmul.mubr.bf16.gmra.mrb[0].mxu0 %v2125
        %v2316 = vpop.f32.mrb[0].mxu0
        %v2317 = vadd.f32 %v2152, %v2316
        %v2318 = vpop.f32.mrb[0].mxu0
        %v2319 = vpop.f32.mrb[0].mxu0
        %v2320 = vadd.f32 %v2152, %v2319
        %v2321 = vpop.f32.mrb[0].mxu0
        %2322 = vmatprep.mubr.bf16.mxu0 0
        %2323 = vmatmul.mubr.bf16.gmra.mrb[0].mxu0 %v2126
        %v2324 = vpop.f32.mrb[0].mxu0
        %v2325 = vadd.f32 %v2152, %v2324
        %v2326 = vpop.f32.mrb[0].mxu0
        %v2327 = vpop.f32.mrb[0].mxu0
        %v2328 = vadd.f32 %v2152, %v2327
        %v2329 = vpop.f32.mrb[0].mxu0
        %2330 = vmatprep.mubr.bf16.mxu0 0
        %2331 = vmatmul.mubr.bf16.gmra.mrb[0].mxu0 %v2127
        %v2332 = vpop.f32.mrb[0].mxu0
        %v2333 = vadd.f32 %v2152, %v2332
        %v2334 = vpop.f32.mrb[0].mxu0
        %v2335 = vpop.f32.mrb[0].mxu0
        %v2336 = vadd.f32 %v2152, %v2335
        %v2337 = vpop.f32.mrb[0].mxu0
        %2338 = vmatprep.mubr.bf16.mxu0 0
        %2339 = vmatmul.mubr.bf16.gmra.mrb[0].mxu0 %v2128
        %v2340 = vpop.f32.mrb[0].mxu0
        %v2341 = vadd.f32 %v2152, %v2340
        %v2342 = vpop.f32.mrb[0].mxu0
        %v2343 = vpop.f32.mrb[0].mxu0
        %v2344 = vadd.f32 %v2152, %v2343
        %v2345 = vpop.f32.mrb[0].mxu0
        %2346 = vmatprep.mubr.bf16.mxu0 0
        %2347 = vmatmul.mubr.bf16.gmra.mrb[0].mxu0 %v2129
        %v2348 = vpop.f32.mrb[0].mxu0
        %v2349 = vadd.f32 %v2152, %v2348
        %v2350 = vpop.f32.mrb[0].mxu0
        %v2351 = vpop.f32.mrb[0].mxu0
        %v2352 = vadd.f32 %v2152, %v2351
        %v2353 = vpop.f32.mrb[0].mxu0
        %2354 = vmatprep.mubr.bf16.mxu0 0
        %2355 = vmatmul.mubr.bf16.gmra.mrb[0].mxu0 %v2130
        %v2356 = vpop.f32.mrb[0].mxu0
        %v2357 = vadd.f32 %v2152, %v2356
        %v2358 = vpop.f32.mrb[0].mxu0
        %v2359 = vpop.f32.mrb[0].mxu0
        %v2360 = vadd.f32 %v2152, %v2359
        %v2361 = vpop.f32.mrb[0].mxu0
        %2362 = vdwg.mxu0
        %2363 = vst [vmem:[%s476] sm:$0xff] %v2237
        %2364 = vst [vmem:[%s476 + $0x8] sm:$0xff] %v2240
        %2365 = vst [vmem:[%s476 + $0x10] sm:$0xff] %v2245
        %2366 = vst [vmem:[%s476 + $0x18] sm:$0xff] %v2248
        %2367 = vst [vmem:[%s476 + $0x20] sm:$0xff] %v2253
        %2368 = vst [vmem:[%s476 + $0x28] sm:$0xff] %v2256
        %2369 = vst [vmem:[%s476 + $0x30] sm:$0xff] %v2261
        %2370 = vst [vmem:[%s476 + $0x38] sm:$0xff] %v2264
        %2371 = vst [vmem:[%s476 + $0x40] sm:$0xff] %v2269
        %2372 = vst [vmem:[%s476 + $0x48] sm:$0xff] %v2272
        %2373 = vst [vmem:[%s476 + $0x50] sm:$0xff] %v2277
        %2374 = vst [vmem:[%s476 + $0x58] sm:$0xff] %v2280
        %2375 = vst [vmem:[%s476 + $0x60] sm:$0xff] %v2285
        %2376 = vst [vmem:[%s476 + $0x68] sm:$0xff] %v2288
        %2377 = vst [vmem:[%s476 + $0x70] sm:$0xff] %v2293
        %2378 = vst [vmem:[%s476 + $0x78] sm:$0xff] %v2296
        %2379 = vst [vmem:[%s476 + $0x80] sm:$0xff] %v2301
        %2380 = vst [vmem:[%s476 + $0x88] sm:$0xff] %v2304
        %2381 = vst [vmem:[%s476 + $0x90] sm:$0xff] %v2309
        %2382 = vst [vmem:[%s476 + $0x98] sm:$0xff] %v2312
        %2383 = vst [vmem:[%s476 + $0xa0] sm:$0xff] %v2317
        %2384 = vst [vmem:[%s476 + $0xa8] sm:$0xff] %v2320
        %2385 = vst [vmem:[%s476 + $0xb0] sm:$0xff] %v2325
        %2386 = vst [vmem:[%s476 + $0xb8] sm:$0xff] %v2328
        %2387 = vst [vmem:[%s476 + $0xc0] sm:$0xff] %v2333
        %2388 = vst [vmem:[%s476 + $0xc8] sm:$0xff] %v2336
        %2389 = vst [vmem:[%s476 + $0xd0] sm:$0xff] %v2341
        %2390 = vst [vmem:[%s476 + $0xd8] sm:$0xff] %v2344
        %2391 = vst [vmem:[%s476 + $0xe0] sm:$0xff] %v2349
        %2392 = vst [vmem:[%s476 + $0xe8] sm:$0xff] %v2352
        %2393 = vst [vmem:[%s476 + $0xf0] sm:$0xff] %v2357
        %2394 = vst [vmem:[%s476 + $0xf8] sm:$0xff] %v2360
        %s2395 = sand.u32 %s260, 1
        %s2396 = scalar_lea.sflag [#allocation4], %s2395
        %s2397 = sand.u32 %s260, 1
        %s2398 = smul.addr %s2397, 256
        %s2399 = scalar_lea.vmem [#allocation13], %s2398
        // Predicated region
        $region85: #{tpu_custom_call.1} parent=59 // pred_check
          %p2400 = pneg %p270
        $region86: #{tpu_custom_call.1} parent=59 // pred_check_branch
          %2402 = sbr.rel (%p2400) target = $region88
        $region87: #{tpu_custom_call.1} parent=59 // pred_region
          %s2403 = smul.u32 32, %s32
          %s2405 = ssub.s32 4096, 4096
          %2406 = vsyncadd %s2396, %s2405
          %s2407 = smul.addr %s2403, 128
          %s2408 = scalar_lea.hbm %s10, %s2407
          %s2409 = sshll.u32 %s2399, 4
          %s2410 = int_to_ptr.vmem [resolvable:$true] %s2409
          %2415 = dma.vmem_to_hbm [thread:$0]  %s2410, 4096, %s2408, %s2396, 128, 128, 8
        $region88: #{tpu_custom_call.1} parent=59 // pred_fallthru
          _
      $region60: #{tpu_custom_call.1} parent=5 // pred_fallthru
        _
      %p2416 = scmp.le.s32.totalorder 2, %s27
      // Predicated region
      $region89: #{tpu_custom_call.1} parent=5 // pred_check
        %p2417 = pneg %p2416
      $region90: #{tpu_custom_call.1} parent=5 // pred_check_branch
        %2419 = sbr.rel (%p2417) target = $region92
      $region91: #{tpu_custom_call.1} parent=5 // pred_region
        %s2420 = ssub.s32 %s27, 2
        // Predicated region
        $region93: #{tpu_custom_call.1} parent=91 // pred_check
          %p2421 = pneg %p276
        $region94: #{tpu_custom_call.1} parent=91 // pred_check_branch
          %2423 = sbr.rel (%p2421) target = $region96
        $region95: #{tpu_custom_call.1} parent=91 // pred_region
          %s2424 = sand.u32 %s261, 1
          %s2425 = scalar_lea.sflag [#allocation4], %s2424
          %s2426 = sand.u32 %s261, 1
          %s2427 = smul.addr %s2426, 256
          %s2428 = scalar_lea.vmem [#allocation13], %s2427
          %2429 = dma.done %s2425, 4096
        $region96: #{tpu_custom_call.1} parent=91 // pred_fallthru
          _
      $region92: #{tpu_custom_call.1} parent=5 // pred_fallthru
        _
    $region6: #{tpu_custom_call.1} parent=1 // loop_footer
      %s31 = sadd.s32 1, %s27
    $region7: #{tpu_custom_call.1} parent=1 // loop_footer_branch
      %26 = sbr.rel target = $region3
    $region8: #{tpu_custom_call.1} parent=1 // loop_exit
      _
    %2430 = vsyncpa [#allocation3], 1
    %s2431 = scalar_lea.sflag [#allocation3], 1
    %2432 = vsyncpa %s2431, 1
    %2433 = vsyncpa [#allocation6], 1
    %s2434 = scalar_lea.sflag [#allocation6], 1
    %2435 = vsyncpa %s2434, 1
    %2436 = vsyncpa [#allocation9], 1
    %2437 = vsyncpa [#allocation12], 1
    %2438 = vsyncpa [#allocation4], 1
    %s2439 = scalar_lea.sflag [#allocation4], 1
    %2440 = vsyncpa %s2439, 1

// kernel: tpu_custom_call.1
$region0: #{tpu_custom_call.1}
  #allocation0 [shape = 'u32[]', space=smem, size = 0x4, offset = 0x4, fixed_abs, tag = 'smem constant byte address 0x4 - core index']
  #allocation1 [shape = 'u32[144,128]{1,0:T(1,128)}', space=vmem, size = 0x12000, scoped, tag = 'internal scratch']
  %s0 = inlined_call_operand.hbm [shape: bf16[512,128], index: 0, kind: input, shape index: {}]
  %s1 = inlined_call_operand.hbm [shape: bf16[512,256], index: 1, kind: input, shape index: {}]
  %s2 = inlined_call_operand.hbm [shape: bf16[128,256], index: 2, kind: input, shape index: {}]
  %s3 = inlined_call_operand.vmem [shape: f32[1,256], index: 3, kind: input, shape index: {}]
  %s4 = inlined_call_operand.hbm [shape: bf16[256,256], index: 4, kind: input, shape index: {}]
  %s5 = inlined_call_operand.vmem [shape: f32[1,256], index: 5, kind: input, shape index: {}]
  %s6 = inlined_call_operand.hbm [shape: bf16[256,128], index: 6, kind: input, shape index: {}]
  %s7 = inlined_call_operand.vmem [shape: f32[1,128], index: 7, kind: input, shape index: {}]
  %s8 = inlined_call_operand.hbm [shape: bf16[128,128], index: 8, kind: input, shape index: {}]
  %s9 = inlined_call_operand.vmem [shape: f32[1,128], index: 9, kind: input, shape index: {}]
  %s10 = inlined_call_operand.hbm [shape: f32[512,128], index: 10, kind: output, shape index: {}]
  %s11 = sld [smem:[#allocation0]]
  $region97: #{tpu_custom_call.1} parent=0
    _
  %s13 = ssub.s32 1, %s11
  %s14 = scalar_select 0, %s13, %s11
  $region1: #{tpu_custom_call.1} parent=0
    #allocation2 [shape = 'u8[131072]{0}', space=vmem, size = 0x20000, scoped, tag = 'input window, operand 0']
    #allocation3 [shape = 's32[2]{0}', space=sflag, size = 0x8, scoped, tag = 'scoped memory for tpu_custom_call.1']
    #allocation4 [shape = 's32[2]{0}', space=sflag, size = 0x8, scoped, tag = 'scoped memory for tpu_custom_call.1']
    #allocation5 [shape = 'u8[262144]{0}', space=vmem, size = 0x40000, scoped, tag = 'input window, operand 1']
    #allocation6 [shape = 's32[2]{0}', space=sflag, size = 0x8, scoped, tag = 'scoped memory for tpu_custom_call.1']
    #allocation7 [shape = 'u8[65536]{0}', space=vmem, size = 0x10000, scoped, tag = 'input window, operand 2, single buffered']
    #allocation8 [shape = 'u8[131072]{0}', space=vmem, size = 0x20000, scoped, tag = 'input window, operand 4, single buffered']
    #allocation9 [shape = 's32[1]{0}', space=sflag, size = 0x4, scoped, tag = 'scoped memory for tpu_custom_call.1']
    #allocation10 [shape = 'u8[65536]{0}', space=vmem, size = 0x10000, scoped, tag = 'input window, operand 6, single buffered']
    #allocation11 [shape = 'u8[32768]{0}', space=vmem, size = 0x8000, scoped, tag = 'input window, operand 8, single buffered']
    #allocation12 [shape = 's32[1]{0}', space=sflag, size = 0x4, scoped, tag = 'scoped memory for tpu_custom_call.1']
    #allocation13 [shape = 'u8[262144]{0}', space=vmem, size = 0x40000, scoped, tag = 'output window, operand 0']
    %15 = vsyncpa [#allocation3], 0
    %s16 = scalar_lea.sflag [#allocation3], 1
    %17 = vsyncpa %s16, 0
    %18 = vsyncpa [#allocation6], 0
    %s19 = scalar_lea.sflag [#allocation6], 1
    %20 = vsyncpa %s19, 0
    %21 = vsyncpa [#allocation9], 0
    %22 = vsyncpa [#allocation12], 0
    %23 = vsyncpa [#allocation4], 0
    %s24 = scalar_lea.sflag [#allocation4], 1
    %25 = vsyncpa %s24, 0
    loop: start=0, step=1, limit=4
    $region2: #{tpu_custom_call.1} parent=1 // loop_pre_header
      _
    $region3: #{tpu_custom_call.1} parent=1 // loop_header
      %s27 = sphi 0, %s31
      %p28 = scmp.ge.s32.totalorder %s27, 4
      %s37 = sphi 0, %s39
      %s40 = sphi 0, %s37
      %s41 = sphi 0, %s40
      %s57 = sphi 0, %s41
      %s63 = sphi 0, %s65
      %s66 = sphi 0, %s63
      %s67 = sphi 0, %s66
      %s83 = sphi 0, %s67
      %s87 = sphi 0, %s87
      %s89 = sphi 0, %s87
      %s90 = sphi 0, %s89
      %s104 = sphi 0, %s90
      %s108 = sphi 0, %s108
      %s110 = sphi 0, %s108
      %s111 = sphi 0, %s110
      %s125 = sphi 0, %s111
      %s129 = sphi 0, %s129
      %s131 = sphi 0, %s129
      %s132 = sphi 0, %s131
      %s146 = sphi 0, %s132
      %s150 = sphi 0, %s150
      %s152 = sphi 0, %s150
      %s153 = sphi 0, %s152
      %s167 = sphi 0, %s153
      %s171 = sphi 0, %s171
      %s173 = sphi 0, %s171
      %s174 = sphi 0, %s173
      %s188 = sphi 0, %s174
      %s192 = sphi 0, %s192
      %s194 = sphi 0, %s192
      %s195 = sphi 0, %s194
      %s209 = sphi 0, %s195
      %s213 = sphi 0, %s213
      %s215 = sphi 0, %s213
      %s216 = sphi 0, %s215
      %s230 = sphi 0, %s216
      %s234 = sphi 0, %s234
      %s236 = sphi 0, %s234
      %s237 = sphi 0, %s236
      %s251 = sphi 0, %s237
      %s257 = sphi 0, %s259
      %s260 = sphi 0, %s257
      %s261 = sphi 0, %s260
      %s277 = sphi 0, %s261
    $region4: #{tpu_custom_call.1} parent=1 // loop_header_branch
      %30 = sbr.rel (%p28) target = $region8
    $region5: #{tpu_custom_call.1} parent=1 // loop_body
      %s32 = ssub.s32 %s27, 1
      %s33 = ssub.s32 %s27, 2
      %s34 = sadd.s32 %s27, 1
      %s35 = ssub.s32 %s27, %s34
      %p36 = scmp.eq.s32.totalorder %s35, 0
      %s38 = sadd.s32 %s37, 1
      %s39 = scalar_select %p36, %s37, %s38
      %p42 = pneg %p36
      %p43 = scmp.eq.s32.totalorder %s27, 1
      %p44 = por %p42, %p43
      %p45 = scmp.ne.s32.totalorder %s37, %s40
      %p46 = scmp.eq.s32.totalorder %s27, 0
      %p47 = por %p45, %p46
      %p48 = scmp.ne.s32.totalorder %s37, %s40
      %p49 = scmp.eq.s32.totalorder %s32, 1
      %p50 = por %p48, %p49
      %p51 = scmp.ne.s32.totalorder %s40, %s41
      %p52 = scmp.eq.s32.totalorder %s32, 0
      %p53 = por %p51, %p52
      %p54 = scmp.ne.s32.totalorder %s40, %s41
      %p55 = scmp.eq.s32.totalorder %s33, 1
      %p56 = por %p54, %p55
      %p58 = scmp.ne.s32.totalorder %s41, %s57
      %p59 = scmp.eq.s32.totalorder %s33, 0
      %p60 = por %p58, %p59
      %s61 = ssub.s32 %s27, %s34
      %p62 = scmp.eq.s32.totalorder %s61, 0
      %s64 = sadd.s32 %s63, 1
      %s65 = scalar_select %p62, %s63, %s64
      %p68 = pneg %p62
      %p69 = scmp.eq.s32.totalorder %s27, 1
      %p70 = por %p68, %p69
      %p71 = scmp.ne.s32.totalorder %s63, %s66
      %p72 = scmp.eq.s32.totalorder %s27, 0
      %p73 = por %p71, %p72
      %p74 = scmp.ne.s32.totalorder %s63, %s66
      %p75 = scmp.eq.s32.totalorder %s32, 1
      %p76 = por %p74, %p75
      %p77 = scmp.ne.s32.totalorder %s66, %s67
      %p78 = scmp.eq.s32.totalorder %s32, 0
      %p79 = por %p77, %p78
      %p80 = scmp.ne.s32.totalorder %s66, %s67
      %p81 = scmp.eq.s32.totalorder %s33, 1
      %p82 = por %p80, %p81
      %p84 = scmp.ne.s32.totalorder %s67, %s83
      %p85 = scmp.eq.s32.totalorder %s33, 0
      %p86 = por %p84, %p85
      %s88 = sadd.s32 %s87, 1
      %p91 = scmp.eq.s32.totalorder %s27, 1
      %p92 = scmp.ne.s32.totalorder %s87, %s89
      %p93 = scmp.eq.s32.totalorder %s27, 0
      %p94 = por %p92, %p93
      %p95 = scmp.ne.s32.totalorder %s87, %s89
      %p96 = scmp.eq.s32.totalorder %s32, 1
      %p97 = por %p95, %p96
      %p98 = scmp.ne.s32.totalorder %s89, %s90
      %p99 = scmp.eq.s32.totalorder %s32, 0
      %p100 = por %p98, %p99
      %p101 = scmp.ne.s32.totalorder %s89, %s90
      %p102 = scmp.eq.s32.totalorder %s33, 1
      %p103 = por %p101, %p102
      %p105 = scmp.ne.s32.totalorder %s90, %s104
      %p106 = scmp.eq.s32.totalorder %s33, 0
      %p107 = por %p105, %p106
      %s109 = sadd.s32 %s108, 1
      %p112 = scmp.eq.s32.totalorder %s27, 1
      %p113 = scmp.ne.s32.totalorder %s108, %s110
      %p114 = scmp.eq.s32.totalorder %s27, 0
      %p115 = por %p113, %p114
      %p116 = scmp.ne.s32.totalorder %s108, %s110
      %p117 = scmp.eq.s32.totalorder %s32, 1
      %p118 = por %p116, %p117
      %p119 = scmp.ne.s32.totalorder %s110, %s111
      %p120 = scmp.eq.s32.totalorder %s32, 0
      %p121 = por %p119, %p120
      %p122 = scmp.ne.s32.totalorder %s110, %s111
      %p123 = scmp.eq.s32.totalorder %s33, 1
      %p124 = por %p122, %p123
      %p126 = scmp.ne.s32.totalorder %s111, %s125
      %p127 = scmp.eq.s32.totalorder %s33, 0
      %p128 = por %p126, %p127
      %s130 = sadd.s32 %s129, 1
      %p133 = scmp.eq.s32.totalorder %s27, 1
      %p134 = scmp.ne.s32.totalorder %s129, %s131
      %p135 = scmp.eq.s32.totalorder %s27, 0
      %p136 = por %p134, %p135
      %p137 = scmp.ne.s32.totalorder %s129, %s131
      %p138 = scmp.eq.s32.totalorder %s32, 1
      %p139 = por %p137, %p138
      %p140 = scmp.ne.s32.totalorder %s131, %s132
      %p141 = scmp.eq.s32.totalorder %s32, 0
      %p142 = por %p140, %p141
      %p143 = scmp.ne.s32.totalorder %s131, %s132
      %p144 = scmp.eq.s32.totalorder %s33, 1
      %p145 = por %p143, %p144
      %p147 = scmp.ne.s32.totalorder %s132, %s146
      %p148 = scmp.eq.s32.totalorder %s33, 0
      %p149 = por %p147, %p148
      %s151 = sadd.s32 %s150, 1
      %p154 = scmp.eq.s32.totalorder %s27, 1
      %p155 = scmp.ne.s32.totalorder %s150, %s152
      %p156 = scmp.eq.s32.totalorder %s27, 0
      %p157 = por %p155, %p156
      %p158 = scmp.ne.s32.totalorder %s150, %s152
      %p159 = scmp.eq.s32.totalorder %s32, 1
      %p160 = por %p158, %p159
      %p161 = scmp.ne.s32.totalorder %s152, %s153
      %p162 = scmp.eq.s32.totalorder %s32, 0
      %p163 = por %p161, %p162
      %p164 = scmp.ne.s32.totalorder %s152, %s153
      %p165 = scmp.eq.s32.totalorder %s33, 1
      %p166 = por %p164, %p165
      %p168 = scmp.ne.s32.totalorder %s153, %s167
      %p169 = scmp.eq.s32.totalorder %s33, 0
      %p170 = por %p168, %p169
      %s172 = sadd.s32 %s171, 1
      %p175 = scmp.eq.s32.totalorder %s27, 1
      %p176 = scmp.ne.s32.totalorder %s171, %s173
      %p177 = scmp.eq.s32.totalorder %s27, 0
      %p178 = por %p176, %p177
      %p179 = scmp.ne.s32.totalorder %s171, %s173
      %p180 = scmp.eq.s32.totalorder %s32, 1
      %p181 = por %p179, %p180
      %p182 = scmp.ne.s32.totalorder %s173, %s174
      %p183 = scmp.eq.s32.totalorder %s32, 0
      %p184 = por %p182, %p183
      %p185 = scmp.ne.s32.totalorder %s173, %s174
      %p186 = scmp.eq.s32.totalorder %s33, 1
      %p187 = por %p185, %p186
      %p189 = scmp.ne.s32.totalorder %s174, %s188
      %p190 = scmp.eq.s32.totalorder %s33, 0
      %p191 = por %p189, %p190
      %s193 = sadd.s32 %s192, 1
      %p196 = scmp.eq.s32.totalorder %s27, 1
      %p197 = scmp.ne.s32.totalorder %s192, %s194
      %p198 = scmp.eq.s32.totalorder %s27, 0
      %p199 = por %p197, %p198
      %p200 = scmp.ne.s32.totalorder %s192, %s194
      %p201 = scmp.eq.s32.totalorder %s32, 1
      %p202 = por %p200, %p201
      %p203 = scmp.ne.s32.totalorder %s194, %s195
      %p204 = scmp.eq.s32.totalorder %s32, 0
      %p205 = por %p203, %p204
      %p206 = scmp.ne.s32.totalorder %s194, %s195
      %p207 = scmp.eq.s32.totalorder %s33, 1
      %p208 = por %p206, %p207
      %p210 = scmp.ne.s32.totalorder %s195, %s209
      %p211 = scmp.eq.s32.totalorder %s33, 0
      %p212 = por %p210, %p211
      %s214 = sadd.s32 %s213, 1
      %p217 = scmp.eq.s32.totalorder %s27, 1
      %p218 = scmp.ne.s32.totalorder %s213, %s215
      %p219 = scmp.eq.s32.totalorder %s27, 0
      %p220 = por %p218, %p219
      %p221 = scmp.ne.s32.totalorder %s213, %s215
      %p222 = scmp.eq.s32.totalorder %s32, 1
      %p223 = por %p221, %p222
      %p224 = scmp.ne.s32.totalorder %s215, %s216
      %p225 = scmp.eq.s32.totalorder %s32, 0
      %p226 = por %p224, %p225
      %p227 = scmp.ne.s32.totalorder %s215, %s216
      %p228 = scmp.eq.s32.totalorder %s33, 1
      %p229 = por %p227, %p228
      %p231 = scmp.ne.s32.totalorder %s216, %s230
      %p232 = scmp.eq.s32.totalorder %s33, 0
      %p233 = por %p231, %p232
      %s235 = sadd.s32 %s234, 1
      %p238 = scmp.eq.s32.totalorder %s27, 1
      %p239 = scmp.ne.s32.totalorder %s234, %s236
      %p240 = scmp.eq.s32.totalorder %s27, 0
      %p241 = por %p239, %p240
      %p242 = scmp.ne.s32.totalorder %s234, %s236
      %p243 = scmp.eq.s32.totalorder %s32, 1
      %p244 = por %p242, %p243
      %p245 = scmp.ne.s32.totalorder %s236, %s237
      %p246 = scmp.eq.s32.totalorder %s32, 0
      %p247 = por %p245, %p246
      %p248 = scmp.ne.s32.totalorder %s236, %s237
      %p249 = scmp.eq.s32.totalorder %s33, 1
      %p250 = por %p248, %p249
      %p252 = scmp.ne.s32.totalorder %s237, %s251
      %p253 = scmp.eq.s32.totalorder %s33, 0
      %p254 = por %p252, %p253
      %s255 = ssub.s32 %s27, %s34
      %p256 = scmp.eq.s32.totalorder %s255, 0
      %s258 = sadd.s32 %s257, 1
      %s259 = scalar_select %p256, %s257, %s258
      %p262 = pneg %p256
      %p263 = scmp.eq.s32.totalorder %s27, 1
      %p264 = por %p262, %p263
      %p265 = scmp.ne.s32.totalorder %s257, %s260
      %p266 = scmp.eq.s32.totalorder %s27, 0
      %p267 = por %p265, %p266
      %p268 = scmp.ne.s32.totalorder %s257, %s260
      %p269 = scmp.eq.s32.totalorder %s32, 1
      %p270 = por %p268, %p269
      %p271 = scmp.ne.s32.totalorder %s260, %s261
      %p272 = scmp.eq.s32.totalorder %s32, 0
      %p273 = por %p271, %p272
      %p274 = scmp.ne.s32.totalorder %s260, %s261
      %p275 = scmp.eq.s32.totalorder %s33, 1
      %p276 = por %p274, %p275
      %p278 = scmp.ne.s32.totalorder %s261, %s277
      %p279 = scmp.eq.s32.totalorder %s33, 0
      %p280 = por %p278, %p279
      %p281 = scmp.le.s32.totalorder 1, %s27
      %p282 = scmp.lt.s32.totalorder %s27, 3
      %p283 = pnand %p281, %p282
      %p284 = pneg %p283
      // Predicated region
      $region9: #{tpu_custom_call.1} parent=5 // pred_check
        _
      $region10: #{tpu_custom_call.1} parent=5 // pred_check_branch
        %286 = sbr.rel (%p283) target = $region12
      $region11: #{tpu_custom_call.1} parent=5 // pred_region
        %s287 = ssub.s32 %s27, 1
        // Predicated region
        $region13: #{tpu_custom_call.1} parent=11 // pred_check
          %p288 = pneg %p100
        $region14: #{tpu_custom_call.1} parent=11 // pred_check_branch
          %290 = sbr.rel (%p288) target = $region16
        $region15: #{tpu_custom_call.1} parent=11 // pred_region
          %s292 = ssub.s32 2048, 2048
          %293 = vsyncadd [#allocation6], %s292
          %s294 = sshll.u32 [#allocation7], 4
          %s295 = int_to_ptr.vmem [resolvable:$true] %s294
          %300 = dma.hbm_to_vmem [thread:$0]  %s2, 2048, %s295, [#allocation6], 128, 128, 8
        $region16: #{tpu_custom_call.1} parent=11 // pred_fallthru
          _
        // Predicated region
        $region17: #{tpu_custom_call.1} parent=11 // pred_check
          %p301 = pneg %p121
        $region18: #{tpu_custom_call.1} parent=11 // pred_check_branch
          %303 = sbr.rel (%p301) target = $region20
        $region19: #{tpu_custom_call.1} parent=11 // pred_region
          _
        $region20: #{tpu_custom_call.1} parent=11 // pred_fallthru
          _
        // Predicated region
        $region21: #{tpu_custom_call.1} parent=11 // pred_check
          %p304 = pneg %p142
        $region22: #{tpu_custom_call.1} parent=11 // pred_check_branch
          %306 = sbr.rel (%p304) target = $region24
        $region23: #{tpu_custom_call.1} parent=11 // pred_region
          %s308 = ssub.s32 4096, 4096
          %309 = vsyncadd [#allocation9], %s308
          %s310 = sshll.u32 [#allocation8], 4
          %s311 = int_to_ptr.vmem [resolvable:$true] %s310
          %316 = dma.hbm_to_vmem [thread:$0]  %s4, 4096, %s311, [#allocation9], 128, 128, 8
        $region24: #{tpu_custom_call.1} parent=11 // pred_fallthru
          _
        // Predicated region
        $region25: #{tpu_custom_call.1} parent=11 // pred_check
          %p317 = pneg %p163
        $region26: #{tpu_custom_call.1} parent=11 // pred_check_branch
          %319 = sbr.rel (%p317) target = $region28
        $region27: #{tpu_custom_call.1} parent=11 // pred_region
          _
        $region28: #{tpu_custom_call.1} parent=11 // pred_fallthru
          _
        // Predicated region
        $region29: #{tpu_custom_call.1} parent=11 // pred_check
          %p320 = pneg %p184
        $region30: #{tpu_custom_call.1} parent=11 // pred_check_branch
          %322 = sbr.rel (%p320) target = $region32
        $region31: #{tpu_custom_call.1} parent=11 // pred_region
          %s324 = ssub.s32 2048, 2048
          %325 = vsyncadd [#allocation9], %s324
          %s326 = sshll.u32 [#allocation10], 4
          %s327 = int_to_ptr.vmem [resolvable:$true] %s326
          %332 = dma.hbm_to_vmem [thread:$0]  %s6, 2048, %s327, [#allocation9], 64, 64, 4
        $region32: #{tpu_custom_call.1} parent=11 // pred_fallthru
          _
        // Predicated region
        $region33: #{tpu_custom_call.1} parent=11 // pred_check
          %p333 = pneg %p205
        $region34: #{tpu_custom_call.1} parent=11 // pred_check_branch
          %335 = sbr.rel (%p333) target = $region36
        $region35: #{tpu_custom_call.1} parent=11 // pred_region
          _
        $region36: #{tpu_custom_call.1} parent=11 // pred_fallthru
          _
        // Predicated region
        $region37: #{tpu_custom_call.1} parent=11 // pred_check
          %p336 = pneg %p226
        $region38: #{tpu_custom_call.1} parent=11 // pred_check_branch
          %338 = sbr.rel (%p336) target = $region40
        $region39: #{tpu_custom_call.1} parent=11 // pred_region
          %s340 = ssub.s32 1024, 1024
          %341 = vsyncadd [#allocation12], %s340
          %s342 = sshll.u32 [#allocation11], 4
          %s343 = int_to_ptr.vmem [resolvable:$true] %s342
          %348 = dma.hbm_to_vmem [thread:$0]  %s8, 1024, %s343, [#allocation12], 64, 64, 4
        $region40: #{tpu_custom_call.1} parent=11 // pred_fallthru
          _
        // Predicated region
        $region41: #{tpu_custom_call.1} parent=11 // pred_check
          %p349 = pneg %p247
        $region42: #{tpu_custom_call.1} parent=11 // pred_check_branch
          %351 = sbr.rel (%p349) target = $region44
        $region43: #{tpu_custom_call.1} parent=11 // pred_region
          _
        $region44: #{tpu_custom_call.1} parent=11 // pred_fallthru
          _
      $region12: #{tpu_custom_call.1} parent=5 // pred_fallthru
        _
      %p352 = scmp.lt.s32.totalorder %s27, 2
      // Predicated region
      $region45: #{tpu_custom_call.1} parent=5 // pred_check
        %p353 = pneg %p352
      $region46: #{tpu_custom_call.1} parent=5 // pred_check_branch
        %355 = sbr.rel (%p353) target = $region48
      $region47: #{tpu_custom_call.1} parent=5 // pred_region
        // Predicated region
        $region49: #{tpu_custom_call.1} parent=47 // pred_check
          %p356 = pneg %p47
        $region50: #{tpu_custom_call.1} parent=47 // pred_check_branch
          %358 = sbr.rel (%p356) target = $region52
        $region51: #{tpu_custom_call.1} parent=47 // pred_region
          %s359 = sand.u32 %s37, 1
          %s360 = scalar_lea.sflag [#allocation3], %s359
          %s361 = sand.u32 %s37, 1
          %s362 = smul.addr %s361, 128
          %s363 = scalar_lea.vmem [#allocation2], %s362
          %s364 = smul.u32 32, %s27
          %s366 = ssub.s32 2048, 2048
          %367 = vsyncadd %s360, %s366
          %s368 = smul.addr %s364, 64
          %s369 = scalar_lea.hbm %s0, %s368
          %s370 = sshll.u32 %s363, 4
          %s371 = int_to_ptr.vmem [resolvable:$true] %s370
          %376 = dma.hbm_to_vmem [thread:$0]  %s369, 2048, %s371, %s360, 64, 64, 4
        $region52: #{tpu_custom_call.1} parent=47 // pred_fallthru
          _
        // Predicated region
        $region53: #{tpu_custom_call.1} parent=47 // pred_check
          %p377 = pneg %p73
        $region54: #{tpu_custom_call.1} parent=47 // pred_check_branch
          %379 = sbr.rel (%p377) target = $region56
        $region55: #{tpu_custom_call.1} parent=47 // pred_region
          %s380 = sand.u32 %s27, 1
          %s381 = scalar_lea.sflag [#allocation6], %s380
          %s382 = sand.u32 %s63, 1
          %s383 = smul.addr %s382, 256
          %s384 = scalar_lea.vmem [#allocation5], %s383
          %s385 = smul.u32 32, %s27
          %s387 = ssub.s32 4096, 4096
          %388 = vsyncadd %s381, %s387
          %s389 = smul.addr %s385, 2
          %s390 = smul.addr %s389, 64
          %s391 = scalar_lea.hbm %s1, %s390
          %s392 = sshll.u32 %s384, 4
          %s393 = int_to_ptr.vmem [resolvable:$true] %s392
          %398 = dma.hbm_to_vmem [thread:$0]  %s391, 4096, %s393, %s381, 128, 128, 8
        $region56: #{tpu_custom_call.1} parent=47 // pred_fallthru
          _
      $region48: #{tpu_custom_call.1} parent=5 // pred_fallthru
        _
      %p399 = scmp.le.s32.totalorder 1, %s27
      %p400 = scmp.lt.s32.totalorder %s27, 3
      %p401 = pnand %p399, %p400
      %p402 = pneg %p401
      // Predicated region
      $region57: #{tpu_custom_call.1} parent=5 // pred_check
        _
      $region58: #{tpu_custom_call.1} parent=5 // pred_check_branch
        %404 = sbr.rel (%p401) target = $region60
      $region59: #{tpu_custom_call.1} parent=5 // pred_region
        %s405 = ssub.s32 %s27, 1
        %s406 = sand.u32 %s40, 1
        %s407 = scalar_lea.sflag [#allocation3], %s406
        %s408 = sand.u32 %s40, 1
        %s409 = smul.addr %s408, 128
        %s410 = scalar_lea.vmem [#allocation2], %s409
        // Predicated region
        $region61: #{tpu_custom_call.1} parent=59 // pred_check
          %p411 = pneg %p53
        $region62: #{tpu_custom_call.1} parent=59 // pred_check_branch
          %413 = sbr.rel (%p411) target = $region64
        $region63: #{tpu_custom_call.1} parent=59 // pred_region
          %414 = dma.done %s407, 2048
        $region64: #{tpu_custom_call.1} parent=59 // pred_fallthru
          _
        %s415 = sand.u32 %s32, 1
        %s416 = scalar_lea.sflag [#allocation6], %s415
        %s417 = sand.u32 %s66, 1
        %s418 = smul.addr %s417, 256
        %s419 = scalar_lea.vmem [#allocation5], %s418
        // Predicated region
        $region65: #{tpu_custom_call.1} parent=59 // pred_check
          %p420 = pneg %p79
        $region66: #{tpu_custom_call.1} parent=59 // pred_check_branch
          %422 = sbr.rel (%p420) target = $region68
        $region67: #{tpu_custom_call.1} parent=59 // pred_region
          %423 = dma.done %s416, 4096
        $region68: #{tpu_custom_call.1} parent=59 // pred_fallthru
          _
        // Predicated region
        $region69: #{tpu_custom_call.1} parent=59 // pred_check
          %p424 = pneg %p100
        $region70: #{tpu_custom_call.1} parent=59 // pred_check_branch
          %426 = sbr.rel (%p424) target = $region72
        $region71: #{tpu_custom_call.1} parent=59 // pred_region
          %427 = dma.done [#allocation6], 2048
        $region72: #{tpu_custom_call.1} parent=59 // pred_fallthru
          _
        // Predicated region
        $region73: #{tpu_custom_call.1} parent=59 // pred_check
          %p428 = pneg %p142
        $region74: #{tpu_custom_call.1} parent=59 // pred_check_branch
          %430 = sbr.rel (%p428) target = $region76
        $region75: #{tpu_custom_call.1} parent=59 // pred_region
          %431 = dma.done [#allocation9], 4096
        $region76: #{tpu_custom_call.1} parent=59 // pred_fallthru
          _
        // Predicated region
        $region77: #{tpu_custom_call.1} parent=59 // pred_check
          %p432 = pneg %p184
        $region78: #{tpu_custom_call.1} parent=59 // pred_check_branch
          %434 = sbr.rel (%p432) target = $region80
        $region79: #{tpu_custom_call.1} parent=59 // pred_region
          %435 = dma.done [#allocation9], 2048
        $region80: #{tpu_custom_call.1} parent=59 // pred_fallthru
          _
        // Predicated region
        $region81: #{tpu_custom_call.1} parent=59 // pred_check
          %p436 = pneg %p226
        $region82: #{tpu_custom_call.1} parent=59 // pred_check_branch
          %438 = sbr.rel (%p436) target = $region84
        $region83: #{tpu_custom_call.1} parent=59 // pred_region
          %439 = dma.done [#allocation12], 1024
        $region84: #{tpu_custom_call.1} parent=59 // pred_fallthru
          _
        %s440 = sand.u32 %s40, 1
        %s441 = scalar_lea.sflag [#allocation3], %s440
        %s442 = sand.u32 %s40, 1
        %s443 = smul.addr %s442, 128
        %s444 = scalar_lea.vmem [#allocation2], %s443
        %p445 = pneg %p53
        %p446 = pneg %p50
        %s447 = sand.u32 %s32, 1
        %s448 = scalar_lea.sflag [#allocation6], %s447
        %s449 = sand.u32 %s66, 1
        %s450 = smul.addr %s449, 256
        %s451 = scalar_lea.vmem [#allocation5], %s450
        %p452 = pneg %p79
        %p453 = pneg %p76
        %p454 = pneg %p100
        %p455 = pneg %p97
        %p456 = pneg %p121
        %p457 = pneg %p118
        %p458 = pneg %p142
        %p459 = pneg %p139
        %p460 = pneg %p163
        %p461 = pneg %p160
        %p462 = pneg %p184
        %p463 = pneg %p181
        %p464 = pneg %p205
        %p465 = pneg %p202
        %p466 = pneg %p226
        %p467 = pneg %p223
        %p468 = pneg %p247
        %p469 = pneg %p244
        %p470 = pneg %p273
        %p471 = pneg %p270
        %s472 = sand.u32 %s260, 1
        %s473 = scalar_lea.sflag [#allocation4], %s472
        %s474 = sand.u32 %s260, 1
        %s475 = smul.addr %s474, 256
        %s476 = scalar_lea.vmem [#allocation13], %s475
        %s477 = smul.u32 32, %s32
        %s478 = smul.u32 32, %s32
        %s479 = smul.u32 32, %s32
        %v481 = vld [vmem:[%s410] sm:$0xf]
        %v482 = vld [vmem:[%s410 + $0x4] sm:$0xf]
        %v483 = vld [vmem:[%s410 + $0x8] sm:$0xf]
        %v484 = vld [vmem:[%s410 + $0xc] sm:$0xf]
        %v485 = vld [vmem:[%s410 + $0x10] sm:$0xf]
        %v486 = vld [vmem:[%s410 + $0x14] sm:$0xf]
        %v487 = vld [vmem:[%s410 + $0x18] sm:$0xf]
        %v488 = vld [vmem:[%s410 + $0x1c] sm:$0xf]
        %v489 = vld [vmem:[%s410 + $0x20] sm:$0xf]
        %v490 = vld [vmem:[%s410 + $0x24] sm:$0xf]
        %v491 = vld [vmem:[%s410 + $0x28] sm:$0xf]
        %v492 = vld [vmem:[%s410 + $0x2c] sm:$0xf]
        %v493 = vld [vmem:[%s410 + $0x30] sm:$0xf]
        %v494 = vld [vmem:[%s410 + $0x34] sm:$0xf]
        %v495 = vld [vmem:[%s410 + $0x38] sm:$0xf]
        %v496 = vld [vmem:[%s410 + $0x3c] sm:$0xf]
        %v497 = vld [vmem:[%s410 + $0x40] sm:$0xf]
        %v498 = vld [vmem:[%s410 + $0x44] sm:$0xf]
        %v499 = vld [vmem:[%s410 + $0x48] sm:$0xf]
        %v500 = vld [vmem:[%s410 + $0x4c] sm:$0xf]
        %v501 = vld [vmem:[%s410 + $0x50] sm:$0xf]
        %v502 = vld [vmem:[%s410 + $0x54] sm:$0xf]
        %v503 = vld [vmem:[%s410 + $0x58] sm:$0xf]
        %v504 = vld [vmem:[%s410 + $0x5c] sm:$0xf]
        %v505 = vld [vmem:[%s410 + $0x60] sm:$0xf]
        %v506 = vld [vmem:[%s410 + $0x64] sm:$0xf]
        %v507 = vld [vmem:[%s410 + $0x68] sm:$0xf]
        %v508 = vld [vmem:[%s410 + $0x6c] sm:$0xf]
        %v509 = vld [vmem:[%s410 + $0x70] sm:$0xf]
        %v510 = vld [vmem:[%s410 + $0x74] sm:$0xf]
        %v511 = vld [vmem:[%s410 + $0x78] sm:$0xf]
        %v512 = vld [vmem:[%s410 + $0x7c] sm:$0xf]
        %v513 = vld [vmem:[#allocation7] sm:$0xff]
        %v514 = vld [vmem:[#allocation7 + $0x8] sm:$0xff]
        %v515 = vld [vmem:[#allocation7 + $0x10] sm:$0xff]
        %v516 = vld [vmem:[#allocation7 + $0x18] sm:$0xff]
        %v517 = vld [vmem:[#allocation7 + $0x20] sm:$0xff]
        %v518 = vld [vmem:[#allocation7 + $0x28] sm:$0xff]
        %v519 = vld [vmem:[#allocation7 + $0x30] sm:$0xff]
        %v520 = vld [vmem:[#allocation7 + $0x38] sm:$0xff]
        %v521 = vld [vmem:[#allocation7 + $0x40] sm:$0xff]
        %v522 = vld [vmem:[#allocation7 + $0x48] sm:$0xff]
        %v523 = vld [vmem:[#allocation7 + $0x50] sm:$0xff]
        %v524 = vld [vmem:[#allocation7 + $0x58] sm:$0xff]
        %v525 = vld [vmem:[#allocation7 + $0x60] sm:$0xff]
        %v526 = vld [vmem:[#allocation7 + $0x68] sm:$0xff]
        %v527 = vld [vmem:[#allocation7 + $0x70] sm:$0xff]
        %v528 = vld [vmem:[#allocation7 + $0x78] sm:$0xff]
        %v529 = vld [vmem:[%s3] sm:$0x3]
        %v531 = vlaneseq
        %v532 = vshrl.u32 %v531, 7
        %v533 = vsub.s32 0, %v532
        %v534 = vrot.slane %v529, %v533
        %v535 = vlaneseq
        %v536 = vshrl.u32 %v535, 7
        %v537 = vsub.s32 1, %v536
        %v538 = vrot.slane %v529, %v537
        %v573 = vunpack.c.l.b16 %v481
        %v574 = vunpack.c.l.b16 %v482
        %v575 = vunpack.c.l.b16 %v483
        %v576 = vunpack.c.l.b16 %v484
        %v577 = vunpack.c.l.b16 %v485
        %v578 = vunpack.c.l.b16 %v486
        %v579 = vunpack.c.l.b16 %v487
        %v580 = vunpack.c.l.b16 %v488
        %v581 = vunpack.c.l.b16 %v489
        %v582 = vunpack.c.l.b16 %v490
        %v583 = vunpack.c.l.b16 %v491
        %v584 = vunpack.c.l.b16 %v492
        %v585 = vunpack.c.l.b16 %v493
        %v586 = vunpack.c.l.b16 %v494
        %v587 = vunpack.c.l.b16 %v495
        %v588 = vunpack.c.l.b16 %v496
        %v589 = vunpack.c.l.b16 %v497
        %v590 = vunpack.c.l.b16 %v498
        %v591 = vunpack.c.l.b16 %v499
        %v592 = vunpack.c.l.b16 %v500
        %v593 = vunpack.c.l.b16 %v501
        %v594 = vunpack.c.l.b16 %v502
        %v595 = vunpack.c.l.b16 %v503
        %v596 = vunpack.c.l.b16 %v504
        %v597 = vunpack.c.l.b16 %v505
        %v598 = vunpack.c.l.b16 %v506
        %v599 = vunpack.c.l.b16 %v507
        %v600 = vunpack.c.l.b16 %v508
        %v601 = vunpack.c.l.b16 %v509
        %v602 = vunpack.c.l.b16 %v510
        %v603 = vunpack.c.l.b16 %v511
        %v604 = vunpack.c.l.b16 %v512
        %v605 = vpack.c.b16 %v574, %v573
        %v606 = vpack.c.b16 %v576, %v575
        %v607 = vpack.c.b16 %v578, %v577
        %v608 = vpack.c.b16 %v580, %v579
        %v609 = vpack.c.b16 %v582, %v581
        %v610 = vpack.c.b16 %v584, %v583
        %v611 = vpack.c.b16 %v586, %v585
        %v612 = vpack.c.b16 %v588, %v587
        %v613 = vpack.c.b16 %v590, %v589
        %v614 = vpack.c.b16 %v592, %v591
        %v615 = vpack.c.b16 %v594, %v593
        %v616 = vpack.c.b16 %v596, %v595
        %v617 = vpack.c.b16 %v598, %v597
        %v618 = vpack.c.b16 %v600, %v599
        %v619 = vpack.c.b16 %v602, %v601
        %v620 = vpack.c.b16 %v604, %v603
        %v653 = vunpack.c.l.b16 %v513
        %v654 = vunpack.c.h.b16 %v513
        %v655 = vunpack.c.l.b16 %v514
        %v656 = vunpack.c.h.b16 %v514
        %v657 = vunpack.c.l.b16 %v515
        %v658 = vunpack.c.h.b16 %v515
        %v659 = vunpack.c.l.b16 %v516
        %v660 = vunpack.c.h.b16 %v516
        %v661 = vunpack.c.l.b16 %v517
        %v662 = vunpack.c.h.b16 %v517
        %v663 = vunpack.c.l.b16 %v518
        %v664 = vunpack.c.h.b16 %v518
        %v665 = vunpack.c.l.b16 %v519
        %v666 = vunpack.c.h.b16 %v519
        %v667 = vunpack.c.l.b16 %v520
        %v668 = vunpack.c.h.b16 %v520
        %v669 = vunpack.c.l.b16 %v521
        %v670 = vunpack.c.h.b16 %v521
        %v671 = vunpack.c.l.b16 %v522
        %v672 = vunpack.c.h.b16 %v522
        %v673 = vunpack.c.l.b16 %v523
        %v674 = vunpack.c.h.b16 %v523
        %v675 = vunpack.c.l.b16 %v524
        %v676 = vunpack.c.h.b16 %v524
        %v677 = vunpack.c.l.b16 %v525
        %v678 = vunpack.c.h.b16 %v525
        %v679 = vunpack.c.l.b16 %v526
        %v680 = vunpack.c.h.b16 %v526
        %v681 = vunpack.c.l.b16 %v527
        %v682 = vunpack.c.h.b16 %v527
        %v683 = vunpack.c.l.b16 %v528
        %v684 = vunpack.c.h.b16 %v528
        %v685 = vpack.c.b16 %v655, %v653
        %v686 = vpack.c.b16 %v656, %v654
        %v687 = vpack.c.b16 %v659, %v657
        %v688 = vpack.c.b16 %v660, %v658
        %v689 = vpack.c.b16 %v663, %v661
        %v690 = vpack.c.b16 %v664, %v662
        %v691 = vpack.c.b16 %v667, %v665
        %v692 = vpack.c.b16 %v668, %v666
        %v693 = vpack.c.b16 %v671, %v669
        %v694 = vpack.c.b16 %v672, %v670
        %v695 = vpack.c.b16 %v675, %v673
        %v696 = vpack.c.b16 %v676, %v674
        %v697 = vpack.c.b16 %v679, %v677
        %v698 = vpack.c.b16 %v680, %v678
        %v699 = vpack.c.b16 %v683, %v681
        %v700 = vpack.c.b16 %v684, %v682
        %717 = vmatprep.subr.bf16.mxu0 %v686
        %718 = vmatpush1.bf16.msra.mxu0 %v685
        %719 = vmatprep.subr.bf16.mxu0 %v688
        %720 = vmatpush1.bf16.msra.mxu0 %v687
        %721 = vmatprep.subr.bf16.mxu0 %v690
        %722 = vmatpush1.bf16.msra.mxu0 %v689
        %723 = vmatprep.subr.bf16.mxu0 %v692
        %724 = vmatpush1.bf16.msra.mxu0 %v691
        %725 = vmatprep.subr.bf16.mxu0 %v694
        %726 = vmatpush1.bf16.msra.mxu0 %v693
        %727 = vmatprep.subr.bf16.mxu0 %v696
        %728 = vmatpush1.bf16.msra.mxu0 %v695
        %729 = vmatprep.subr.bf16.mxu0 %v698
        %730 = vmatpush1.bf16.msra.mxu0 %v697
        %731 = vmatprep.subr.bf16.mxu0 %v700
        %732 = vmatpush1.bf16.msra.mxu0 %v699
        %733 = vmatprep.subr.bf16.mxu0 0
        %734 = vmatpush1.bf16.msra.mxu0 0
        %735 = vmatprep.subr.bf16.mxu0 0
        %736 = vmatpush1.bf16.msra.mxu0 0
        %737 = vmatprep.subr.bf16.mxu0 0
        %738 = vmatpush1.bf16.msra.mxu0 0
        %739 = vmatprep.subr.bf16.mxu0 0
        %740 = vmatpush1.bf16.msra.mxu0 0
        %741 = vmatprep.subr.bf16.mxu0 0
        %742 = vmatpush1.bf16.msra.mxu0 0
        %743 = vmatprep.subr.bf16.mxu0 0
        %744 = vmatpush1.bf16.msra.mxu0 0
        %745 = vmatprep.subr.bf16.mxu0 0
        %746 = vmatpush1.bf16.msra.mxu0 0
        %747 = vmatprep.subr.bf16.mxu0 0
        %748 = vmatpush1.bf16.msra.mxu0 0
        %749 = vmatprep.mubr.bf16.mxu0 0
        %750 = vmatmul.mubr.bf16.gmra.mrb[0].mxu0 %v605
        %v751 = vpop.f32.mrb[0].mxu0
        %v752 = vadd.f32 %v534, %v751
        %v753 = vpop.f32.mrb[0].mxu0
        %v754 = vadd.f32 %v538, %v753
        %v755 = vpop.f32.mrb[0].mxu0
        %v756 = vadd.f32 %v534, %v755
        %v757 = vpop.f32.mrb[0].mxu0
        %v758 = vadd.f32 %v538, %v757
        %759 = vmatprep.mubr.bf16.mxu0 0
        %760 = vmatmul.mubr.bf16.gmra.mrb[0].mxu0 %v606
        %v761 = vpop.f32.mrb[0].mxu0
        %v762 = vadd.f32 %v534, %v761
        %v763 = vpop.f32.mrb[0].mxu0
        %v764 = vadd.f32 %v538, %v763
        %v765 = vpop.f32.mrb[0].mxu0
        %v766 = vadd.f32 %v534, %v765
        %v767 = vpop.f32.mrb[0].mxu0
        %v768 = vadd.f32 %v538, %v767
        %769 = vmatprep.mubr.bf16.mxu0 0
        %770 = vmatmul.mubr.bf16.gmra.mrb[0].mxu0 %v607
        %v771 = vpop.f32.mrb[0].mxu0
        %v772 = vadd.f32 %v534, %v771
        %v773 = vpop.f32.mrb[0].mxu0
        %v774 = vadd.f32 %v538, %v773
        %v775 = vpop.f32.mrb[0].mxu0
        %v776 = vadd.f32 %v534, %v775
        %v777 = vpop.f32.mrb[0].mxu0
        %v778 = vadd.f32 %v538, %v777
        %779 = vmatprep.mubr.bf16.mxu0 0
        %780 = vmatmul.mubr.bf16.gmra.mrb[0].mxu0 %v608
        %v781 = vpop.f32.mrb[0].mxu0
        %v782 = vadd.f32 %v534, %v781
        %v783 = vpop.f32.mrb[0].mxu0
        %v784 = vadd.f32 %v538, %v783
        %v785 = vpop.f32.mrb[0].mxu0
        %v786 = vadd.f32 %v534, %v785
        %v787 = vpop.f32.mrb[0].mxu0
        %v788 = vadd.f32 %v538, %v787
        %789 = vmatprep.mubr.bf16.mxu0 0
        %790 = vmatmul.mubr.bf16.gmra.mrb[0].mxu0 %v609
        %v791 = vpop.f32.mrb[0].mxu0
        %v792 = vadd.f32 %v534, %v791
        %v793 = vpop.f32.mrb[0].mxu0
        %v794 = vadd.f32 %v538, %v793
        %v795 = vpop.f32.mrb[0].mxu0
        %v796 = vadd.f32 %v534, %v795
        %v797 = vpop.f32.mrb[0].mxu0
        %v798 = vadd.f32 %v538, %v797
        %799 = vmatprep.mubr.bf16.mxu0 0
        %800 = vmatmul.mubr.bf16.gmra.mrb[0].mxu0 %v610
        %v801 = vpop.f32.mrb[0].mxu0
        %v802 = vadd.f32 %v534, %v801
        %v803 = vpop.f32.mrb[0].mxu0
        %v804 = vadd.f32 %v538, %v803
        %v805 = vpop.f32.mrb[0].mxu0
        %v806 = vadd.f32 %v534, %v805
        %v807 = vpop.f32.mrb[0].mxu0
        %v808 = vadd.f32 %v538, %v807
        %809 = vmatprep.mubr.bf16.mxu0 0
        %810 = vmatmul.mubr.bf16.gmra.mrb[0].mxu0 %v611
        %v811 = vpop.f32.mrb[0].mxu0
        %v812 = vadd.f32 %v534, %v811
        %v813 = vpop.f32.mrb[0].mxu0
        %v814 = vadd.f32 %v538, %v813
        %v815 = vpop.f32.mrb[0].mxu0
        %v816 = vadd.f32 %v534, %v815
        %v817 = vpop.f32.mrb[0].mxu0
        %v818 = vadd.f32 %v538, %v817
        %819 = vmatprep.mubr.bf16.mxu0 0
        %820 = vmatmul.mubr.bf16.gmra.mrb[0].mxu0 %v612
        %v821 = vpop.f32.mrb[0].mxu0
        %v822 = vadd.f32 %v534, %v821
        %v823 = vpop.f32.mrb[0].mxu0
        %v824 = vadd.f32 %v538, %v823
        %v825 = vpop.f32.mrb[0].mxu0
        %v826 = vadd.f32 %v534, %v825
        %v827 = vpop.f32.mrb[0].mxu0
        %v828 = vadd.f32 %v538, %v827
        %829 = vmatprep.mubr.bf16.mxu0 0
        %830 = vmatmul.mubr.bf16.gmra.mrb[0].mxu0 %v613
        %v831 = vpop.f32.mrb[0].mxu0
        %v832 = vadd.f32 %v534, %v831
        %v833 = vpop.f32.mrb[0].mxu0
        %v834 = vadd.f32 %v538, %v833
        %v835 = vpop.f32.mrb[0].mxu0
        %v836 = vadd.f32 %v534, %v835
        %v837 = vpop.f32.mrb[0].mxu0
        %v838 = vadd.f32 %v538, %v837
        %839 = vmatprep.mubr.bf16.mxu0 0
        %840 = vmatmul.mubr.bf16.gmra.mrb[0].mxu0 %v614
        %v841 = vpop.f32.mrb[0].mxu0
        %v842 = vadd.f32 %v534, %v841
        %v843 = vpop.f32.mrb[0].mxu0
        %v844 = vadd.f32 %v538, %v843
        %v845 = vpop.f32.mrb[0].mxu0
        %v846 = vadd.f32 %v534, %v845
        %v847 = vpop.f32.mrb[0].mxu0
        %v848 = vadd.f32 %v538, %v847
        %849 = vmatprep.mubr.bf16.mxu0 0
        %850 = vmatmul.mubr.bf16.gmra.mrb[0].mxu0 %v615
        %v851 = vpop.f32.mrb[0].mxu0
        %v852 = vadd.f32 %v534, %v851
        %v853 = vpop.f32.mrb[0].mxu0
        %v854 = vadd.f32 %v538, %v853
        %v855 = vpop.f32.mrb[0].mxu0
        %v856 = vadd.f32 %v534, %v855
        %v857 = vpop.f32.mrb[0].mxu0
        %v858 = vadd.f32 %v538, %v857
        %859 = vmatprep.mubr.bf16.mxu0 0
        %860 = vmatmul.mubr.bf16.gmra.mrb[0].mxu0 %v616
        %v861 = vpop.f32.mrb[0].mxu0
        %v862 = vadd.f32 %v534, %v861
        %v863 = vpop.f32.mrb[0].mxu0
        %v864 = vadd.f32 %v538, %v863
        %v865 = vpop.f32.mrb[0].mxu0
        %v866 = vadd.f32 %v534, %v865
        %v867 = vpop.f32.mrb[0].mxu0
        %v868 = vadd.f32 %v538, %v867
        %869 = vmatprep.mubr.bf16.mxu0 0
        %870 = vmatmul.mubr.bf16.gmra.mrb[0].mxu0 %v617
        %v871 = vpop.f32.mrb[0].mxu0
        %v872 = vadd.f32 %v534, %v871
        %v873 = vpop.f32.mrb[0].mxu0
        %v874 = vadd.f32 %v538, %v873
        %v875 = vpop.f32.mrb[0].mxu0
        %v876 = vadd.f32 %v534, %v875
        %v877 = vpop.f32.mrb[0].mxu0
        %v878 = vadd.f32 %v538, %v877
        %879 = vmatprep.mubr.bf16.mxu0 0
        %880 = vmatmul.mubr.bf16.gmra.mrb[0].mxu0 %v618
        %v881 = vpop.f32.mrb[0].mxu0
        %v882 = vadd.f32 %v534, %v881
        %v883 = vpop.f32.mrb[0].mxu0
        %v884 = vadd.f32 %v538, %v883
        %v885 = vpop.f32.mrb[0].mxu0
        %v886 = vadd.f32 %v534, %v885
        %v887 = vpop.f32.mrb[0].mxu0
        %v888 = vadd.f32 %v538, %v887
        %889 = vmatprep.mubr.bf16.mxu0 0
        %890 = vmatmul.mubr.bf16.gmra.mrb[0].mxu0 %v619
        %v891 = vpop.f32.mrb[0].mxu0
        %v892 = vadd.f32 %v534, %v891
        %v893 = vpop.f32.mrb[0].mxu0
        %v894 = vadd.f32 %v538, %v893
        %v895 = vpop.f32.mrb[0].mxu0
        %v896 = vadd.f32 %v534, %v895
        %v897 = vpop.f32.mrb[0].mxu0
        %v898 = vadd.f32 %v538, %v897
        %899 = vmatprep.mubr.bf16.mxu0 0
        %900 = vmatmul.mubr.bf16.gmra.mrb[0].mxu0 %v620
        %v901 = vpop.f32.mrb[0].mxu0
        %v902 = vadd.f32 %v534, %v901
        %v903 = vpop.f32.mrb[0].mxu0
        %v904 = vadd.f32 %v538, %v903
        %v905 = vpop.f32.mrb[0].mxu0
        %v906 = vadd.f32 %v534, %v905
        %v907 = vpop.f32.mrb[0].mxu0
        %v908 = vadd.f32 %v538, %v907
        %909 = vdwg.mxu0
        %v910 = vld [vmem:[%s419] sm:$0xff]
        %v911 = vld [vmem:[%s419 + $0x8] sm:$0xff]
        %v912 = vld [vmem:[%s419 + $0x10] sm:$0xff]
        %v913 = vld [vmem:[%s419 + $0x18] sm:$0xff]
        %v914 = vld [vmem:[%s419 + $0x20] sm:$0xff]
        %v915 = vld [vmem:[%s419 + $0x28] sm:$0xff]
        %v916 = vld [vmem:[%s419 + $0x30] sm:$0xff]
        %v917 = vld [vmem:[%s419 + $0x38] sm:$0xff]
        %v918 = vld [vmem:[%s419 + $0x40] sm:$0xff]
        %v919 = vld [vmem:[%s419 + $0x48] sm:$0xff]
        %v920 = vld [vmem:[%s419 + $0x50] sm:$0xff]
        %v921 = vld [vmem:[%s419 + $0x58] sm:$0xff]
        %v922 = vld [vmem:[%s419 + $0x60] sm:$0xff]
        %v923 = vld [vmem:[%s419 + $0x68] sm:$0xff]
        %v924 = vld [vmem:[%s419 + $0x70] sm:$0xff]
        %v925 = vld [vmem:[%s419 + $0x78] sm:$0xff]
        %v926 = vld [vmem:[%s419 + $0x80] sm:$0xff]
        %v927 = vld [vmem:[%s419 + $0x88] sm:$0xff]
        %v928 = vld [vmem:[%s419 + $0x90] sm:$0xff]
        %v929 = vld [vmem:[%s419 + $0x98] sm:$0xff]
        %v930 = vld [vmem:[%s419 + $0xa0] sm:$0xff]
        %v931 = vld [vmem:[%s419 + $0xa8] sm:$0xff]
        %v932 = vld [vmem:[%s419 + $0xb0] sm:$0xff]
        %v933 = vld [vmem:[%s419 + $0xb8] sm:$0xff]
        %v934 = vld [vmem:[%s419 + $0xc0] sm:$0xff]
        %v935 = vld [vmem:[%s419 + $0xc8] sm:$0xff]
        %v936 = vld [vmem:[%s419 + $0xd0] sm:$0xff]
        %v937 = vld [vmem:[%s419 + $0xd8] sm:$0xff]
        %v938 = vld [vmem:[%s419 + $0xe0] sm:$0xff]
        %v939 = vld [vmem:[%s419 + $0xe8] sm:$0xff]
        %v940 = vld [vmem:[%s419 + $0xf0] sm:$0xff]
        %v941 = vld [vmem:[%s419 + $0xf8] sm:$0xff]
        %v942 = vunpack.c.l.bf16 %v910
        %v943 = vunpack.c.h.bf16 %v910
        %v944 = vunpack.c.l.bf16 %v911
        %v945 = vunpack.c.h.bf16 %v911
        %v946 = vunpack.c.l.bf16 %v912
        %v947 = vunpack.c.h.bf16 %v912
        %v948 = vunpack.c.l.bf16 %v913
        %v949 = vunpack.c.h.bf16 %v913
        %v950 = vunpack.c.l.bf16 %v914
        %v951 = vunpack.c.h.bf16 %v914
        %v952 = vunpack.c.l.bf16 %v915
        %v953 = vunpack.c.h.bf16 %v915
        %v954 = vunpack.c.l.bf16 %v916
        %v955 = vunpack.c.h.bf16 %v916
        %v956 = vunpack.c.l.bf16 %v917
        %v957 = vunpack.c.h.bf16 %v917
        %v958 = vunpack.c.l.bf16 %v918
        %v959 = vunpack.c.h.bf16 %v918
        %v960 = vunpack.c.l.bf16 %v919
        %v961 = vunpack.c.h.bf16 %v919
        %v962 = vunpack.c.l.bf16 %v920
        %v963 = vunpack.c.h.bf16 %v920
        %v964 = vunpack.c.l.bf16 %v921
        %v965 = vunpack.c.h.bf16 %v921
        %v966 = vunpack.c.l.bf16 %v922
        %v967 = vunpack.c.h.bf16 %v922
        %v968 = vunpack.c.l.bf16 %v923
        %v969 = vunpack.c.h.bf16 %v923
        %v970 = vunpack.c.l.bf16 %v924
        %v971 = vunpack.c.h.bf16 %v924
        %v972 = vunpack.c.l.bf16 %v925
        %v973 = vunpack.c.h.bf16 %v925
        %v974 = vunpack.c.l.bf16 %v926
        %v975 = vunpack.c.h.bf16 %v926
        %v976 = vunpack.c.l.bf16 %v927
        %v977 = vunpack.c.h.bf16 %v927
        %v978 = vunpack.c.l.bf16 %v928
        %v979 = vunpack.c.h.bf16 %v928
        %v980 = vunpack.c.l.bf16 %v929
        %v981 = vunpack.c.h.bf16 %v929
        %v982 = vunpack.c.l.bf16 %v930
        %v983 = vunpack.c.h.bf16 %v930
        %v984 = vunpack.c.l.bf16 %v931
        %v985 = vunpack.c.h.bf16 %v931
        %v986 = vunpack.c.l.bf16 %v932
        %v987 = vunpack.c.h.bf16 %v932
        %v988 = vunpack.c.l.bf16 %v933
        %v989 = vunpack.c.h.bf16 %v933
        %v990 = vunpack.c.l.bf16 %v934
        %v991 = vunpack.c.h.bf16 %v934
        %v992 = vunpack.c.l.bf16 %v935
        %v993 = vunpack.c.h.bf16 %v935
        %v994 = vunpack.c.l.bf16 %v936
        %v995 = vunpack.c.h.bf16 %v936
        %v996 = vunpack.c.l.bf16 %v937
        %v997 = vunpack.c.h.bf16 %v937
        %v998 = vunpack.c.l.bf16 %v938
        %v999 = vunpack.c.h.bf16 %v938
        %v1000 = vunpack.c.l.bf16 %v939
        %v1001 = vunpack.c.h.bf16 %v939
        %v1002 = vunpack.c.l.bf16 %v940
        %v1003 = vunpack.c.h.bf16 %v940
        %v1004 = vunpack.c.l.bf16 %v941
        %v1005 = vunpack.c.h.bf16 %v941
        %v1006 = vmul.f32 %v752, %v942
        %v1007 = vmul.f32 %v754, %v943
        %v1008 = vmul.f32 %v756, %v944
        %v1009 = vmul.f32 %v758, %v945
        %v1010 = vmul.f32 %v762, %v946
        %v1011 = vmul.f32 %v764, %v947
        %v1012 = vmul.f32 %v766, %v948
        %v1013 = vmul.f32 %v768, %v949
        %v1014 = vmul.f32 %v772, %v950
        %v1015 = vmul.f32 %v774, %v951
        %v1016 = vmul.f32 %v776, %v952
        %v1017 = vmul.f32 %v778, %v953
        %v1018 = vmul.f32 %v782, %v954
        %v1019 = vmul.f32 %v784, %v955
        %v1020 = vmul.f32 %v786, %v956
        %v1021 = vmul.f32 %v788, %v957
        %v1022 = vmul.f32 %v792, %v958
        %v1023 = vmul.f32 %v794, %v959
        %v1024 = vmul.f32 %v796, %v960
        %v1025 = vmul.f32 %v798, %v961
        %v1026 = vmul.f32 %v802, %v962
        %v1027 = vmul.f32 %v804, %v963
        %v1028 = vmul.f32 %v806, %v964
        %v1029 = vmul.f32 %v808, %v965
        %v1030 = vmul.f32 %v812, %v966
        %v1031 = vmul.f32 %v814, %v967
        %v1032 = vmul.f32 %v816, %v968
        %v1033 = vmul.f32 %v818, %v969
        %v1034 = vmul.f32 %v822, %v970
        %v1035 = vmul.f32 %v824, %v971
        %v1036 = vmul.f32 %v826, %v972
        %v1037 = vmul.f32 %v828, %v973
        %v1038 = vmul.f32 %v832, %v974
        %v1039 = vmul.f32 %v834, %v975
        %v1040 = vmul.f32 %v836, %v976
        %v1041 = vmul.f32 %v838, %v977
        %v1042 = vmul.f32 %v842, %v978
        %v1043 = vmul.f32 %v844, %v979
        %v1044 = vmul.f32 %v846, %v980
        %v1045 = vmul.f32 %v848, %v981
        %v1046 = vmul.f32 %v852, %v982
        %v1047 = vmul.f32 %v854, %v983
        %v1048 = vmul.f32 %v856, %v984
        %v1049 = vmul.f32 %v858, %v985
        %v1050 = vmul.f32 %v862, %v986
        %v1051 = vmul.f32 %v864, %v987
        %v1052 = vmul.f32 %v866, %v988
        %v1053 = vmul.f32 %v868, %v989
        %v1054 = vmul.f32 %v872, %v990
        %v1055 = vmul.f32 %v874, %v991
        %v1056 = vmul.f32 %v876, %v992
        %v1057 = vmul.f32 %v878, %v993
        %v1058 = vmul.f32 %v882, %v994
        %v1059 = vmul.f32 %v884, %v995
        %v1060 = vmul.f32 %v886, %v996
        %v1061 = vmul.f32 %v888, %v997
        %v1062 = vmul.f32 %v892, %v998
        %v1063 = vmul.f32 %v894, %v999
        %v1064 = vmul.f32 %v896, %v1000
        %v1065 = vmul.f32 %v898, %v1001
        %v1066 = vmul.f32 %v902, %v1002
        %v1067 = vmul.f32 %v904, %v1003
        %v1068 = vmul.f32 %v906, %v1004
        %v1069 = vmul.f32 %v908, %v1005
        %v1070 = vpack.c.bf16 %v1008, %v1006
        %v1071 = vpack.c.bf16 %v1009, %v1007
        %v1072 = vpack.c.bf16 %v1012, %v1010
        %v1073 = vpack.c.bf16 %v1013, %v1011
        %v1074 = vpack.c.bf16 %v1016, %v1014
        %v1075 = vpack.c.bf16 %v1017, %v1015
        %v1076 = vpack.c.bf16 %v1020, %v1018
        %v1077 = vpack.c.bf16 %v1021, %v1019
        %v1078 = vpack.c.bf16 %v1024, %v1022
        %v1079 = vpack.c.bf16 %v1025, %v1023
        %v1080 = vpack.c.bf16 %v1028, %v1026
        %v1081 = vpack.c.bf16 %v1029, %v1027
        %v1082 = vpack.c.bf16 %v1032, %v1030
        %v1083 = vpack.c.bf16 %v1033, %v1031
        %v1084 = vpack.c.bf16 %v1036, %v1034
        %v1085 = vpack.c.bf16 %v1037, %v1035
        %v1086 = vpack.c.bf16 %v1040, %v1038
        %v1087 = vpack.c.bf16 %v1041, %v1039
        %v1088 = vpack.c.bf16 %v1044, %v1042
        %v1089 = vpack.c.bf16 %v1045, %v1043
        %v1090 = vpack.c.bf16 %v1048, %v1046
        %v1091 = vpack.c.bf16 %v1049, %v1047
        %v1092 = vpack.c.bf16 %v1052, %v1050
        %v1093 = vpack.c.bf16 %v1053, %v1051
        %v1094 = vpack.c.bf16 %v1056, %v1054
        %v1095 = vpack.c.bf16 %v1057, %v1055
        %v1096 = vpack.c.bf16 %v1060, %v1058
        %v1097 = vpack.c.bf16 %v1061, %v1059
        %v1098 = vpack.c.bf16 %v1064, %v1062
        %v1099 = vpack.c.bf16 %v1065, %v1063
        %v1100 = vpack.c.bf16 %v1068, %v1066
        %v1101 = vpack.c.bf16 %v1069, %v1067
        %v1102 = vld [vmem:[#allocation8] sm:$0xff]
        %v1103 = vld [vmem:[#allocation8 + $0x8] sm:$0xff]
        %v1104 = vld [vmem:[#allocation8 + $0x10] sm:$0xff]
        %v1105 = vld [vmem:[#allocation8 + $0x18] sm:$0xff]
        %v1106 = vld [vmem:[#allocation8 + $0x20] sm:$0xff]
        %v1107 = vld [vmem:[#allocation8 + $0x28] sm:$0xff]
        %v1108 = vld [vmem:[#allocation8 + $0x30] sm:$0xff]
        %v1109 = vld [vmem:[#allocation8 + $0x38] sm:$0xff]
        %v1110 = vld [vmem:[#allocation8 + $0x40] sm:$0xff]
        %v1111 = vld [vmem:[#allocation8 + $0x48] sm:$0xff]
        %v1112 = vld [vmem:[#allocation8 + $0x50] sm:$0xff]
        %v1113 = vld [vmem:[#allocation8 + $0x58] sm:$0xff]
        %v1114 = vld [vmem:[#allocation8 + $0x60] sm:$0xff]
        %v1115 = vld [vmem:[#allocation8 + $0x68] sm:$0xff]
        %v1116 = vld [vmem:[#allocation8 + $0x70] sm:$0xff]
        %v1117 = vld [vmem:[#allocation8 + $0x78] sm:$0xff]
        %v1118 = vld [vmem:[#allocation8 + $0x80] sm:$0xff]
        %v1119 = vld [vmem:[#allocation8 + $0x88] sm:$0xff]
        %v1120 = vld [vmem:[#allocation8 + $0x90] sm:$0xff]
        %v1121 = vld [vmem:[#allocation8 + $0x98] sm:$0xff]
        %v1122 = vld [vmem:[#allocation8 + $0xa0] sm:$0xff]
        %v1123 = vld [vmem:[#allocation8 + $0xa8] sm:$0xff]
        %v1124 = vld [vmem:[#allocation8 + $0xb0] sm:$0xff]
        %v1125 = vld [vmem:[#allocation8 + $0xb8] sm:$0xff]
        %v1126 = vld [vmem:[#allocation8 + $0xc0] sm:$0xff]
        %v1127 = vld [vmem:[#allocation8 + $0xc8] sm:$0xff]
        %v1128 = vld [vmem:[#allocation8 + $0xd0] sm:$0xff]
        %v1129 = vld [vmem:[#allocation8 + $0xd8] sm:$0xff]
        %v1130 = vld [vmem:[#allocation8 + $0xe0] sm:$0xff]
        %v1131 = vld [vmem:[#allocation8 + $0xe8] sm:$0xff]
        %v1132 = vld [vmem:[#allocation8 + $0xf0] sm:$0xff]
        %v1133 = vld [vmem:[#allocation8 + $0xf8] sm:$0xff]
        %v1134 = vld [vmem:[%s5] sm:$0x3]
        %v1136 = vlaneseq
        %v1137 = vshrl.u32 %v1136, 7
        %v1138 = vsub.s32 0, %v1137
        %v1139 = vrot.slane %v1134, %v1138
        %v1140 = vlaneseq
        %v1141 = vshrl.u32 %v1140, 7
        %v1142 = vsub.s32 1, %v1141
        %v1143 = vrot.slane %v1134, %v1142
        %v1178 = vunpack.c.l.b16 %v1102
        %v1179 = vunpack.c.h.b16 %v1102
        %v1180 = vunpack.c.l.b16 %v1103
        %v1181 = vunpack.c.h.b16 %v1103
        %v1182 = vunpack.c.l.b16 %v1104
        %v1183 = vunpack.c.h.b16 %v1104
        %v1184 = vunpack.c.l.b16 %v1105
        %v1185 = vunpack.c.h.b16 %v1105
        %v1186 = vunpack.c.l.b16 %v1106
        %v1187 = vunpack.c.h.b16 %v1106
        %v1188 = vunpack.c.l.b16 %v1107
        %v1189 = vunpack.c.h.b16 %v1107
        %v1190 = vunpack.c.l.b16 %v1108
        %v1191 = vunpack.c.h.b16 %v1108
        %v1192 = vunpack.c.l.b16 %v1109
        %v1193 = vunpack.c.h.b16 %v1109
        %v1194 = vunpack.c.l.b16 %v1110
        %v1195 = vunpack.c.h.b16 %v1110
        %v1196 = vunpack.c.l.b16 %v1111
        %v1197 = vunpack.c.h.b16 %v1111
        %v1198 = vunpack.c.l.b16 %v1112
        %v1199 = vunpack.c.h.b16 %v1112
        %v1200 = vunpack.c.l.b16 %v1113
        %v1201 = vunpack.c.h.b16 %v1113
        %v1202 = vunpack.c.l.b16 %v1114
        %v1203 = vunpack.c.h.b16 %v1114
        %v1204 = vunpack.c.l.b16 %v1115
        %v1205 = vunpack.c.h.b16 %v1115
        %v1206 = vunpack.c.l.b16 %v1116
        %v1207 = vunpack.c.h.b16 %v1116
        %v1208 = vunpack.c.l.b16 %v1117
        %v1209 = vunpack.c.h.b16 %v1117
        %v1210 = vunpack.c.l.b16 %v1118
        %v1211 = vunpack.c.h.b16 %v1118
        %v1212 = vunpack.c.l.b16 %v1119
        %v1213 = vunpack.c.h.b16 %v1119
        %v1214 = vunpack.c.l.b16 %v1120
        %v1215 = vunpack.c.h.b16 %v1120
        %v1216 = vunpack.c.l.b16 %v1121
        %v1217 = vunpack.c.h.b16 %v1121
        %v1218 = vunpack.c.l.b16 %v1122
        %v1219 = vunpack.c.h.b16 %v1122
        %v1220 = vunpack.c.l.b16 %v1123
        %v1221 = vunpack.c.h.b16 %v1123
        %v1222 = vunpack.c.l.b16 %v1124
        %v1223 = vunpack.c.h.b16 %v1124
        %v1224 = vunpack.c.l.b16 %v1125
        %v1225 = vunpack.c.h.b16 %v1125
        %v1226 = vunpack.c.l.b16 %v1126
        %v1227 = vunpack.c.h.b16 %v1126
        %v1228 = vunpack.c.l.b16 %v1127
        %v1229 = vunpack.c.h.b16 %v1127
        %v1230 = vunpack.c.l.b16 %v1128
        %v1231 = vunpack.c.h.b16 %v1128
        %v1232 = vunpack.c.l.b16 %v1129
        %v1233 = vunpack.c.h.b16 %v1129
        %v1234 = vunpack.c.l.b16 %v1130
        %v1235 = vunpack.c.h.b16 %v1130
        %v1236 = vunpack.c.l.b16 %v1131
        %v1237 = vunpack.c.h.b16 %v1131
        %v1238 = vunpack.c.l.b16 %v1132
        %v1239 = vunpack.c.h.b16 %v1132
        %v1240 = vunpack.c.l.b16 %v1133
        %v1241 = vunpack.c.h.b16 %v1133
        %v1242 = vpack.c.b16 %v1180, %v1178
        %v1243 = vpack.c.b16 %v1181, %v1179
        %v1244 = vpack.c.b16 %v1184, %v1182
        %v1245 = vpack.c.b16 %v1185, %v1183
        %v1246 = vpack.c.b16 %v1188, %v1186
        %v1247 = vpack.c.b16 %v1189, %v1187
        %v1248 = vpack.c.b16 %v1192, %v1190
        %v1249 = vpack.c.b16 %v1193, %v1191
        %v1250 = vpack.c.b16 %v1196, %v1194
        %v1251 = vpack.c.b16 %v1197, %v1195
        %v1252 = vpack.c.b16 %v1200, %v1198
        %v1253 = vpack.c.b16 %v1201, %v1199
        %v1254 = vpack.c.b16 %v1204, %v1202
        %v1255 = vpack.c.b16 %v1205, %v1203
        %v1256 = vpack.c.b16 %v1208, %v1206
        %v1257 = vpack.c.b16 %v1209, %v1207
        %v1258 = vpack.c.b16 %v1212, %v1210
        %v1259 = vpack.c.b16 %v1213, %v1211
        %v1260 = vpack.c.b16 %v1216, %v1214
        %v1261 = vpack.c.b16 %v1217, %v1215
        %v1262 = vpack.c.b16 %v1220, %v1218
        %v1263 = vpack.c.b16 %v1221, %v1219
        %v1264 = vpack.c.b16 %v1224, %v1222
        %v1265 = vpack.c.b16 %v1225, %v1223
        %v1266 = vpack.c.b16 %v1228, %v1226
        %v1267 = vpack.c.b16 %v1229, %v1227
        %v1268 = vpack.c.b16 %v1232, %v1230
        %v1269 = vpack.c.b16 %v1233, %v1231
        %v1270 = vpack.c.b16 %v1236, %v1234
        %v1271 = vpack.c.b16 %v1237, %v1235
        %v1272 = vpack.c.b16 %v1240, %v1238
        %v1273 = vpack.c.b16 %v1241, %v1239
        %1306 = vmatprep.subr.bf16.mxu0 %v1243
        %1307 = vmatpush1.bf16.msra.mxu0 %v1242
        %1308 = vmatprep.subr.bf16.mxu0 %v1245
        %1309 = vmatpush1.bf16.msra.mxu0 %v1244
        %1310 = vmatprep.subr.bf16.mxu0 %v1247
        %1311 = vmatpush1.bf16.msra.mxu0 %v1246
        %1312 = vmatprep.subr.bf16.mxu0 %v1249
        %1313 = vmatpush1.bf16.msra.mxu0 %v1248
        %1314 = vmatprep.subr.bf16.mxu0 %v1251
        %1315 = vmatpush1.bf16.msra.mxu0 %v1250
        %1316 = vmatprep.subr.bf16.mxu0 %v1253
        %1317 = vmatpush1.bf16.msra.mxu0 %v1252
        %1318 = vmatprep.subr.bf16.mxu0 %v1255
        %1319 = vmatpush1.bf16.msra.mxu0 %v1254
        %1320 = vmatprep.subr.bf16.mxu0 %v1257
        %1321 = vmatpush1.bf16.msra.mxu0 %v1256
        %1322 = vmatprep.subr.bf16.mxu0 %v1259
        %1323 = vmatpush1.bf16.msra.mxu0 %v1258
        %1324 = vmatprep.subr.bf16.mxu0 %v1261
        %1325 = vmatpush1.bf16.msra.mxu0 %v1260
        %1326 = vmatprep.subr.bf16.mxu0 %v1263
        %1327 = vmatpush1.bf16.msra.mxu0 %v1262
        %1328 = vmatprep.subr.bf16.mxu0 %v1265
        %1329 = vmatpush1.bf16.msra.mxu0 %v1264
        %1330 = vmatprep.subr.bf16.mxu0 %v1267
        %1331 = vmatpush1.bf16.msra.mxu0 %v1266
        %1332 = vmatprep.subr.bf16.mxu0 %v1269
        %1333 = vmatpush1.bf16.msra.mxu0 %v1268
        %1334 = vmatprep.subr.bf16.mxu0 %v1271
        %1335 = vmatpush1.bf16.msra.mxu0 %v1270
        %1336 = vmatprep.subr.bf16.mxu0 %v1273
        %1337 = vmatpush1.bf16.msra.mxu0 %v1272
        %1338 = vmatprep.mubr.bf16.mxu0 %v1071
        %1339 = vmatmul.mubr.bf16.gmra.mrb[0].mxu0 %v1070
        %v1340 = vpop.f32.mrb[0].mxu0
        %v1341 = vadd.f32 %v1139, %v1340
        %v1342 = vpop.f32.mrb[0].mxu0
        %v1343 = vadd.f32 %v1143, %v1342
        %v1344 = vpop.f32.mrb[0].mxu0
        %v1345 = vadd.f32 %v1139, %v1344
        %v1346 = vpop.f32.mrb[0].mxu0
        %v1347 = vadd.f32 %v1143, %v1346
        %1348 = vmatprep.mubr.bf16.mxu0 %v1073
        %1349 = vmatmul.mubr.bf16.gmra.mrb[0].mxu0 %v1072
        %v1350 = vpop.f32.mrb[0].mxu0
        %v1351 = vadd.f32 %v1139, %v1350
        %v1352 = vpop.f32.mrb[0].mxu0
        %v1353 = vadd.f32 %v1143, %v1352
        %v1354 = vpop.f32.mrb[0].mxu0
        %v1355 = vadd.f32 %v1139, %v1354
        %v1356 = vpop.f32.mrb[0].mxu0
        %v1357 = vadd.f32 %v1143, %v1356
        %1358 = vmatprep.mubr.bf16.mxu0 %v1075
        %1359 = vmatmul.mubr.bf16.gmra.mrb[0].mxu0 %v1074
        %v1360 = vpop.f32.mrb[0].mxu0
        %v1361 = vadd.f32 %v1139, %v1360
        %v1362 = vpop.f32.mrb[0].mxu0
        %v1363 = vadd.f32 %v1143, %v1362
        %v1364 = vpop.f32.mrb[0].mxu0
        %v1365 = vadd.f32 %v1139, %v1364
        %v1366 = vpop.f32.mrb[0].mxu0
        %v1367 = vadd.f32 %v1143, %v1366
        %1368 = vmatprep.mubr.bf16.mxu0 %v1077
        %1369 = vmatmul.mubr.bf16.gmra.mrb[0].mxu0 %v1076
        %v1370 = vpop.f32.mrb[0].mxu0
        %v1371 = vadd.f32 %v1139, %v1370
        %v1372 = vpop.f32.mrb[0].mxu0
        %v1373 = vadd.f32 %v1143, %v1372
        %v1374 = vpop.f32.mrb[0].mxu0
        %v1375 = vadd.f32 %v1139, %v1374
        %v1376 = vpop.f32.mrb[0].mxu0
        %v1377 = vadd.f32 %v1143, %v1376
        %1378 = vmatprep.mubr.bf16.mxu0 %v1079
        %1379 = vmatmul.mubr.bf16.gmra.mrb[0].mxu0 %v1078
        %v1380 = vpop.f32.mrb[0].mxu0
        %v1381 = vadd.f32 %v1139, %v1380
        %v1382 = vpop.f32.mrb[0].mxu0
        %v1383 = vadd.f32 %v1143, %v1382
        %v1384 = vpop.f32.mrb[0].mxu0
        %v1385 = vadd.f32 %v1139, %v1384
        %v1386 = vpop.f32.mrb[0].mxu0
        %v1387 = vadd.f32 %v1143, %v1386
        %1388 = vmatprep.mubr.bf16.mxu0 %v1081
        %1389 = vmatmul.mubr.bf16.gmra.mrb[0].mxu0 %v1080
        %v1390 = vpop.f32.mrb[0].mxu0
        %v1391 = vadd.f32 %v1139, %v1390
        %v1392 = vpop.f32.mrb[0].mxu0
        %v1393 = vadd.f32 %v1143, %v1392
        %v1394 = vpop.f32.mrb[0].mxu0
        %v1395 = vadd.f32 %v1139, %v1394
        %v1396 = vpop.f32.mrb[0].mxu0
        %v1397 = vadd.f32 %v1143, %v1396
        %1398 = vmatprep.mubr.bf16.mxu0 %v1083
        %1399 = vmatmul.mubr.bf16.gmra.mrb[0].mxu0 %v1082
        %v1400 = vpop.f32.mrb[0].mxu0
        %v1401 = vadd.f32 %v1139, %v1400
        %v1402 = vpop.f32.mrb[0].mxu0
        %v1403 = vadd.f32 %v1143, %v1402
        %v1404 = vpop.f32.mrb[0].mxu0
        %v1405 = vadd.f32 %v1139, %v1404
        %v1406 = vpop.f32.mrb[0].mxu0
        %v1407 = vadd.f32 %v1143, %v1406
        %1408 = vmatprep.mubr.bf16.mxu0 %v1085
        %1409 = vmatmul.mubr.bf16.gmra.mrb[0].mxu0 %v1084
        %v1410 = vpop.f32.mrb[0].mxu0
        %v1411 = vadd.f32 %v1139, %v1410
        %v1412 = vpop.f32.mrb[0].mxu0
        %v1413 = vadd.f32 %v1143, %v1412
        %v1414 = vpop.f32.mrb[0].mxu0
        %v1415 = vadd.f32 %v1139, %v1414
        %v1416 = vpop.f32.mrb[0].mxu0
        %v1417 = vadd.f32 %v1143, %v1416
        %1418 = vmatprep.mubr.bf16.mxu0 %v1087
        %1419 = vmatmul.mubr.bf16.gmra.mrb[0].mxu0 %v1086
        %v1420 = vpop.f32.mrb[0].mxu0
        %v1421 = vadd.f32 %v1139, %v1420
        %v1422 = vpop.f32.mrb[0].mxu0
        %v1423 = vadd.f32 %v1143, %v1422
        %v1424 = vpop.f32.mrb[0].mxu0
        %v1425 = vadd.f32 %v1139, %v1424
        %v1426 = vpop.f32.mrb[0].mxu0
        %v1427 = vadd.f32 %v1143, %v1426
        %1428 = vmatprep.mubr.bf16.mxu0 %v1089
        %1429 = vmatmul.mubr.bf16.gmra.mrb[0].mxu0 %v1088
        %v1430 = vpop.f32.mrb[0].mxu0
        %v1431 = vadd.f32 %v1139, %v1430
        %v1432 = vpop.f32.mrb[0].mxu0
        %v1433 = vadd.f32 %v1143, %v1432
        %v1434 = vpop.f32.mrb[0].mxu0
        %v1435 = vadd.f32 %v1139, %v1434
        %v1436 = vpop.f32.mrb[0].mxu0
        %v1437 = vadd.f32 %v1143, %v1436
        %1438 = vmatprep.mubr.bf16.mxu0 %v1091
        %1439 = vmatmul.mubr.bf16.gmra.mrb[0].mxu0 %v1090
        %v1440 = vpop.f32.mrb[0].mxu0
        %v1441 = vadd.f32 %v1139, %v1440
        %v1442 = vpop.f32.mrb[0].mxu0
        %v1443 = vadd.f32 %v1143, %v1442
        %v1444 = vpop.f32.mrb[0].mxu0
        %v1445 = vadd.f32 %v1139, %v1444
        %v1446 = vpop.f32.mrb[0].mxu0
        %v1447 = vadd.f32 %v1143, %v1446
        %1448 = vmatprep.mubr.bf16.mxu0 %v1093
        %1449 = vmatmul.mubr.bf16.gmra.mrb[0].mxu0 %v1092
        %v1450 = vpop.f32.mrb[0].mxu0
        %v1451 = vadd.f32 %v1139, %v1450
        %v1452 = vpop.f32.mrb[0].mxu0
        %v1453 = vadd.f32 %v1143, %v1452
        %v1454 = vpop.f32.mrb[0].mxu0
        %v1455 = vadd.f32 %v1139, %v1454
        %v1456 = vpop.f32.mrb[0].mxu0
        %v1457 = vadd.f32 %v1143, %v1456
        %1458 = vmatprep.mubr.bf16.mxu0 %v1095
        %1459 = vmatmul.mubr.bf16.gmra.mrb[0].mxu0 %v1094
        %v1460 = vpop.f32.mrb[0].mxu0
        %v1461 = vadd.f32 %v1139, %v1460
        %v1462 = vpop.f32.mrb[0].mxu0
        %v1463 = vadd.f32 %v1143, %v1462
        %v1464 = vpop.f32.mrb[0].mxu0
        %v1465 = vadd.f32 %v1139, %v1464
        %v1466 = vpop.f32.mrb[0].mxu0
        %v1467 = vadd.f32 %v1143, %v1466
        %1468 = vmatprep.mubr.bf16.mxu0 %v1097
        %1469 = vmatmul.mubr.bf16.gmra.mrb[0].mxu0 %v1096
        %v1470 = vpop.f32.mrb[0].mxu0
        %v1471 = vadd.f32 %v1139, %v1470
        %v1472 = vpop.f32.mrb[0].mxu0
        %v1473 = vadd.f32 %v1143, %v1472
        %v1474 = vpop.f32.mrb[0].mxu0
        %v1475 = vadd.f32 %v1139, %v1474
        %v1476 = vpop.f32.mrb[0].mxu0
        %v1477 = vadd.f32 %v1143, %v1476
        %1478 = vmatprep.mubr.bf16.mxu0 %v1099
        %1479 = vmatmul.mubr.bf16.gmra.mrb[0].mxu0 %v1098
        %v1480 = vpop.f32.mrb[0].mxu0
        %v1481 = vadd.f32 %v1139, %v1480
        %v1482 = vpop.f32.mrb[0].mxu0
        %v1483 = vadd.f32 %v1143, %v1482
        %v1484 = vpop.f32.mrb[0].mxu0
        %v1485 = vadd.f32 %v1139, %v1484
        %v1486 = vpop.f32.mrb[0].mxu0
        %v1487 = vadd.f32 %v1143, %v1486
        %1488 = vmatprep.mubr.bf16.mxu0 %v1101
        %1489 = vmatmul.mubr.bf16.gmra.mrb[0].mxu0 %v1100
        %v1490 = vpop.f32.mrb[0].mxu0
        %v1491 = vadd.f32 %v1139, %v1490
        %v1492 = vpop.f32.mrb[0].mxu0
        %v1493 = vadd.f32 %v1143, %v1492
        %v1494 = vpop.f32.mrb[0].mxu0
        %v1495 = vadd.f32 %v1139, %v1494
        %v1496 = vpop.f32.mrb[0].mxu0
        %v1497 = vadd.f32 %v1143, %v1496
        %1498 = vdwg.mxu0
        %vm1499 = vcmp.ge.f32.partialorder %v1341, 0.0
        %vm1500 = vcmp.ge.f32.partialorder %v1343, 0.0
        %vm1501 = vcmp.ge.f32.partialorder %v1345, 0.0
        %vm1502 = vcmp.ge.f32.partialorder %v1347, 0.0
        %vm1503 = vcmp.ge.f32.partialorder %v1351, 0.0
        %vm1504 = vcmp.ge.f32.partialorder %v1353, 0.0
        %vm1505 = vcmp.ge.f32.partialorder %v1355, 0.0
        %vm1506 = vcmp.ge.f32.partialorder %v1357, 0.0
        %vm1507 = vcmp.ge.f32.partialorder %v1361, 0.0
        %vm1508 = vcmp.ge.f32.partialorder %v1363, 0.0
        %vm1509 = vcmp.ge.f32.partialorder %v1365, 0.0
        %vm1510 = vcmp.ge.f32.partialorder %v1367, 0.0
        %vm1511 = vcmp.ge.f32.partialorder %v1371, 0.0
        %vm1512 = vcmp.ge.f32.partialorder %v1373, 0.0
        %vm1513 = vcmp.ge.f32.partialorder %v1375, 0.0
        %vm1514 = vcmp.ge.f32.partialorder %v1377, 0.0
        %vm1515 = vcmp.ge.f32.partialorder %v1381, 0.0
        %vm1516 = vcmp.ge.f32.partialorder %v1383, 0.0
        %vm1517 = vcmp.ge.f32.partialorder %v1385, 0.0
        %vm1518 = vcmp.ge.f32.partialorder %v1387, 0.0
        %vm1519 = vcmp.ge.f32.partialorder %v1391, 0.0
        %vm1520 = vcmp.ge.f32.partialorder %v1393, 0.0
        %vm1521 = vcmp.ge.f32.partialorder %v1395, 0.0
        %vm1522 = vcmp.ge.f32.partialorder %v1397, 0.0
        %vm1523 = vcmp.ge.f32.partialorder %v1401, 0.0
        %vm1524 = vcmp.ge.f32.partialorder %v1403, 0.0
        %vm1525 = vcmp.ge.f32.partialorder %v1405, 0.0
        %vm1526 = vcmp.ge.f32.partialorder %v1407, 0.0
        %vm1527 = vcmp.ge.f32.partialorder %v1411, 0.0
        %vm1528 = vcmp.ge.f32.partialorder %v1413, 0.0
        %vm1529 = vcmp.ge.f32.partialorder %v1415, 0.0
        %vm1530 = vcmp.ge.f32.partialorder %v1417, 0.0
        %vm1531 = vcmp.ge.f32.partialorder %v1421, 0.0
        %vm1532 = vcmp.ge.f32.partialorder %v1423, 0.0
        %vm1533 = vcmp.ge.f32.partialorder %v1425, 0.0
        %vm1534 = vcmp.ge.f32.partialorder %v1427, 0.0
        %vm1535 = vcmp.ge.f32.partialorder %v1431, 0.0
        %vm1536 = vcmp.ge.f32.partialorder %v1433, 0.0
        %vm1537 = vcmp.ge.f32.partialorder %v1435, 0.0
        %vm1538 = vcmp.ge.f32.partialorder %v1437, 0.0
        %vm1539 = vcmp.ge.f32.partialorder %v1441, 0.0
        %vm1540 = vcmp.ge.f32.partialorder %v1443, 0.0
        %vm1541 = vcmp.ge.f32.partialorder %v1445, 0.0
        %vm1542 = vcmp.ge.f32.partialorder %v1447, 0.0
        %vm1543 = vcmp.ge.f32.partialorder %v1451, 0.0
        %vm1544 = vcmp.ge.f32.partialorder %v1453, 0.0
        %vm1545 = vcmp.ge.f32.partialorder %v1455, 0.0
        %vm1546 = vcmp.ge.f32.partialorder %v1457, 0.0
        %vm1547 = vcmp.ge.f32.partialorder %v1461, 0.0
        %vm1548 = vcmp.ge.f32.partialorder %v1463, 0.0
        %vm1549 = vcmp.ge.f32.partialorder %v1465, 0.0
        %vm1550 = vcmp.ge.f32.partialorder %v1467, 0.0
        %vm1551 = vcmp.ge.f32.partialorder %v1471, 0.0
        %vm1552 = vcmp.ge.f32.partialorder %v1473, 0.0
        %vm1553 = vcmp.ge.f32.partialorder %v1475, 0.0
        %vm1554 = vcmp.ge.f32.partialorder %v1477, 0.0
        %vm1555 = vcmp.ge.f32.partialorder %v1481, 0.0
        %vm1556 = vcmp.ge.f32.partialorder %v1483, 0.0
        %vm1557 = vcmp.ge.f32.partialorder %v1485, 0.0
        %vm1558 = vcmp.ge.f32.partialorder %v1487, 0.0
        %vm1559 = vcmp.ge.f32.partialorder %v1491, 0.0
        %vm1560 = vcmp.ge.f32.partialorder %v1493, 0.0
        %vm1561 = vcmp.ge.f32.partialorder %v1495, 0.0
        %vm1562 = vcmp.ge.f32.partialorder %v1497, 0.0
        %v1563 = vmul.f32 %v1341, 0.01
        %v1564 = vmul.f32 %v1343, 0.01
        %v1565 = vmul.f32 %v1345, 0.01
        %v1566 = vmul.f32 %v1347, 0.01
        %v1567 = vmul.f32 %v1351, 0.01
        %v1568 = vmul.f32 %v1353, 0.01
        %v1569 = vmul.f32 %v1355, 0.01
        %v1570 = vmul.f32 %v1357, 0.01
        %v1571 = vmul.f32 %v1361, 0.01
        %v1572 = vmul.f32 %v1363, 0.01
        %v1573 = vmul.f32 %v1365, 0.01
        %v1574 = vmul.f32 %v1367, 0.01
        %v1575 = vmul.f32 %v1371, 0.01
        %v1576 = vmul.f32 %v1373, 0.01
        %v1577 = vmul.f32 %v1375, 0.01
        %v1578 = vmul.f32 %v1377, 0.01
        %v1579 = vmul.f32 %v1381, 0.01
        %v1580 = vmul.f32 %v1383, 0.01
        %v1581 = vmul.f32 %v1385, 0.01
        %v1582 = vmul.f32 %v1387, 0.01
        %v1583 = vmul.f32 %v1391, 0.01
        %v1584 = vmul.f32 %v1393, 0.01
        %v1585 = vmul.f32 %v1395, 0.01
        %v1586 = vmul.f32 %v1397, 0.01
        %v1587 = vmul.f32 %v1401, 0.01
        %v1588 = vmul.f32 %v1403, 0.01
        %v1589 = vmul.f32 %v1405, 0.01
        %v1590 = vmul.f32 %v1407, 0.01
        %v1591 = vmul.f32 %v1411, 0.01
        %v1592 = vmul.f32 %v1413, 0.01
        %v1593 = vmul.f32 %v1415, 0.01
        %v1594 = vmul.f32 %v1417, 0.01
        %v1595 = vmul.f32 %v1421, 0.01
        %v1596 = vmul.f32 %v1423, 0.01
        %v1597 = vmul.f32 %v1425, 0.01
        %v1598 = vmul.f32 %v1427, 0.01
        %v1599 = vmul.f32 %v1431, 0.01
        %v1600 = vmul.f32 %v1433, 0.01
        %v1601 = vmul.f32 %v1435, 0.01
        %v1602 = vmul.f32 %v1437, 0.01
        %v1603 = vmul.f32 %v1441, 0.01
        %v1604 = vmul.f32 %v1443, 0.01
        %v1605 = vmul.f32 %v1445, 0.01
        %v1606 = vmul.f32 %v1447, 0.01
        %v1607 = vmul.f32 %v1451, 0.01
        %v1608 = vmul.f32 %v1453, 0.01
        %v1609 = vmul.f32 %v1455, 0.01
        %v1610 = vmul.f32 %v1457, 0.01
        %v1611 = vmul.f32 %v1461, 0.01
        %v1612 = vmul.f32 %v1463, 0.01
        %v1613 = vmul.f32 %v1465, 0.01
        %v1614 = vmul.f32 %v1467, 0.01
        %v1615 = vmul.f32 %v1471, 0.01
        %v1616 = vmul.f32 %v1473, 0.01
        %v1617 = vmul.f32 %v1475, 0.01
        %v1618 = vmul.f32 %v1477, 0.01
        %v1619 = vmul.f32 %v1481, 0.01
        %v1620 = vmul.f32 %v1483, 0.01
        %v1621 = vmul.f32 %v1485, 0.01
        %v1622 = vmul.f32 %v1487, 0.01
        %v1623 = vmul.f32 %v1491, 0.01
        %v1624 = vmul.f32 %v1493, 0.01
        %v1625 = vmul.f32 %v1495, 0.01
        %v1626 = vmul.f32 %v1497, 0.01
        %v1627 = vsel %vm1499, %v1341, %v1563
        %v1628 = vsel %vm1500, %v1343, %v1564
        %v1629 = vsel %vm1501, %v1345, %v1565
        %v1630 = vsel %vm1502, %v1347, %v1566
        %v1631 = vsel %vm1503, %v1351, %v1567
        %v1632 = vsel %vm1504, %v1353, %v1568
        %v1633 = vsel %vm1505, %v1355, %v1569
        %v1634 = vsel %vm1506, %v1357, %v1570
        %v1635 = vsel %vm1507, %v1361, %v1571
        %v1636 = vsel %vm1508, %v1363, %v1572
        %v1637 = vsel %vm1509, %v1365, %v1573
        %v1638 = vsel %vm1510, %v1367, %v1574
        %v1639 = vsel %vm1511, %v1371, %v1575
        %v1640 = vsel %vm1512, %v1373, %v1576
        %v1641 = vsel %vm1513, %v1375, %v1577
        %v1642 = vsel %vm1514, %v1377, %v1578
        %v1643 = vsel %vm1515, %v1381, %v1579
        %v1644 = vsel %vm1516, %v1383, %v1580
        %v1645 = vsel %vm1517, %v1385, %v1581
        %v1646 = vsel %vm1518, %v1387, %v1582
        %v1647 = vsel %vm1519, %v1391, %v1583
        %v1648 = vsel %vm1520, %v1393, %v1584
        %v1649 = vsel %vm1521, %v1395, %v1585
        %v1650 = vsel %vm1522, %v1397, %v1586
        %v1651 = vsel %vm1523, %v1401, %v1587
        %v1652 = vsel %vm1524, %v1403, %v1588
        %v1653 = vsel %vm1525, %v1405, %v1589
        %v1654 = vsel %vm1526, %v1407, %v1590
        %v1655 = vsel %vm1527, %v1411, %v1591
        %v1656 = vsel %vm1528, %v1413, %v1592
        %v1657 = vsel %vm1529, %v1415, %v1593
        %v1658 = vsel %vm1530, %v1417, %v1594
        %v1659 = vsel %vm1531, %v1421, %v1595
        %v1660 = vsel %vm1532, %v1423, %v1596
        %v1661 = vsel %vm1533, %v1425, %v1597
        %v1662 = vsel %vm1534, %v1427, %v1598
        %v1663 = vsel %vm1535, %v1431, %v1599
        %v1664 = vsel %vm1536, %v1433, %v1600
        %v1665 = vsel %vm1537, %v1435, %v1601
        %v1666 = vsel %vm1538, %v1437, %v1602
        %v1667 = vsel %vm1539, %v1441, %v1603
        %v1668 = vsel %vm1540, %v1443, %v1604
        %v1669 = vsel %vm1541, %v1445, %v1605
        %v1670 = vsel %vm1542, %v1447, %v1606
        %v1671 = vsel %vm1543, %v1451, %v1607
        %v1672 = vsel %vm1544, %v1453, %v1608
        %v1673 = vsel %vm1545, %v1455, %v1609
        %v1674 = vsel %vm1546, %v1457, %v1610
        %v1675 = vsel %vm1547, %v1461, %v1611
        %v1676 = vsel %vm1548, %v1463, %v1612
        %v1677 = vsel %vm1549, %v1465, %v1613
        %v1678 = vsel %vm1550, %v1467, %v1614
        %v1679 = vsel %vm1551, %v1471, %v1615
        %v1680 = vsel %vm1552, %v1473, %v1616
        %v1681 = vsel %vm1553, %v1475, %v1617
        %v1682 = vsel %vm1554, %v1477, %v1618
        %v1683 = vsel %vm1555, %v1481, %v1619
        %v1684 = vsel %vm1556, %v1483, %v1620
        %v1685 = vsel %vm1557, %v1485, %v1621
        %v1686 = vsel %vm1558, %v1487, %v1622
        %v1687 = vsel %vm1559, %v1491, %v1623
        %v1688 = vsel %vm1560, %v1493, %v1624
        %v1689 = vsel %vm1561, %v1495, %v1625
        %v1690 = vsel %vm1562, %v1497, %v1626
        %v1691 = vpack.c.bf16 %v1629, %v1627
        %v1692 = vpack.c.bf16 %v1630, %v1628
        %v1693 = vpack.c.bf16 %v1633, %v1631
        %v1694 = vpack.c.bf16 %v1634, %v1632
        %v1695 = vpack.c.bf16 %v1637, %v1635
        %v1696 = vpack.c.bf16 %v1638, %v1636
        %v1697 = vpack.c.bf16 %v1641, %v1639
        %v1698 = vpack.c.bf16 %v1642, %v1640
        %v1699 = vpack.c.bf16 %v1645, %v1643
        %v1700 = vpack.c.bf16 %v1646, %v1644
        %v1701 = vpack.c.bf16 %v1649, %v1647
        %v1702 = vpack.c.bf16 %v1650, %v1648
        %v1703 = vpack.c.bf16 %v1653, %v1651
        %v1704 = vpack.c.bf16 %v1654, %v1652
        %v1705 = vpack.c.bf16 %v1657, %v1655
        %v1706 = vpack.c.bf16 %v1658, %v1656
        %v1707 = vpack.c.bf16 %v1661, %v1659
        %v1708 = vpack.c.bf16 %v1662, %v1660
        %v1709 = vpack.c.bf16 %v1665, %v1663
        %v1710 = vpack.c.bf16 %v1666, %v1664
        %v1711 = vpack.c.bf16 %v1669, %v1667
        %v1712 = vpack.c.bf16 %v1670, %v1668
        %v1713 = vpack.c.bf16 %v1673, %v1671
        %v1714 = vpack.c.bf16 %v1674, %v1672
        %v1715 = vpack.c.bf16 %v1677, %v1675
        %v1716 = vpack.c.bf16 %v1678, %v1676
        %v1717 = vpack.c.bf16 %v1681, %v1679
        %v1718 = vpack.c.bf16 %v1682, %v1680
        %v1719 = vpack.c.bf16 %v1685, %v1683
        %v1720 = vpack.c.bf16 %v1686, %v1684
        %v1721 = vpack.c.bf16 %v1689, %v1687
        %v1722 = vpack.c.bf16 %v1690, %v1688
        %v1723 = vld [vmem:[#allocation10] sm:$0xf]
        %v1724 = vld [vmem:[#allocation10 + $0x4] sm:$0xf]
        %v1725 = vld [vmem:[#allocation10 + $0x8] sm:$0xf]
        %v1726 = vld [vmem:[#allocation10 + $0xc] sm:$0xf]
        %v1727 = vld [vmem:[#allocation10 + $0x10] sm:$0xf]
        %v1728 = vld [vmem:[#allocation10 + $0x14] sm:$0xf]
        %v1729 = vld [vmem:[#allocation10 + $0x18] sm:$0xf]
        %v1730 = vld [vmem:[#allocation10 + $0x1c] sm:$0xf]
        %v1731 = vld [vmem:[#allocation10 + $0x20] sm:$0xf]
        %v1732 = vld [vmem:[#allocation10 + $0x24] sm:$0xf]
        %v1733 = vld [vmem:[#allocation10 + $0x28] sm:$0xf]
        %v1734 = vld [vmem:[#allocation10 + $0x2c] sm:$0xf]
        %v1735 = vld [vmem:[#allocation10 + $0x30] sm:$0xf]
        %v1736 = vld [vmem:[#allocation10 + $0x34] sm:$0xf]
        %v1737 = vld [vmem:[#allocation10 + $0x38] sm:$0xf]
        %v1738 = vld [vmem:[#allocation10 + $0x3c] sm:$0xf]
        %v1739 = vld [vmem:[#allocation10 + $0x40] sm:$0xf]
        %v1740 = vld [vmem:[#allocation10 + $0x44] sm:$0xf]
        %v1741 = vld [vmem:[#allocation10 + $0x48] sm:$0xf]
        %v1742 = vld [vmem:[#allocation10 + $0x4c] sm:$0xf]
        %v1743 = vld [vmem:[#allocation10 + $0x50] sm:$0xf]
        %v1744 = vld [vmem:[#allocation10 + $0x54] sm:$0xf]
        %v1745 = vld [vmem:[#allocation10 + $0x58] sm:$0xf]
        %v1746 = vld [vmem:[#allocation10 + $0x5c] sm:$0xf]
        %v1747 = vld [vmem:[#allocation10 + $0x60] sm:$0xf]
        %v1748 = vld [vmem:[#allocation10 + $0x64] sm:$0xf]
        %v1749 = vld [vmem:[#allocation10 + $0x68] sm:$0xf]
        %v1750 = vld [vmem:[#allocation10 + $0x6c] sm:$0xf]
        %v1751 = vld [vmem:[#allocation10 + $0x70] sm:$0xf]
        %v1752 = vld [vmem:[#allocation10 + $0x74] sm:$0xf]
        %v1753 = vld [vmem:[#allocation10 + $0x78] sm:$0xf]
        %v1754 = vld [vmem:[#allocation10 + $0x7c] sm:$0xf]
        %v1755 = vld [vmem:[%s7] sm:$0x1]
        %v1757 = vlaneseq
        %v1758 = vshrl.u32 %v1757, 7
        %v1759 = vsub.s32 0, %v1758
        %v1760 = vrot.slane %v1755, %v1759
        %v1794 = vunpack.c.l.b16 %v1723
        %v1795 = vunpack.c.l.b16 %v1724
        %v1796 = vunpack.c.l.b16 %v1725
        %v1797 = vunpack.c.l.b16 %v1726
        %v1798 = vunpack.c.l.b16 %v1727
        %v1799 = vunpack.c.l.b16 %v1728
        %v1800 = vunpack.c.l.b16 %v1729
        %v1801 = vunpack.c.l.b16 %v1730
        %v1802 = vunpack.c.l.b16 %v1731
        %v1803 = vunpack.c.l.b16 %v1732
        %v1804 = vunpack.c.l.b16 %v1733
        %v1805 = vunpack.c.l.b16 %v1734
        %v1806 = vunpack.c.l.b16 %v1735
        %v1807 = vunpack.c.l.b16 %v1736
        %v1808 = vunpack.c.l.b16 %v1737
        %v1809 = vunpack.c.l.b16 %v1738
        %v1810 = vunpack.c.l.b16 %v1739
        %v1811 = vunpack.c.l.b16 %v1740
        %v1812 = vunpack.c.l.b16 %v1741
        %v1813 = vunpack.c.l.b16 %v1742
        %v1814 = vunpack.c.l.b16 %v1743
        %v1815 = vunpack.c.l.b16 %v1744
        %v1816 = vunpack.c.l.b16 %v1745
        %v1817 = vunpack.c.l.b16 %v1746
        %v1818 = vunpack.c.l.b16 %v1747
        %v1819 = vunpack.c.l.b16 %v1748
        %v1820 = vunpack.c.l.b16 %v1749
        %v1821 = vunpack.c.l.b16 %v1750
        %v1822 = vunpack.c.l.b16 %v1751
        %v1823 = vunpack.c.l.b16 %v1752
        %v1824 = vunpack.c.l.b16 %v1753
        %v1825 = vunpack.c.l.b16 %v1754
        %v1826 = vpack.c.b16 %v1795, %v1794
        %v1827 = vpack.c.b16 %v1797, %v1796
        %v1828 = vpack.c.b16 %v1799, %v1798
        %v1829 = vpack.c.b16 %v1801, %v1800
        %v1830 = vpack.c.b16 %v1803, %v1802
        %v1831 = vpack.c.b16 %v1805, %v1804
        %v1832 = vpack.c.b16 %v1807, %v1806
        %v1833 = vpack.c.b16 %v1809, %v1808
        %v1834 = vpack.c.b16 %v1811, %v1810
        %v1835 = vpack.c.b16 %v1813, %v1812
        %v1836 = vpack.c.b16 %v1815, %v1814
        %v1837 = vpack.c.b16 %v1817, %v1816
        %v1838 = vpack.c.b16 %v1819, %v1818
        %v1839 = vpack.c.b16 %v1821, %v1820
        %v1840 = vpack.c.b16 %v1823, %v1822
        %v1841 = vpack.c.b16 %v1825, %v1824
        %1858 = vmatprep.subr.bf16.mxu0 0
        %1859 = vmatpush1.bf16.msra.mxu0 %v1826
        %1860 = vmatprep.subr.bf16.mxu0 0
        %1861 = vmatpush1.bf16.msra.mxu0 %v1827
        %1862 = vmatprep.subr.bf16.mxu0 0
        %1863 = vmatpush1.bf16.msra.mxu0 %v1828
        %1864 = vmatprep.subr.bf16.mxu0 0
        %1865 = vmatpush1.bf16.msra.mxu0 %v1829
        %1866 = vmatprep.subr.bf16.mxu0 0
        %1867 = vmatpush1.bf16.msra.mxu0 %v1830
        %1868 = vmatprep.subr.bf16.mxu0 0
        %1869 = vmatpush1.bf16.msra.mxu0 %v1831
        %1870 = vmatprep.subr.bf16.mxu0 0
        %1871 = vmatpush1.bf16.msra.mxu0 %v1832
        %1872 = vmatprep.subr.bf16.mxu0 0
        %1873 = vmatpush1.bf16.msra.mxu0 %v1833
        %1874 = vmatprep.subr.bf16.mxu0 0
        %1875 = vmatpush1.bf16.msra.mxu0 %v1834
        %1876 = vmatprep.subr.bf16.mxu0 0
        %1877 = vmatpush1.bf16.msra.mxu0 %v1835
        %1878 = vmatprep.subr.bf16.mxu0 0
        %1879 = vmatpush1.bf16.msra.mxu0 %v1836
        %1880 = vmatprep.subr.bf16.mxu0 0
        %1881 = vmatpush1.bf16.msra.mxu0 %v1837
        %1882 = vmatprep.subr.bf16.mxu0 0
        %1883 = vmatpush1.bf16.msra.mxu0 %v1838
        %1884 = vmatprep.subr.bf16.mxu0 0
        %1885 = vmatpush1.bf16.msra.mxu0 %v1839
        %1886 = vmatprep.subr.bf16.mxu0 0
        %1887 = vmatpush1.bf16.msra.mxu0 %v1840
        %1888 = vmatprep.subr.bf16.mxu0 0
        %1889 = vmatpush1.bf16.msra.mxu0 %v1841
        %1890 = vmatprep.mubr.bf16.mxu0 %v1692
        %1891 = vmatmul.mubr.bf16.gmra.mrb[0].mxu0 %v1691
        %v1892 = vpop.f32.mrb[0].mxu0
        %v1893 = vadd.f32 %v1760, %v1892
        %v1894 = vpop.f32.mrb[0].mxu0
        %v1895 = vpop.f32.mrb[0].mxu0
        %v1896 = vadd.f32 %v1760, %v1895
        %v1897 = vpop.f32.mrb[0].mxu0
        %1898 = vmatprep.mubr.bf16.mxu0 %v1694
        %1899 = vmatmul.mubr.bf16.gmra.mrb[0].mxu0 %v1693
        %v1900 = vpop.f32.mrb[0].mxu0
        %v1901 = vadd.f32 %v1760, %v1900
        %v1902 = vpop.f32.mrb[0].mxu0
        %v1903 = vpop.f32.mrb[0].mxu0
        %v1904 = vadd.f32 %v1760, %v1903
        %v1905 = vpop.f32.mrb[0].mxu0
        %1906 = vmatprep.mubr.bf16.mxu0 %v1696
        %1907 = vmatmul.mubr.bf16.gmra.mrb[0].mxu0 %v1695
        %v1908 = vpop.f32.mrb[0].mxu0
        %v1909 = vadd.f32 %v1760, %v1908
        %v1910 = vpop.f32.mrb[0].mxu0
        %v1911 = vpop.f32.mrb[0].mxu0
        %v1912 = vadd.f32 %v1760, %v1911
        %v1913 = vpop.f32.mrb[0].mxu0
        %1914 = vmatprep.mubr.bf16.mxu0 %v1698
        %1915 = vmatmul.mubr.bf16.gmra.mrb[0].mxu0 %v1697
        %v1916 = vpop.f32.mrb[0].mxu0
        %v1917 = vadd.f32 %v1760, %v1916
        %v1918 = vpop.f32.mrb[0].mxu0
        %v1919 = vpop.f32.mrb[0].mxu0
        %v1920 = vadd.f32 %v1760, %v1919
        %v1921 = vpop.f32.mrb[0].mxu0
        %1922 = vmatprep.mubr.bf16.mxu0 %v1700
        %1923 = vmatmul.mubr.bf16.gmra.mrb[0].mxu0 %v1699
        %v1924 = vpop.f32.mrb[0].mxu0
        %v1925 = vadd.f32 %v1760, %v1924
        %v1926 = vpop.f32.mrb[0].mxu0
        %v1927 = vpop.f32.mrb[0].mxu0
        %v1928 = vadd.f32 %v1760, %v1927
        %v1929 = vpop.f32.mrb[0].mxu0
        %1930 = vmatprep.mubr.bf16.mxu0 %v1702
        %1931 = vmatmul.mubr.bf16.gmra.mrb[0].mxu0 %v1701
        %v1932 = vpop.f32.mrb[0].mxu0
        %v1933 = vadd.f32 %v1760, %v1932
        %v1934 = vpop.f32.mrb[0].mxu0
        %v1935 = vpop.f32.mrb[0].mxu0
        %v1936 = vadd.f32 %v1760, %v1935
        %v1937 = vpop.f32.mrb[0].mxu0
        %1938 = vmatprep.mubr.bf16.mxu0 %v1704
        %1939 = vmatmul.mubr.bf16.gmra.mrb[0].mxu0 %v1703
        %v1940 = vpop.f32.mrb[0].mxu0
        %v1941 = vadd.f32 %v1760, %v1940
        %v1942 = vpop.f32.mrb[0].mxu0
        %v1943 = vpop.f32.mrb[0].mxu0
        %v1944 = vadd.f32 %v1760, %v1943
        %v1945 = vpop.f32.mrb[0].mxu0
        %1946 = vmatprep.mubr.bf16.mxu0 %v1706
        %1947 = vmatmul.mubr.bf16.gmra.mrb[0].mxu0 %v1705
        %v1948 = vpop.f32.mrb[0].mxu0
        %v1949 = vadd.f32 %v1760, %v1948
        %v1950 = vpop.f32.mrb[0].mxu0
        %v1951 = vpop.f32.mrb[0].mxu0
        %v1952 = vadd.f32 %v1760, %v1951
        %v1953 = vpop.f32.mrb[0].mxu0
        %1954 = vmatprep.mubr.bf16.mxu0 %v1708
        %1955 = vmatmul.mubr.bf16.gmra.mrb[0].mxu0 %v1707
        %v1956 = vpop.f32.mrb[0].mxu0
        %v1957 = vadd.f32 %v1760, %v1956
        %v1958 = vpop.f32.mrb[0].mxu0
        %v1959 = vpop.f32.mrb[0].mxu0
        %v1960 = vadd.f32 %v1760, %v1959
        %v1961 = vpop.f32.mrb[0].mxu0
        %1962 = vmatprep.mubr.bf16.mxu0 %v1710
        %1963 = vmatmul.mubr.bf16.gmra.mrb[0].mxu0 %v1709
        %v1964 = vpop.f32.mrb[0].mxu0
        %v1965 = vadd.f32 %v1760, %v1964
        %v1966 = vpop.f32.mrb[0].mxu0
        %v1967 = vpop.f32.mrb[0].mxu0
        %v1968 = vadd.f32 %v1760, %v1967
        %v1969 = vpop.f32.mrb[0].mxu0
        %1970 = vmatprep.mubr.bf16.mxu0 %v1712
        %1971 = vmatmul.mubr.bf16.gmra.mrb[0].mxu0 %v1711
        %v1972 = vpop.f32.mrb[0].mxu0
        %v1973 = vadd.f32 %v1760, %v1972
        %v1974 = vpop.f32.mrb[0].mxu0
        %v1975 = vpop.f32.mrb[0].mxu0
        %v1976 = vadd.f32 %v1760, %v1975
        %v1977 = vpop.f32.mrb[0].mxu0
        %1978 = vmatprep.mubr.bf16.mxu0 %v1714
        %1979 = vmatmul.mubr.bf16.gmra.mrb[0].mxu0 %v1713
        %v1980 = vpop.f32.mrb[0].mxu0
        %v1981 = vadd.f32 %v1760, %v1980
        %v1982 = vpop.f32.mrb[0].mxu0
        %v1983 = vpop.f32.mrb[0].mxu0
        %v1984 = vadd.f32 %v1760, %v1983
        %v1985 = vpop.f32.mrb[0].mxu0
        %1986 = vmatprep.mubr.bf16.mxu0 %v1716
        %1987 = vmatmul.mubr.bf16.gmra.mrb[0].mxu0 %v1715
        %v1988 = vpop.f32.mrb[0].mxu0
        %v1989 = vadd.f32 %v1760, %v1988
        %v1990 = vpop.f32.mrb[0].mxu0
        %v1991 = vpop.f32.mrb[0].mxu0
        %v1992 = vadd.f32 %v1760, %v1991
        %v1993 = vpop.f32.mrb[0].mxu0
        %1994 = vmatprep.mubr.bf16.mxu0 %v1718
        %1995 = vmatmul.mubr.bf16.gmra.mrb[0].mxu0 %v1717
        %v1996 = vpop.f32.mrb[0].mxu0
        %v1997 = vadd.f32 %v1760, %v1996
        %v1998 = vpop.f32.mrb[0].mxu0
        %v1999 = vpop.f32.mrb[0].mxu0
        %v2000 = vadd.f32 %v1760, %v1999
        %v2001 = vpop.f32.mrb[0].mxu0
        %2002 = vmatprep.mubr.bf16.mxu0 %v1720
        %2003 = vmatmul.mubr.bf16.gmra.mrb[0].mxu0 %v1719
        %v2004 = vpop.f32.mrb[0].mxu0
        %v2005 = vadd.f32 %v1760, %v2004
        %v2006 = vpop.f32.mrb[0].mxu0
        %v2007 = vpop.f32.mrb[0].mxu0
        %v2008 = vadd.f32 %v1760, %v2007
        %v2009 = vpop.f32.mrb[0].mxu0
        %2010 = vmatprep.mubr.bf16.mxu0 %v1722
        %2011 = vmatmul.mubr.bf16.gmra.mrb[0].mxu0 %v1721
        %v2012 = vpop.f32.mrb[0].mxu0
        %v2013 = vadd.f32 %v1760, %v2012
        %v2014 = vpop.f32.mrb[0].mxu0
        %v2015 = vpop.f32.mrb[0].mxu0
        %v2016 = vadd.f32 %v1760, %v2015
        %v2017 = vpop.f32.mrb[0].mxu0
        %2018 = vdwg.mxu0
        %vm2019 = vcmp.ge.f32.partialorder %v1893, 0.0
        %vm2020 = vcmp.ge.f32.partialorder %v1896, 0.0
        %vm2021 = vcmp.ge.f32.partialorder %v1901, 0.0
        %vm2022 = vcmp.ge.f32.partialorder %v1904, 0.0
        %vm2023 = vcmp.ge.f32.partialorder %v1909, 0.0
        %vm2024 = vcmp.ge.f32.partialorder %v1912, 0.0
        %vm2025 = vcmp.ge.f32.partialorder %v1917, 0.0
        %vm2026 = vcmp.ge.f32.partialorder %v1920, 0.0
        %vm2027 = vcmp.ge.f32.partialorder %v1925, 0.0
        %vm2028 = vcmp.ge.f32.partialorder %v1928, 0.0
        %vm2029 = vcmp.ge.f32.partialorder %v1933, 0.0
        %vm2030 = vcmp.ge.f32.partialorder %v1936, 0.0
        %vm2031 = vcmp.ge.f32.partialorder %v1941, 0.0
        %vm2032 = vcmp.ge.f32.partialorder %v1944, 0.0
        %vm2033 = vcmp.ge.f32.partialorder %v1949, 0.0
        %vm2034 = vcmp.ge.f32.partialorder %v1952, 0.0
        %vm2035 = vcmp.ge.f32.partialorder %v1957, 0.0
        %vm2036 = vcmp.ge.f32.partialorder %v1960, 0.0
        %vm2037 = vcmp.ge.f32.partialorder %v1965, 0.0
        %vm2038 = vcmp.ge.f32.partialorder %v1968, 0.0
        %vm2039 = vcmp.ge.f32.partialorder %v1973, 0.0
        %vm2040 = vcmp.ge.f32.partialorder %v1976, 0.0
        %vm2041 = vcmp.ge.f32.partialorder %v1981, 0.0
        %vm2042 = vcmp.ge.f32.partialorder %v1984, 0.0
        %vm2043 = vcmp.ge.f32.partialorder %v1989, 0.0
        %vm2044 = vcmp.ge.f32.partialorder %v1992, 0.0
        %vm2045 = vcmp.ge.f32.partialorder %v1997, 0.0
        %vm2046 = vcmp.ge.f32.partialorder %v2000, 0.0
        %vm2047 = vcmp.ge.f32.partialorder %v2005, 0.0
        %vm2048 = vcmp.ge.f32.partialorder %v2008, 0.0
        %vm2049 = vcmp.ge.f32.partialorder %v2013, 0.0
        %vm2050 = vcmp.ge.f32.partialorder %v2016, 0.0
        %v2051 = vmul.f32 %v1893, 0.01
        %v2052 = vmul.f32 %v1896, 0.01
        %v2053 = vmul.f32 %v1901, 0.01
        %v2054 = vmul.f32 %v1904, 0.01
        %v2055 = vmul.f32 %v1909, 0.01
        %v2056 = vmul.f32 %v1912, 0.01
        %v2057 = vmul.f32 %v1917, 0.01
        %v2058 = vmul.f32 %v1920, 0.01
        %v2059 = vmul.f32 %v1925, 0.01
        %v2060 = vmul.f32 %v1928, 0.01
        %v2061 = vmul.f32 %v1933, 0.01
        %v2062 = vmul.f32 %v1936, 0.01
        %v2063 = vmul.f32 %v1941, 0.01
        %v2064 = vmul.f32 %v1944, 0.01
        %v2065 = vmul.f32 %v1949, 0.01
        %v2066 = vmul.f32 %v1952, 0.01
        %v2067 = vmul.f32 %v1957, 0.01
        %v2068 = vmul.f32 %v1960, 0.01
        %v2069 = vmul.f32 %v1965, 0.01
        %v2070 = vmul.f32 %v1968, 0.01
        %v2071 = vmul.f32 %v1973, 0.01
        %v2072 = vmul.f32 %v1976, 0.01
        %v2073 = vmul.f32 %v1981, 0.01
        %v2074 = vmul.f32 %v1984, 0.01
        %v2075 = vmul.f32 %v1989, 0.01
        %v2076 = vmul.f32 %v1992, 0.01
        %v2077 = vmul.f32 %v1997, 0.01
        %v2078 = vmul.f32 %v2000, 0.01
        %v2079 = vmul.f32 %v2005, 0.01
        %v2080 = vmul.f32 %v2008, 0.01
        %v2081 = vmul.f32 %v2013, 0.01
        %v2082 = vmul.f32 %v2016, 0.01
        %v2083 = vsel %vm2019, %v1893, %v2051
        %v2084 = vsel %vm2020, %v1896, %v2052
        %v2085 = vsel %vm2021, %v1901, %v2053
        %v2086 = vsel %vm2022, %v1904, %v2054
        %v2087 = vsel %vm2023, %v1909, %v2055
        %v2088 = vsel %vm2024, %v1912, %v2056
        %v2089 = vsel %vm2025, %v1917, %v2057
        %v2090 = vsel %vm2026, %v1920, %v2058
        %v2091 = vsel %vm2027, %v1925, %v2059
        %v2092 = vsel %vm2028, %v1928, %v2060
        %v2093 = vsel %vm2029, %v1933, %v2061
        %v2094 = vsel %vm2030, %v1936, %v2062
        %v2095 = vsel %vm2031, %v1941, %v2063
        %v2096 = vsel %vm2032, %v1944, %v2064
        %v2097 = vsel %vm2033, %v1949, %v2065
        %v2098 = vsel %vm2034, %v1952, %v2066
        %v2099 = vsel %vm2035, %v1957, %v2067
        %v2100 = vsel %vm2036, %v1960, %v2068
        %v2101 = vsel %vm2037, %v1965, %v2069
        %v2102 = vsel %vm2038, %v1968, %v2070
        %v2103 = vsel %vm2039, %v1973, %v2071
        %v2104 = vsel %vm2040, %v1976, %v2072
        %v2105 = vsel %vm2041, %v1981, %v2073
        %v2106 = vsel %vm2042, %v1984, %v2074
        %v2107 = vsel %vm2043, %v1989, %v2075
        %v2108 = vsel %vm2044, %v1992, %v2076
        %v2109 = vsel %vm2045, %v1997, %v2077
        %v2110 = vsel %vm2046, %v2000, %v2078
        %v2111 = vsel %vm2047, %v2005, %v2079
        %v2112 = vsel %vm2048, %v2008, %v2080
        %v2113 = vsel %vm2049, %v2013, %v2081
        %v2114 = vsel %vm2050, %v2016, %v2082
        %v2115 = vpack.c.bf16 %v2084, %v2083
        %v2116 = vpack.c.bf16 %v2086, %v2085
        %v2117 = vpack.c.bf16 %v2088, %v2087
        %v2118 = vpack.c.bf16 %v2090, %v2089
        %v2119 = vpack.c.bf16 %v2092, %v2091
        %v2120 = vpack.c.bf16 %v2094, %v2093
        %v2121 = vpack.c.bf16 %v2096, %v2095
        %v2122 = vpack.c.bf16 %v2098, %v2097
        %v2123 = vpack.c.bf16 %v2100, %v2099
        %v2124 = vpack.c.bf16 %v2102, %v2101
        %v2125 = vpack.c.bf16 %v2104, %v2103
        %v2126 = vpack.c.bf16 %v2106, %v2105
        %v2127 = vpack.c.bf16 %v2108, %v2107
        %v2128 = vpack.c.bf16 %v2110, %v2109
        %v2129 = vpack.c.bf16 %v2112, %v2111
        %v2130 = vpack.c.bf16 %v2114, %v2113
        %v2131 = vld [vmem:[#allocation11] sm:$0xf]
        %v2132 = vld [vmem:[#allocation11 + $0x4] sm:$0xf]
        %v2133 = vld [vmem:[#allocation11 + $0x8] sm:$0xf]
        %v2134 = vld [vmem:[#allocation11 + $0xc] sm:$0xf]
        %v2135 = vld [vmem:[#allocation11 + $0x10] sm:$0xf]
        %v2136 = vld [vmem:[#allocation11 + $0x14] sm:$0xf]
        %v2137 = vld [vmem:[#allocation11 + $0x18] sm:$0xf]
        %v2138 = vld [vmem:[#allocation11 + $0x1c] sm:$0xf]
        %v2139 = vld [vmem:[#allocation11 + $0x20] sm:$0xf]
        %v2140 = vld [vmem:[#allocation11 + $0x24] sm:$0xf]
        %v2141 = vld [vmem:[#allocation11 + $0x28] sm:$0xf]
        %v2142 = vld [vmem:[#allocation11 + $0x2c] sm:$0xf]
        %v2143 = vld [vmem:[#allocation11 + $0x30] sm:$0xf]
        %v2144 = vld [vmem:[#allocation11 + $0x34] sm:$0xf]
        %v2145 = vld [vmem:[#allocation11 + $0x38] sm:$0xf]
        %v2146 = vld [vmem:[#allocation11 + $0x3c] sm:$0xf]
        %v2147 = vld [vmem:[%s9] sm:$0x1]
        %v2149 = vlaneseq
        %v2150 = vshrl.u32 %v2149, 7
        %v2151 = vsub.s32 0, %v2150
        %v2152 = vrot.slane %v2147, %v2151
        %v2170 = vunpack.c.l.b16 %v2131
        %v2171 = vunpack.c.l.b16 %v2132
        %v2172 = vunpack.c.l.b16 %v2133
        %v2173 = vunpack.c.l.b16 %v2134
        %v2174 = vunpack.c.l.b16 %v2135
        %v2175 = vunpack.c.l.b16 %v2136
        %v2176 = vunpack.c.l.b16 %v2137
        %v2177 = vunpack.c.l.b16 %v2138
        %v2178 = vunpack.c.l.b16 %v2139
        %v2179 = vunpack.c.l.b16 %v2140
        %v2180 = vunpack.c.l.b16 %v2141
        %v2181 = vunpack.c.l.b16 %v2142
        %v2182 = vunpack.c.l.b16 %v2143
        %v2183 = vunpack.c.l.b16 %v2144
        %v2184 = vunpack.c.l.b16 %v2145
        %v2185 = vunpack.c.l.b16 %v2146
        %v2186 = vpack.c.b16 %v2171, %v2170
        %v2187 = vpack.c.b16 %v2173, %v2172
        %v2188 = vpack.c.b16 %v2175, %v2174
        %v2189 = vpack.c.b16 %v2177, %v2176
        %v2190 = vpack.c.b16 %v2179, %v2178
        %v2191 = vpack.c.b16 %v2181, %v2180
        %v2192 = vpack.c.b16 %v2183, %v2182
        %v2193 = vpack.c.b16 %v2185, %v2184
        %2202 = vmatprep.subr.bf16.mxu0 0
        %2203 = vmatpush1.bf16.msra.mxu0 %v2186
        %2204 = vmatprep.subr.bf16.mxu0 0
        %2205 = vmatpush1.bf16.msra.mxu0 %v2187
        %2206 = vmatprep.subr.bf16.mxu0 0
        %2207 = vmatpush1.bf16.msra.mxu0 %v2188
        %2208 = vmatprep.subr.bf16.mxu0 0
        %2209 = vmatpush1.bf16.msra.mxu0 %v2189
        %2210 = vmatprep.subr.bf16.mxu0 0
        %2211 = vmatpush1.bf16.msra.mxu0 %v2190
        %2212 = vmatprep.subr.bf16.mxu0 0
        %2213 = vmatpush1.bf16.msra.mxu0 %v2191
        %2214 = vmatprep.subr.bf16.mxu0 0
        %2215 = vmatpush1.bf16.msra.mxu0 %v2192
        %2216 = vmatprep.subr.bf16.mxu0 0
        %2217 = vmatpush1.bf16.msra.mxu0 %v2193
        %2218 = vmatprep.subr.bf16.mxu0 0
        %2219 = vmatpush1.bf16.msra.mxu0 0
        %2220 = vmatprep.subr.bf16.mxu0 0
        %2221 = vmatpush1.bf16.msra.mxu0 0
        %2222 = vmatprep.subr.bf16.mxu0 0
        %2223 = vmatpush1.bf16.msra.mxu0 0
        %2224 = vmatprep.subr.bf16.mxu0 0
        %2225 = vmatpush1.bf16.msra.mxu0 0
        %2226 = vmatprep.subr.bf16.mxu0 0
        %2227 = vmatpush1.bf16.msra.mxu0 0
        %2228 = vmatprep.subr.bf16.mxu0 0
        %2229 = vmatpush1.bf16.msra.mxu0 0
        %2230 = vmatprep.subr.bf16.mxu0 0
        %2231 = vmatpush1.bf16.msra.mxu0 0
        %2232 = vmatprep.subr.bf16.mxu0 0
        %2233 = vmatpush1.bf16.msra.mxu0 0
        %2234 = vmatprep.mubr.bf16.mxu0 0
        %2235 = vmatmul.mubr.bf16.gmra.mrb[0].mxu0 %v2115
        %v2236 = vpop.f32.mrb[0].mxu0
        %v2237 = vadd.f32 %v2152, %v2236
        %v2238 = vpop.f32.mrb[0].mxu0
        %v2239 = vpop.f32.mrb[0].mxu0
        %v2240 = vadd.f32 %v2152, %v2239
        %v2241 = vpop.f32.mrb[0].mxu0
        %2242 = vmatprep.mubr.bf16.mxu0 0
        %2243 = vmatmul.mubr.bf16.gmra.mrb[0].mxu0 %v2116
        %v2244 = vpop.f32.mrb[0].mxu0
        %v2245 = vadd.f32 %v2152, %v2244
        %v2246 = vpop.f32.mrb[0].mxu0
        %v2247 = vpop.f32.mrb[0].mxu0
        %v2248 = vadd.f32 %v2152, %v2247
        %v2249 = vpop.f32.mrb[0].mxu0
        %2250 = vmatprep.mubr.bf16.mxu0 0
        %2251 = vmatmul.mubr.bf16.gmra.mrb[0].mxu0 %v2117
        %v2252 = vpop.f32.mrb[0].mxu0
        %v2253 = vadd.f32 %v2152, %v2252
        %v2254 = vpop.f32.mrb[0].mxu0
        %v2255 = vpop.f32.mrb[0].mxu0
        %v2256 = vadd.f32 %v2152, %v2255
        %v2257 = vpop.f32.mrb[0].mxu0
        %2258 = vmatprep.mubr.bf16.mxu0 0
        %2259 = vmatmul.mubr.bf16.gmra.mrb[0].mxu0 %v2118
        %v2260 = vpop.f32.mrb[0].mxu0
        %v2261 = vadd.f32 %v2152, %v2260
        %v2262 = vpop.f32.mrb[0].mxu0
        %v2263 = vpop.f32.mrb[0].mxu0
        %v2264 = vadd.f32 %v2152, %v2263
        %v2265 = vpop.f32.mrb[0].mxu0
        %2266 = vmatprep.mubr.bf16.mxu0 0
        %2267 = vmatmul.mubr.bf16.gmra.mrb[0].mxu0 %v2119
        %v2268 = vpop.f32.mrb[0].mxu0
        %v2269 = vadd.f32 %v2152, %v2268
        %v2270 = vpop.f32.mrb[0].mxu0
        %v2271 = vpop.f32.mrb[0].mxu0
        %v2272 = vadd.f32 %v2152, %v2271
        %v2273 = vpop.f32.mrb[0].mxu0
        %2274 = vmatprep.mubr.bf16.mxu0 0
        %2275 = vmatmul.mubr.bf16.gmra.mrb[0].mxu0 %v2120
        %v2276 = vpop.f32.mrb[0].mxu0
        %v2277 = vadd.f32 %v2152, %v2276
        %v2278 = vpop.f32.mrb[0].mxu0
        %v2279 = vpop.f32.mrb[0].mxu0
        %v2280 = vadd.f32 %v2152, %v2279
        %v2281 = vpop.f32.mrb[0].mxu0
        %2282 = vmatprep.mubr.bf16.mxu0 0
        %2283 = vmatmul.mubr.bf16.gmra.mrb[0].mxu0 %v2121
        %v2284 = vpop.f32.mrb[0].mxu0
        %v2285 = vadd.f32 %v2152, %v2284
        %v2286 = vpop.f32.mrb[0].mxu0
        %v2287 = vpop.f32.mrb[0].mxu0
        %v2288 = vadd.f32 %v2152, %v2287
        %v2289 = vpop.f32.mrb[0].mxu0
        %2290 = vmatprep.mubr.bf16.mxu0 0
        %2291 = vmatmul.mubr.bf16.gmra.mrb[0].mxu0 %v2122
        %v2292 = vpop.f32.mrb[0].mxu0
        %v2293 = vadd.f32 %v2152, %v2292
        %v2294 = vpop.f32.mrb[0].mxu0
        %v2295 = vpop.f32.mrb[0].mxu0
        %v2296 = vadd.f32 %v2152, %v2295
        %v2297 = vpop.f32.mrb[0].mxu0
        %2298 = vmatprep.mubr.bf16.mxu0 0
        %2299 = vmatmul.mubr.bf16.gmra.mrb[0].mxu0 %v2123
        %v2300 = vpop.f32.mrb[0].mxu0
        %v2301 = vadd.f32 %v2152, %v2300
        %v2302 = vpop.f32.mrb[0].mxu0
        %v2303 = vpop.f32.mrb[0].mxu0
        %v2304 = vadd.f32 %v2152, %v2303
        %v2305 = vpop.f32.mrb[0].mxu0
        %2306 = vmatprep.mubr.bf16.mxu0 0
        %2307 = vmatmul.mubr.bf16.gmra.mrb[0].mxu0 %v2124
        %v2308 = vpop.f32.mrb[0].mxu0
        %v2309 = vadd.f32 %v2152, %v2308
        %v2310 = vpop.f32.mrb[0].mxu0
        %v2311 = vpop.f32.mrb[0].mxu0
        %v2312 = vadd.f32 %v2152, %v2311
        %v2313 = vpop.f32.mrb[0].mxu0
        %2314 = vmatprep.mubr.bf16.mxu0 0
        %2315 = vmatmul.mubr.bf16.gmra.mrb[0].mxu0 %v2125
        %v2316 = vpop.f32.mrb[0].mxu0
        %v2317 = vadd.f32 %v2152, %v2316
        %v2318 = vpop.f32.mrb[0].mxu0
        %v2319 = vpop.f32.mrb[0].mxu0
        %v2320 = vadd.f32 %v2152, %v2319
        %v2321 = vpop.f32.mrb[0].mxu0
        %2322 = vmatprep.mubr.bf16.mxu0 0
        %2323 = vmatmul.mubr.bf16.gmra.mrb[0].mxu0 %v2126
        %v2324 = vpop.f32.mrb[0].mxu0
        %v2325 = vadd.f32 %v2152, %v2324
        %v2326 = vpop.f32.mrb[0].mxu0
        %v2327 = vpop.f32.mrb[0].mxu0
        %v2328 = vadd.f32 %v2152, %v2327
        %v2329 = vpop.f32.mrb[0].mxu0
        %2330 = vmatprep.mubr.bf16.mxu0 0
        %2331 = vmatmul.mubr.bf16.gmra.mrb[0].mxu0 %v2127
        %v2332 = vpop.f32.mrb[0].mxu0
        %v2333 = vadd.f32 %v2152, %v2332
        %v2334 = vpop.f32.mrb[0].mxu0
        %v2335 = vpop.f32.mrb[0].mxu0
        %v2336 = vadd.f32 %v2152, %v2335
        %v2337 = vpop.f32.mrb[0].mxu0
        %2338 = vmatprep.mubr.bf16.mxu0 0
        %2339 = vmatmul.mubr.bf16.gmra.mrb[0].mxu0 %v2128
        %v2340 = vpop.f32.mrb[0].mxu0
        %v2341 = vadd.f32 %v2152, %v2340
        %v2342 = vpop.f32.mrb[0].mxu0
        %v2343 = vpop.f32.mrb[0].mxu0
        %v2344 = vadd.f32 %v2152, %v2343
        %v2345 = vpop.f32.mrb[0].mxu0
        %2346 = vmatprep.mubr.bf16.mxu0 0
        %2347 = vmatmul.mubr.bf16.gmra.mrb[0].mxu0 %v2129
        %v2348 = vpop.f32.mrb[0].mxu0
        %v2349 = vadd.f32 %v2152, %v2348
        %v2350 = vpop.f32.mrb[0].mxu0
        %v2351 = vpop.f32.mrb[0].mxu0
        %v2352 = vadd.f32 %v2152, %v2351
        %v2353 = vpop.f32.mrb[0].mxu0
        %2354 = vmatprep.mubr.bf16.mxu0 0
        %2355 = vmatmul.mubr.bf16.gmra.mrb[0].mxu0 %v2130
        %v2356 = vpop.f32.mrb[0].mxu0
        %v2357 = vadd.f32 %v2152, %v2356
        %v2358 = vpop.f32.mrb[0].mxu0
        %v2359 = vpop.f32.mrb[0].mxu0
        %v2360 = vadd.f32 %v2152, %v2359
        %v2361 = vpop.f32.mrb[0].mxu0
        %2362 = vdwg.mxu0
        %2363 = vst [vmem:[%s476] sm:$0xff] %v2237
        %2364 = vst [vmem:[%s476 + $0x8] sm:$0xff] %v2240
        %2365 = vst [vmem:[%s476 + $0x10] sm:$0xff] %v2245
        %2366 = vst [vmem:[%s476 + $0x18] sm:$0xff] %v2248
        %2367 = vst [vmem:[%s476 + $0x20] sm:$0xff] %v2253
        %2368 = vst [vmem:[%s476 + $0x28] sm:$0xff] %v2256
        %2369 = vst [vmem:[%s476 + $0x30] sm:$0xff] %v2261
        %2370 = vst [vmem:[%s476 + $0x38] sm:$0xff] %v2264
        %2371 = vst [vmem:[%s476 + $0x40] sm:$0xff] %v2269
        %2372 = vst [vmem:[%s476 + $0x48] sm:$0xff] %v2272
        %2373 = vst [vmem:[%s476 + $0x50] sm:$0xff] %v2277
        %2374 = vst [vmem:[%s476 + $0x58] sm:$0xff] %v2280
        %2375 = vst [vmem:[%s476 + $0x60] sm:$0xff] %v2285
        %2376 = vst [vmem:[%s476 + $0x68] sm:$0xff] %v2288
        %2377 = vst [vmem:[%s476 + $0x70] sm:$0xff] %v2293
        %2378 = vst [vmem:[%s476 + $0x78] sm:$0xff] %v2296
        %2379 = vst [vmem:[%s476 + $0x80] sm:$0xff] %v2301
        %2380 = vst [vmem:[%s476 + $0x88] sm:$0xff] %v2304
        %2381 = vst [vmem:[%s476 + $0x90] sm:$0xff] %v2309
        %2382 = vst [vmem:[%s476 + $0x98] sm:$0xff] %v2312
        %2383 = vst [vmem:[%s476 + $0xa0] sm:$0xff] %v2317
        %2384 = vst [vmem:[%s476 + $0xa8] sm:$0xff] %v2320
        %2385 = vst [vmem:[%s476 + $0xb0] sm:$0xff] %v2325
        %2386 = vst [vmem:[%s476 + $0xb8] sm:$0xff] %v2328
        %2387 = vst [vmem:[%s476 + $0xc0] sm:$0xff] %v2333
        %2388 = vst [vmem:[%s476 + $0xc8] sm:$0xff] %v2336
        %2389 = vst [vmem:[%s476 + $0xd0] sm:$0xff] %v2341
        %2390 = vst [vmem:[%s476 + $0xd8] sm:$0xff] %v2344
        %2391 = vst [vmem:[%s476 + $0xe0] sm:$0xff] %v2349
        %2392 = vst [vmem:[%s476 + $0xe8] sm:$0xff] %v2352
        %2393 = vst [vmem:[%s476 + $0xf0] sm:$0xff] %v2357
        %2394 = vst [vmem:[%s476 + $0xf8] sm:$0xff] %v2360
        %s2395 = sand.u32 %s260, 1
        %s2396 = scalar_lea.sflag [#allocation4], %s2395
        %s2397 = sand.u32 %s260, 1
        %s2398 = smul.addr %s2397, 256
        %s2399 = scalar_lea.vmem [#allocation13], %s2398
        // Predicated region
        $region85: #{tpu_custom_call.1} parent=59 // pred_check
          %p2400 = pneg %p270
        $region86: #{tpu_custom_call.1} parent=59 // pred_check_branch
          %2402 = sbr.rel (%p2400) target = $region88
        $region87: #{tpu_custom_call.1} parent=59 // pred_region
          %s2403 = smul.u32 32, %s32
          %s2405 = ssub.s32 4096, 4096
          %2406 = vsyncadd %s2396, %s2405
          %s2407 = smul.addr %s2403, 128
          %s2408 = scalar_lea.hbm %s10, %s2407
          %s2409 = sshll.u32 %s2399, 4
          %s2410 = int_to_ptr.vmem [resolvable:$true] %s2409
          %2415 = dma.vmem_to_hbm [thread:$0]  %s2410, 4096, %s2408, %s2396, 128, 128, 8
        $region88: #{tpu_custom_call.1} parent=59 // pred_fallthru
          _
      $region60: #{tpu_custom_call.1} parent=5 // pred_fallthru
        _
      %p2416 = scmp.le.s32.totalorder 2, %s27
      // Predicated region
      $region89: #{tpu_custom_call.1} parent=5 // pred_check
        %p2417 = pneg %p2416
      $region90: #{tpu_custom_call.1} parent=5 // pred_check_branch
        %2419 = sbr.rel (%p2417) target = $region92
      $region91: #{tpu_custom_call.1} parent=5 // pred_region
        %s2420 = ssub.s32 %s27, 2
        // Predicated region
        $region93: #{tpu_custom_call.1} parent=91 // pred_check
          %p2421 = pneg %p276
        $region94: #{tpu_custom_call.1} parent=91 // pred_check_branch
          %2423 = sbr.rel (%p2421) target = $region96
        $region95: #{tpu_custom_call.1} parent=91 // pred_region
          %s2424 = sand.u32 %s261, 1
          %s2425 = scalar_lea.sflag [#allocation4], %s2424
          %s2426 = sand.u32 %s261, 1
          %s2427 = smul.addr %s2426, 256
          %s2428 = scalar_lea.vmem [#allocation13], %s2427
          %2429 = dma.done %s2425, 4096
        $region96: #{tpu_custom_call.1} parent=91 // pred_fallthru
          _
      $region92: #{tpu_custom_call.1} parent=5 // pred_fallthru
        _
    $region6: #{tpu_custom_call.1} parent=1 // loop_footer
      %s31 = sadd.s32 1, %s27
    $region7: #{tpu_custom_call.1} parent=1 // loop_footer_branch
      %26 = sbr.rel target = $region3
    $region8: #{tpu_custom_call.1} parent=1 // loop_exit
      _
    %2430 = vsyncpa [#allocation3], 1
    %s2431 = scalar_lea.sflag [#allocation3], 1
    %2432 = vsyncpa %s2431, 1
    %2433 = vsyncpa [#allocation6], 1
    %s2434 = scalar_lea.sflag [#allocation6], 1
    %2435 = vsyncpa %s2434, 1
    %2436 = vsyncpa [#allocation9], 1
    %2437 = vsyncpa [#allocation12], 1
    %2438 = vsyncpa [#allocation4], 1
    %s2439 = scalar_lea.sflag [#allocation4], 1
    %2440 = vsyncpa %s2439, 1

</llo_original>
